<compile_context>
chip_gen: v7x
topology: tpu7x:2x2x1
jax: 0.10.0
libtpu: 0.0.40
codegen_flags: <defaults>
</compile_context>

<pallas_src>
import math

import numpy as np
import jax
import jax.numpy as jnp
from jax import lax
from jax.experimental import pallas as pl
from jax.experimental.pallas import tpu as pltpu


def _round_up(x, m):
    return ((x + m - 1) // m) * m


# ------------------------------ fused kernel --------------------------------

def _mnist_fused_kernel(x_ref, w1_ref, b1_ref, w2_ref, b2_ref, w3_ref, b3_ref,
                        o_ref, xpad_ref, h1pad_ref, h2pad_ref):
    """Processes a block of `tb` images end-to-end in VMEM.

    Layouts (per grid step):
      x_ref     : (28, tb, 28) f32   -- (spatial row, batch, col)
      xpad_ref  : (29, tb, 28) bf16  -- row-padded input  (row 0 = zero pad)
      h1pad_ref : (15, tb, 224) bf16 -- conv1 out, rows padded, lanes = col*16+ch
      h2pad_ref : (9,  tb, 112) bf16 -- conv2 out, rows padded, lanes = col*16+ch
      wN_ref    : (3, K, N) bf16 banded matrices (one per kernel row kh); the
                  stride-2 column window + width zero-padding of each conv is
                  folded into the band structure, so every conv layer is just
                  3 dense lane-aligned MXU matmuls accumulated in f32.
    """
    tb = x_ref.shape[1]
    f32 = jnp.float32
    bf16 = jnp.bfloat16

    # ---- stage the input block into the row-padded scratch -----------------
    xpad_ref[0] = jnp.zeros((tb, x_ref.shape[2]), bf16)       # top zero-pad row
    for r in range(28):
        xpad_ref[r + 1] = x_ref[r].astype(bf16)

    def conv_banded(src_ref, n_out_rows, w_ref, b_ref):
        """relu(conv) as 3 banded matmuls; result rows are ordered (i, b)."""
        acc = None
        for kh in range(3):
            lhs = jnp.concatenate(
                [src_ref[2 * i + kh] for i in range(n_out_rows)], axis=0)
            part = jnp.dot(lhs, w_ref[kh], preferred_element_type=f32)
            acc = part if acc is None else acc + part
        return jnp.maximum(acc + b_ref[...], 0.0)              # f32 epilogue

    # ---- conv1: 1 -> 16, 28x28 -> 14x14 -------------------------------------
    h1 = conv_banded(xpad_ref, 14, w1_ref, b1_ref)             # (14*tb, 224)
    h1pad_ref[0] = jnp.zeros((tb, w1_ref.shape[2]), bf16)
    for i in range(14):
        h1pad_ref[i + 1] = h1[i * tb:(i + 1) * tb, :].astype(bf16)

    # ---- conv2: 16 -> 16, 14x14 -> 7x7 --------------------------------------
    h2 = conv_banded(h1pad_ref, 7, w2_ref, b2_ref)             # (7*tb, 112)
    h2pad_ref[0] = jnp.zeros((tb, w2_ref.shape[2]), bf16)
    h2pad_ref[8] = jnp.zeros((tb, w2_ref.shape[2]), bf16)
    for i in range(7):
        h2pad_ref[i + 1] = h2[i * tb:(i + 1) * tb, :].astype(bf16)

    # ---- conv3: 16 -> 10, 7x7 -> 4x4, fused 4x4 average pool ----------------
    h3 = conv_banded(h2pad_ref, 4, w3_ref, b3_ref)             # (4*tb, 40)
    rsum = h3[0:tb] + h3[tb:2 * tb] + h3[2 * tb:3 * tb] + h3[3 * tb:4 * tb]
    pooled = (rsum[:, 0:10] + rsum[:, 10:20] +
              rsum[:, 20:30] + rsum[:, 30:40]) * (1.0 / 16.0)  # (tb, 10)
    o_ref[...] = pooled.astype(o_ref.dtype)


# -------------------------------- wrapper ------------------------------------

@jax.jit
def mnist_cnn_forward(x, params):
    """x: (B, 784) f32 (or reshapeable to (-1, 28, 28)); returns (B, 10) f32."""
    w1, b1 = params["conv1"]
    w2, b2 = params["conv2"]
    w3, b3 = params["conv3"]

    x = x.reshape(-1, 28, 28)
    bsz = x.shape[0]

    tb = min(128, _round_up(bsz, 8))
    if 8 < bsz <= tb:
        # A single block would leave the second v7x TensorCore idle: split it.
        tb = _round_up(pl.cdiv(bsz, 2), 8)
    bpad = _round_up(bsz, tb)
    if bpad != bsz:
        x = jnp.pad(x, ((0, bpad - bsz), (0, 0), (0, 0)))

    # (row, batch, col) layout so the kernel stages spatial rows with plain
    # leading-dim indexing (no in-kernel transpose / strided gathers).
    # TODO(synk): this single small XLA transpose of the raw input is the only
    # wrapper-side data movement left; all other layout work is in-kernel.
    xt = jnp.transpose(x, (1, 0, 2))

    grid = bpad // tb
    out = pl.pallas_call(
        _mnist_fused_kernel,
        out_shape=jax.ShapeDtypeStruct((bpad, 10), jnp.float32),
        grid_spec=pltpu.PrefetchScalarGridSpec(
            num_scalar_prefetch=0,
            grid=(grid,),
            in_specs=[
                pl.BlockSpec((28, tb, 28), lambda i: (0, i, 0)),
                pl.BlockSpec(w1.shape, lambda i: (0, 0, 0)),   # resident weights
                pl.BlockSpec(b1.shape, lambda i: (0, 0)),
                pl.BlockSpec(w2.shape, lambda i: (0, 0, 0)),
                pl.BlockSpec(b2.shape, lambda i: (0, 0)),
                pl.BlockSpec(w3.shape, lambda i: (0, 0, 0)),
                pl.BlockSpec(b3.shape, lambda i: (0, 0)),
            ],
            out_specs=pl.BlockSpec((tb, 10), lambda i: (i, 0)),
            scratch_shapes=[
                pltpu.VMEM((29, tb, 28), jnp.bfloat16),    # padded input
                pltpu.VMEM((15, tb, 224), jnp.bfloat16),   # padded conv1 out
                pltpu.VMEM((9, tb, 112), jnp.bfloat16),    # padded conv2 out
            ],
        ),
        compiler_params=pltpu.CompilerParams(
            dimension_semantics=("parallel",),
            vmem_limit_bytes=32 * 1024 * 1024,
        ),
    )(xt, w1, b1, w2, b2, w3, b3)
    return out[:bsz]


# ------------------------------ param prep -----------------------------------

_LAYER_GEOM = {            # name -> (input cols, output cols) at stride 2, pad 1
    "conv1": (28, 14),
    "conv2": (14, 7),
    "conv3": (7, 4),
}


def prepare_params(params_torch_layout):
    """One-time conversion of PyTorch-layout conv params (O, I, 3, 3) into
    per-kh banded matrices (3, S_in*I, S_out*O) bf16 and (1, S_out*O) f32
    biases.  The band folds the stride-2 column window and the width
    zero-padding into a dense matmul: W[kh, col*I+ci, j*O+co] = w[co,ci,kh,kw]
    with kw = col - 2j + 1 when 0 <= kw <= 2."""
    out = {}
    for name, (w, b) in params_torch_layout.items():
        s_in, s_out = _LAYER_GEOM[name]
        w = np.asarray(w, np.float32)           # (cout, cin, 3, 3)
        b = np.asarray(b, np.float32)           # (cout,)
        cout, cin = w.shape[0], w.shape[1]
        banded = np.zeros((3, s_in * cin, s_out * cout), np.float32)
        for kh in range(3):
            for j in range(s_out):
                for kw in range(3):
                    col = 2 * j + kw - 1
                    if 0 <= col < s_in:
                        banded[kh,
                               col * cin:(col + 1) * cin,
                               j * cout:(j + 1) * cout] = w[:, :, kh, kw].T
        bias = np.tile(b, s_out)[None, :]
        out[name] = (jnp.asarray(banded, jnp.bfloat16),
                     jnp.asarray(bias, jnp.float32))
    return out


# ------------------------------ test harness ---------------------------------

def _reference_forward(x, params_torch):
    """Pure-JAX f32 reference matching the PyTorch module exactly."""
    bsz = x.shape[0]
    h = x.reshape(bsz, 1, 28, 28)
    for name in ("conv1", "conv2", "conv3"):
        w, b = params_torch[name]
        h = lax.conv_general_dilated(
            h, w, window_strides=(2, 2), padding=((1, 1), (1, 1)),
            dimension_numbers=("NCHW", "OIHW", "NCHW"))
        h = jax.nn.relu(h + b.reshape(1, -1, 1, 1))
    return jnp.mean(h, axis=(2, 3))            # avg_pool2d(4) on a 4x4 map


def _init_conv(key, c_out, c_in, k=3):
    """PyTorch nn.Conv2d default init: U(-1/sqrt(fan_in), 1/sqrt(fan_in))."""
    k_w, k_b = jax.random.split(key)
    fan_in = c_in * k * k
    bound = 1.0 / math.sqrt(fan_in)
    w = jax.random.uniform(k_w, (c_out, c_in, k, k), jnp.float32, -bound, bound)
    b = jax.random.uniform(k_b, (c_out,), jnp.float32, -bound, bound)
    return w, b


if __name__ == "__main__":
    key = jax.random.PRNGKey(0)
    k_x, k1, k2, k3 = jax.random.split(key, 4)

    bs = 8                                     # small smoke-test batch
    x = jax.random.normal(k_x, (bs, 784), jnp.float32)

    params_torch = {
        "conv1": _init_conv(k1, 16, 1),        # Conv2d(1, 16, 3, stride=2, pad=1)
        "conv2": _init_conv(k2, 16, 16),       # Conv2d(16, 16, 3, stride=2, pad=1)
        "conv3": _init_conv(k3, 10, 16),       # Conv2d(16, 10, 3, stride=2, pad=1)
    }
    params = prepare_params(params_torch)

    out = mnist_cnn_forward(x, params)
    out = jax.block_until_ready(out)

    ref = _reference_forward(x, params_torch)
    assert out.shape == (bs, 10)
    # bf16 MXU operands / bf16 VMEM activations vs. f32 reference.
    assert jnp.allclose(out, ref, atol=5e-2, rtol=5e-2), (
        float(jnp.max(jnp.abs(out - ref))))

    print("KERNEL_OK")
</pallas_src>

<mosaic_0001>
module attributes {stable_mosaic.version = 11 : i64} {
  func.func @_mnist_fused_kernel(%arg0: i32, %arg1: memref<28x8x28xf32, #tpu.memory_space<vmem>>, %arg2: memref<3x28x224xbf16, #tpu.memory_space<vmem>>, %arg3: memref<1x224xf32, #tpu.memory_space<vmem>>, %arg4: memref<3x224x112xbf16, #tpu.memory_space<vmem>>, %arg5: memref<1x112xf32, #tpu.memory_space<vmem>>, %arg6: memref<3x112x40xbf16, #tpu.memory_space<vmem>>, %arg7: memref<1x40xf32, #tpu.memory_space<vmem>>, %arg8: memref<8x10xf32, #tpu.memory_space<vmem>>, %arg9: memref<29x8x28xbf16, #tpu.memory_space<vmem>>, %arg10: memref<15x8x224xbf16, #tpu.memory_space<vmem>>, %arg11: memref<9x8x112xbf16, #tpu.memory_space<vmem>>) attributes {dimension_semantics = [#tpu.dimension_semantics<parallel>], iteration_bounds = array<i64: 1>, scalar_prefetch = 0 : i64, scratch_operands = 3 : i64, tpu.core_type = #tpu.core_type<tc>, window_params = [{transform_indices = @transform_0, window_bounds = array<i64: 28, 8, 28>}, {pipeline_mode = #tpu.pipeline_mode<synchronous>, transform_indices = @transform_1, window_bounds = array<i64: 3, 28, 224>}, {pipeline_mode = #tpu.pipeline_mode<synchronous>, transform_indices = @transform_2, window_bounds = array<i64: 1, 224>}, {pipeline_mode = #tpu.pipeline_mode<synchronous>, transform_indices = @transform_3, window_bounds = array<i64: 3, 224, 112>}, {pipeline_mode = #tpu.pipeline_mode<synchronous>, transform_indices = @transform_4, window_bounds = array<i64: 1, 112>}, {pipeline_mode = #tpu.pipeline_mode<synchronous>, transform_indices = @transform_5, window_bounds = array<i64: 3, 112, 40>}, {pipeline_mode = #tpu.pipeline_mode<synchronous>, transform_indices = @transform_6, window_bounds = array<i64: 1, 40>}, {transform_indices = @transform_7, window_bounds = array<i64: 8, 10>}]} {
    %cst = arith.constant 0.000000e+00 : bf16
    %0 = vector.broadcast %cst : bf16 to vector<8x28xbf16>
    %c0 = arith.constant 0 : index
    %c0_0 = arith.constant 0 : index
    %c0_1 = arith.constant 0 : index
    %1 = vector.load %arg9[%c0, %c0_0, %c0_1] : memref<29x8x28xbf16, #tpu.memory_space<vmem>>, vector<1x8x28xbf16>
    %2 = vector.shape_cast %1 : vector<1x8x28xbf16> to vector<8x28xbf16>
    %3 = vector.shape_cast %0 : vector<8x28xbf16> to vector<1x8x28xbf16>
    tpu.vector_store %arg9[%c0, %c0_0, %c0_1], %3 {strides = array<i32>} : memref<29x8x28xbf16, #tpu.memory_space<vmem>>, vector<1x8x28xbf16>,
    %c0_2 = arith.constant 0 : index
    %c0_3 = arith.constant 0 : index
    %c0_4 = arith.constant 0 : index
    %4 = vector.load %arg1[%c0_2, %c0_3, %c0_4] : memref<28x8x28xf32, #tpu.memory_space<vmem>>, vector<1x8x28xf32>
    %5 = vector.shape_cast %4 : vector<1x8x28xf32> to vector<8x28xf32>
    %6 = arith.truncf %5 : vector<8x28xf32> to vector<8x28xbf16>
    %c1 = arith.constant 1 : index
    %c0_5 = arith.constant 0 : index
    %c0_6 = arith.constant 0 : index
    %7 = vector.load %arg9[%c1, %c0_5, %c0_6] : memref<29x8x28xbf16, #tpu.memory_space<vmem>>, vector<1x8x28xbf16>
    %8 = vector.shape_cast %7 : vector<1x8x28xbf16> to vector<8x28xbf16>
    %9 = vector.shape_cast %6 : vector<8x28xbf16> to vector<1x8x28xbf16>
    tpu.vector_store %arg9[%c1, %c0_5, %c0_6], %9 {strides = array<i32>} : memref<29x8x28xbf16, #tpu.memory_space<vmem>>, vector<1x8x28xbf16>,
    %c1_7 = arith.constant 1 : index
    %c0_8 = arith.constant 0 : index
    %c0_9 = arith.constant 0 : index
    %10 = vector.load %arg1[%c1_7, %c0_8, %c0_9] : memref<28x8x28xf32, #tpu.memory_space<vmem>>, vector<1x8x28xf32>
    %11 = vector.shape_cast %10 : vector<1x8x28xf32> to vector<8x28xf32>
    %12 = arith.truncf %11 : vector<8x28xf32> to vector<8x28xbf16>
    %c2 = arith.constant 2 : index
    %c0_10 = arith.constant 0 : index
    %c0_11 = arith.constant 0 : index
    %13 = vector.load %arg9[%c2, %c0_10, %c0_11] : memref<29x8x28xbf16, #tpu.memory_space<vmem>>, vector<1x8x28xbf16>
    %14 = vector.shape_cast %13 : vector<1x8x28xbf16> to vector<8x28xbf16>
    %15 = vector.shape_cast %12 : vector<8x28xbf16> to vector<1x8x28xbf16>
    tpu.vector_store %arg9[%c2, %c0_10, %c0_11], %15 {strides = array<i32>} : memref<29x8x28xbf16, #tpu.memory_space<vmem>>, vector<1x8x28xbf16>,
    %c2_12 = arith.constant 2 : index
    %c0_13 = arith.constant 0 : index
    %c0_14 = arith.constant 0 : index
    %16 = vector.load %arg1[%c2_12, %c0_13, %c0_14] : memref<28x8x28xf32, #tpu.memory_space<vmem>>, vector<1x8x28xf32>
    %17 = vector.shape_cast %16 : vector<1x8x28xf32> to vector<8x28xf32>
    %18 = arith.truncf %17 : vector<8x28xf32> to vector<8x28xbf16>
    %c3 = arith.constant 3 : index
    %c0_15 = arith.constant 0 : index
    %c0_16 = arith.constant 0 : index
    %19 = vector.load %arg9[%c3, %c0_15, %c0_16] : memref<29x8x28xbf16, #tpu.memory_space<vmem>>, vector<1x8x28xbf16>
    %20 = vector.shape_cast %19 : vector<1x8x28xbf16> to vector<8x28xbf16>
    %21 = vector.shape_cast %18 : vector<8x28xbf16> to vector<1x8x28xbf16>
    tpu.vector_store %arg9[%c3, %c0_15, %c0_16], %21 {strides = array<i32>} : memref<29x8x28xbf16, #tpu.memory_space<vmem>>, vector<1x8x28xbf16>,
    %c3_17 = arith.constant 3 : index
    %c0_18 = arith.constant 0 : index
    %c0_19 = arith.constant 0 : index
    %22 = vector.load %arg1[%c3_17, %c0_18, %c0_19] : memref<28x8x28xf32, #tpu.memory_space<vmem>>, vector<1x8x28xf32>
    %23 = vector.shape_cast %22 : vector<1x8x28xf32> to vector<8x28xf32>
    %24 = arith.truncf %23 : vector<8x28xf32> to vector<8x28xbf16>
    %c4 = arith.constant 4 : index
    %c0_20 = arith.constant 0 : index
    %c0_21 = arith.constant 0 : index
    %25 = vector.load %arg9[%c4, %c0_20, %c0_21] : memref<29x8x28xbf16, #tpu.memory_space<vmem>>, vector<1x8x28xbf16>
    %26 = vector.shape_cast %25 : vector<1x8x28xbf16> to vector<8x28xbf16>
    %27 = vector.shape_cast %24 : vector<8x28xbf16> to vector<1x8x28xbf16>
    tpu.vector_store %arg9[%c4, %c0_20, %c0_21], %27 {strides = array<i32>} : memref<29x8x28xbf16, #tpu.memory_space<vmem>>, vector<1x8x28xbf16>,
    %c4_22 = arith.constant 4 : index
    %c0_23 = arith.constant 0 : index
    %c0_24 = arith.constant 0 : index
    %28 = vector.load %arg1[%c4_22, %c0_23, %c0_24] : memref<28x8x28xf32, #tpu.memory_space<vmem>>, vector<1x8x28xf32>
    %29 = vector.shape_cast %28 : vector<1x8x28xf32> to vector<8x28xf32>
    %30 = arith.truncf %29 : vector<8x28xf32> to vector<8x28xbf16>
    %c5 = arith.constant 5 : index
    %c0_25 = arith.constant 0 : index
    %c0_26 = arith.constant 0 : index
    %31 = vector.load %arg9[%c5, %c0_25, %c0_26] : memref<29x8x28xbf16, #tpu.memory_space<vmem>>, vector<1x8x28xbf16>
    %32 = vector.shape_cast %31 : vector<1x8x28xbf16> to vector<8x28xbf16>
    %33 = vector.shape_cast %30 : vector<8x28xbf16> to vector<1x8x28xbf16>
    tpu.vector_store %arg9[%c5, %c0_25, %c0_26], %33 {strides = array<i32>} : memref<29x8x28xbf16, #tpu.memory_space<vmem>>, vector<1x8x28xbf16>,
    %c5_27 = arith.constant 5 : index
    %c0_28 = arith.constant 0 : index
    %c0_29 = arith.constant 0 : index
    %34 = vector.load %arg1[%c5_27, %c0_28, %c0_29] : memref<28x8x28xf32, #tpu.memory_space<vmem>>, vector<1x8x28xf32>
    %35 = vector.shape_cast %34 : vector<1x8x28xf32> to vector<8x28xf32>
    %36 = arith.truncf %35 : vector<8x28xf32> to vector<8x28xbf16>
    %c6 = arith.constant 6 : index
    %c0_30 = arith.constant 0 : index
    %c0_31 = arith.constant 0 : index
    %37 = vector.load %arg9[%c6, %c0_30, %c0_31] : memref<29x8x28xbf16, #tpu.memory_space<vmem>>, vector<1x8x28xbf16>
    %38 = vector.shape_cast %37 : vector<1x8x28xbf16> to vector<8x28xbf16>
    %39 = vector.shape_cast %36 : vector<8x28xbf16> to vector<1x8x28xbf16>
    tpu.vector_store %arg9[%c6, %c0_30, %c0_31], %39 {strides = array<i32>} : memref<29x8x28xbf16, #tpu.memory_space<vmem>>, vector<1x8x28xbf16>,
    %c6_32 = arith.constant 6 : index
    %c0_33 = arith.constant 0 : index
    %c0_34 = arith.constant 0 : index
    %40 = vector.load %arg1[%c6_32, %c0_33, %c0_34] : memref<28x8x28xf32, #tpu.memory_space<vmem>>, vector<1x8x28xf32>
    %41 = vector.shape_cast %40 : vector<1x8x28xf32> to vector<8x28xf32>
    %42 = arith.truncf %41 : vector<8x28xf32> to vector<8x28xbf16>
    %c7 = arith.constant 7 : index
    %c0_35 = arith.constant 0 : index
    %c0_36 = arith.constant 0 : index
    %43 = vector.load %arg9[%c7, %c0_35, %c0_36] : memref<29x8x28xbf16, #tpu.memory_space<vmem>>, vector<1x8x28xbf16>
    %44 = vector.shape_cast %43 : vector<1x8x28xbf16> to vector<8x28xbf16>
    %45 = vector.shape_cast %42 : vector<8x28xbf16> to vector<1x8x28xbf16>
    tpu.vector_store %arg9[%c7, %c0_35, %c0_36], %45 {strides = array<i32>} : memref<29x8x28xbf16, #tpu.memory_space<vmem>>, vector<1x8x28xbf16>,
    %c7_37 = arith.constant 7 : index
    %c0_38 = arith.constant 0 : index
    %c0_39 = arith.constant 0 : index
    %46 = vector.load %arg1[%c7_37, %c0_38, %c0_39] : memref<28x8x28xf32, #tpu.memory_space<vmem>>, vector<1x8x28xf32>
    %47 = vector.shape_cast %46 : vector<1x8x28xf32> to vector<8x28xf32>
    %48 = arith.truncf %47 : vector<8x28xf32> to vector<8x28xbf16>
    %c8 = arith.constant 8 : index
    %c0_40 = arith.constant 0 : index
    %c0_41 = arith.constant 0 : index
    %49 = vector.load %arg9[%c8, %c0_40, %c0_41] : memref<29x8x28xbf16, #tpu.memory_space<vmem>>, vector<1x8x28xbf16>
    %50 = vector.shape_cast %49 : vector<1x8x28xbf16> to vector<8x28xbf16>
    %51 = vector.shape_cast %48 : vector<8x28xbf16> to vector<1x8x28xbf16>
    tpu.vector_store %arg9[%c8, %c0_40, %c0_41], %51 {strides = array<i32>} : memref<29x8x28xbf16, #tpu.memory_space<vmem>>, vector<1x8x28xbf16>,
    %c8_42 = arith.constant 8 : index
    %c0_43 = arith.constant 0 : index
    %c0_44 = arith.constant 0 : index
    %52 = vector.load %arg1[%c8_42, %c0_43, %c0_44] : memref<28x8x28xf32, #tpu.memory_space<vmem>>, vector<1x8x28xf32>
    %53 = vector.shape_cast %52 : vector<1x8x28xf32> to vector<8x28xf32>
    %54 = arith.truncf %53 : vector<8x28xf32> to vector<8x28xbf16>
    %c9 = arith.constant 9 : index
    %c0_45 = arith.constant 0 : index
    %c0_46 = arith.constant 0 : index
    %55 = vector.load %arg9[%c9, %c0_45, %c0_46] : memref<29x8x28xbf16, #tpu.memory_space<vmem>>, vector<1x8x28xbf16>
    %56 = vector.shape_cast %55 : vector<1x8x28xbf16> to vector<8x28xbf16>
    %57 = vector.shape_cast %54 : vector<8x28xbf16> to vector<1x8x28xbf16>
    tpu.vector_store %arg9[%c9, %c0_45, %c0_46], %57 {strides = array<i32>} : memref<29x8x28xbf16, #tpu.memory_space<vmem>>, vector<1x8x28xbf16>,
    %c9_47 = arith.constant 9 : index
    %c0_48 = arith.constant 0 : index
    %c0_49 = arith.constant 0 : index
    %58 = vector.load %arg1[%c9_47, %c0_48, %c0_49] : memref<28x8x28xf32, #tpu.memory_space<vmem>>, vector<1x8x28xf32>
    %59 = vector.shape_cast %58 : vector<1x8x28xf32> to vector<8x28xf32>
    %60 = arith.truncf %59 : vector<8x28xf32> to vector<8x28xbf16>
    %c10 = arith.constant 10 : index
    %c0_50 = arith.constant 0 : index
    %c0_51 = arith.constant 0 : index
    %61 = vector.load %arg9[%c10, %c0_50, %c0_51] : memref<29x8x28xbf16, #tpu.memory_space<vmem>>, vector<1x8x28xbf16>
    %62 = vector.shape_cast %61 : vector<1x8x28xbf16> to vector<8x28xbf16>
    %63 = vector.shape_cast %60 : vector<8x28xbf16> to vector<1x8x28xbf16>
    tpu.vector_store %arg9[%c10, %c0_50, %c0_51], %63 {strides = array<i32>} : memref<29x8x28xbf16, #tpu.memory_space<vmem>>, vector<1x8x28xbf16>,
    %c10_52 = arith.constant 10 : index
    %c0_53 = arith.constant 0 : index
    %c0_54 = arith.constant 0 : index
    %64 = vector.load %arg1[%c10_52, %c0_53, %c0_54] : memref<28x8x28xf32, #tpu.memory_space<vmem>>, vector<1x8x28xf32>
    %65 = vector.shape_cast %64 : vector<1x8x28xf32> to vector<8x28xf32>
    %66 = arith.truncf %65 : vector<8x28xf32> to vector<8x28xbf16>
    %c11 = arith.constant 11 : index
    %c0_55 = arith.constant 0 : index
    %c0_56 = arith.constant 0 : index
    %67 = vector.load %arg9[%c11, %c0_55, %c0_56] : memref<29x8x28xbf16, #tpu.memory_space<vmem>>, vector<1x8x28xbf16>
    %68 = vector.shape_cast %67 : vector<1x8x28xbf16> to vector<8x28xbf16>
    %69 = vector.shape_cast %66 : vector<8x28xbf16> to vector<1x8x28xbf16>
    tpu.vector_store %arg9[%c11, %c0_55, %c0_56], %69 {strides = array<i32>} : memref<29x8x28xbf16, #tpu.memory_space<vmem>>, vector<1x8x28xbf16>,
    %c11_57 = arith.constant 11 : index
    %c0_58 = arith.constant 0 : index
    %c0_59 = arith.constant 0 : index
    %70 = vector.load %arg1[%c11_57, %c0_58, %c0_59] : memref<28x8x28xf32, #tpu.memory_space<vmem>>, vector<1x8x28xf32>
    %71 = vector.shape_cast %70 : vector<1x8x28xf32> to vector<8x28xf32>
    %72 = arith.truncf %71 : vector<8x28xf32> to vector<8x28xbf16>
    %c12 = arith.constant 12 : index
    %c0_60 = arith.constant 0 : index
    %c0_61 = arith.constant 0 : index
    %73 = vector.load %arg9[%c12, %c0_60, %c0_61] : memref<29x8x28xbf16, #tpu.memory_space<vmem>>, vector<1x8x28xbf16>
    %74 = vector.shape_cast %73 : vector<1x8x28xbf16> to vector<8x28xbf16>
    %75 = vector.shape_cast %72 : vector<8x28xbf16> to vector<1x8x28xbf16>
    tpu.vector_store %arg9[%c12, %c0_60, %c0_61], %75 {strides = array<i32>} : memref<29x8x28xbf16, #tpu.memory_space<vmem>>, vector<1x8x28xbf16>,
    %c12_62 = arith.constant 12 : index
    %c0_63 = arith.constant 0 : index
    %c0_64 = arith.constant 0 : index
    %76 = vector.load %arg1[%c12_62, %c0_63, %c0_64] : memref<28x8x28xf32, #tpu.memory_space<vmem>>, vector<1x8x28xf32>
    %77 = vector.shape_cast %76 : vector<1x8x28xf32> to vector<8x28xf32>
    %78 = arith.truncf %77 : vector<8x28xf32> to vector<8x28xbf16>
    %c13 = arith.constant 13 : index
    %c0_65 = arith.constant 0 : index
    %c0_66 = arith.constant 0 : index
    %79 = vector.load %arg9[%c13, %c0_65, %c0_66] : memref<29x8x28xbf16, #tpu.memory_space<vmem>>, vector<1x8x28xbf16>
    %80 = vector.shape_cast %79 : vector<1x8x28xbf16> to vector<8x28xbf16>
    %81 = vector.shape_cast %78 : vector<8x28xbf16> to vector<1x8x28xbf16>
    tpu.vector_store %arg9[%c13, %c0_65, %c0_66], %81 {strides = array<i32>} : memref<29x8x28xbf16, #tpu.memory_space<vmem>>, vector<1x8x28xbf16>,
    %c13_67 = arith.constant 13 : index
    %c0_68 = arith.constant 0 : index
    %c0_69 = arith.constant 0 : index
    %82 = vector.load %arg1[%c13_67, %c0_68, %c0_69] : memref<28x8x28xf32, #tpu.memory_space<vmem>>, vector<1x8x28xf32>
    %83 = vector.shape_cast %82 : vector<1x8x28xf32> to vector<8x28xf32>
    %84 = arith.truncf %83 : vector<8x28xf32> to vector<8x28xbf16>
    %c14 = arith.constant 14 : index
    %c0_70 = arith.constant 0 : index
    %c0_71 = arith.constant 0 : index
    %85 = vector.load %arg9[%c14, %c0_70, %c0_71] : memref<29x8x28xbf16, #tpu.memory_space<vmem>>, vector<1x8x28xbf16>
    %86 = vector.shape_cast %85 : vector<1x8x28xbf16> to vector<8x28xbf16>
    %87 = vector.shape_cast %84 : vector<8x28xbf16> to vector<1x8x28xbf16>
    tpu.vector_store %arg9[%c14, %c0_70, %c0_71], %87 {strides = array<i32>} : memref<29x8x28xbf16, #tpu.memory_space<vmem>>, vector<1x8x28xbf16>,
    %c14_72 = arith.constant 14 : index
    %c0_73 = arith.constant 0 : index
    %c0_74 = arith.constant 0 : index
    %88 = vector.load %arg1[%c14_72, %c0_73, %c0_74] : memref<28x8x28xf32, #tpu.memory_space<vmem>>, vector<1x8x28xf32>
    %89 = vector.shape_cast %88 : vector<1x8x28xf32> to vector<8x28xf32>
    %90 = arith.truncf %89 : vector<8x28xf32> to vector<8x28xbf16>
    %c15 = arith.constant 15 : index
    %c0_75 = arith.constant 0 : index
    %c0_76 = arith.constant 0 : index
    %91 = vector.load %arg9[%c15, %c0_75, %c0_76] : memref<29x8x28xbf16, #tpu.memory_space<vmem>>, vector<1x8x28xbf16>
    %92 = vector.shape_cast %91 : vector<1x8x28xbf16> to vector<8x28xbf16>
    %93 = vector.shape_cast %90 : vector<8x28xbf16> to vector<1x8x28xbf16>
    tpu.vector_store %arg9[%c15, %c0_75, %c0_76], %93 {strides = array<i32>} : memref<29x8x28xbf16, #tpu.memory_space<vmem>>, vector<1x8x28xbf16>,
    %c15_77 = arith.constant 15 : index
    %c0_78 = arith.constant 0 : index
    %c0_79 = arith.constant 0 : index
    %94 = vector.load %arg1[%c15_77, %c0_78, %c0_79] : memref<28x8x28xf32, #tpu.memory_space<vmem>>, vector<1x8x28xf32>
    %95 = vector.shape_cast %94 : vector<1x8x28xf32> to vector<8x28xf32>
    %96 = arith.truncf %95 : vector<8x28xf32> to vector<8x28xbf16>
    %c16 = arith.constant 16 : index
    %c0_80 = arith.constant 0 : index
    %c0_81 = arith.constant 0 : index
    %97 = vector.load %arg9[%c16, %c0_80, %c0_81] : memref<29x8x28xbf16, #tpu.memory_space<vmem>>, vector<1x8x28xbf16>
    %98 = vector.shape_cast %97 : vector<1x8x28xbf16> to vector<8x28xbf16>
    %99 = vector.shape_cast %96 : vector<8x28xbf16> to vector<1x8x28xbf16>
    tpu.vector_store %arg9[%c16, %c0_80, %c0_81], %99 {strides = array<i32>} : memref<29x8x28xbf16, #tpu.memory_space<vmem>>, vector<1x8x28xbf16>,
    %c16_82 = arith.constant 16 : index
    %c0_83 = arith.constant 0 : index
    %c0_84 = arith.constant 0 : index
    %100 = vector.load %arg1[%c16_82, %c0_83, %c0_84] : memref<28x8x28xf32, #tpu.memory_space<vmem>>, vector<1x8x28xf32>
    %101 = vector.shape_cast %100 : vector<1x8x28xf32> to vector<8x28xf32>
    %102 = arith.truncf %101 : vector<8x28xf32> to vector<8x28xbf16>
    %c17 = arith.constant 17 : index
    %c0_85 = arith.constant 0 : index
    %c0_86 = arith.constant 0 : index
    %103 = vector.load %arg9[%c17, %c0_85, %c0_86] : memref<29x8x28xbf16, #tpu.memory_space<vmem>>, vector<1x8x28xbf16>
    %104 = vector.shape_cast %103 : vector<1x8x28xbf16> to vector<8x28xbf16>
    %105 = vector.shape_cast %102 : vector<8x28xbf16> to vector<1x8x28xbf16>
    tpu.vector_store %arg9[%c17, %c0_85, %c0_86], %105 {strides = array<i32>} : memref<29x8x28xbf16, #tpu.memory_space<vmem>>, vector<1x8x28xbf16>,
    %c17_87 = arith.constant 17 : index
    %c0_88 = arith.constant 0 : index
    %c0_89 = arith.constant 0 : index
    %106 = vector.load %arg1[%c17_87, %c0_88, %c0_89] : memref<28x8x28xf32, #tpu.memory_space<vmem>>, vector<1x8x28xf32>
    %107 = vector.shape_cast %106 : vector<1x8x28xf32> to vector<8x28xf32>
    %108 = arith.truncf %107 : vector<8x28xf32> to vector<8x28xbf16>
    %c18 = arith.constant 18 : index
    %c0_90 = arith.constant 0 : index
    %c0_91 = arith.constant 0 : index
    %109 = vector.load %arg9[%c18, %c0_90, %c0_91] : memref<29x8x28xbf16, #tpu.memory_space<vmem>>, vector<1x8x28xbf16>
    %110 = vector.shape_cast %109 : vector<1x8x28xbf16> to vector<8x28xbf16>
    %111 = vector.shape_cast %108 : vector<8x28xbf16> to vector<1x8x28xbf16>
    tpu.vector_store %arg9[%c18, %c0_90, %c0_91], %111 {strides = array<i32>} : memref<29x8x28xbf16, #tpu.memory_space<vmem>>, vector<1x8x28xbf16>,
    %c18_92 = arith.constant 18 : index
    %c0_93 = arith.constant 0 : index
    %c0_94 = arith.constant 0 : index
    %112 = vector.load %arg1[%c18_92, %c0_93, %c0_94] : memref<28x8x28xf32, #tpu.memory_space<vmem>>, vector<1x8x28xf32>
    %113 = vector.shape_cast %112 : vector<1x8x28xf32> to vector<8x28xf32>
    %114 = arith.truncf %113 : vector<8x28xf32> to vector<8x28xbf16>
    %c19 = arith.constant 19 : index
    %c0_95 = arith.constant 0 : index
    %c0_96 = arith.constant 0 : index
    %115 = vector.load %arg9[%c19, %c0_95, %c0_96] : memref<29x8x28xbf16, #tpu.memory_space<vmem>>, vector<1x8x28xbf16>
    %116 = vector.shape_cast %115 : vector<1x8x28xbf16> to vector<8x28xbf16>
    %117 = vector.shape_cast %114 : vector<8x28xbf16> to vector<1x8x28xbf16>
    tpu.vector_store %arg9[%c19, %c0_95, %c0_96], %117 {strides = array<i32>} : memref<29x8x28xbf16, #tpu.memory_space<vmem>>, vector<1x8x28xbf16>,
    %c19_97 = arith.constant 19 : index
    %c0_98 = arith.constant 0 : index
    %c0_99 = arith.constant 0 : index
    %118 = vector.load %arg1[%c19_97, %c0_98, %c0_99] : memref<28x8x28xf32, #tpu.memory_space<vmem>>, vector<1x8x28xf32>
    %119 = vector.shape_cast %118 : vector<1x8x28xf32> to vector<8x28xf32>
    %120 = arith.truncf %119 : vector<8x28xf32> to vector<8x28xbf16>
    %c20 = arith.constant 20 : index
    %c0_100 = arith.constant 0 : index
    %c0_101 = arith.constant 0 : index
    %121 = vector.load %arg9[%c20, %c0_100, %c0_101] : memref<29x8x28xbf16, #tpu.memory_space<vmem>>, vector<1x8x28xbf16>
    %122 = vector.shape_cast %121 : vector<1x8x28xbf16> to vector<8x28xbf16>
    %123 = vector.shape_cast %120 : vector<8x28xbf16> to vector<1x8x28xbf16>
    tpu.vector_store %arg9[%c20, %c0_100, %c0_101], %123 {strides = array<i32>} : memref<29x8x28xbf16, #tpu.memory_space<vmem>>, vector<1x8x28xbf16>,
    %c20_102 = arith.constant 20 : index
    %c0_103 = arith.constant 0 : index
    %c0_104 = arith.constant 0 : index
    %124 = vector.load %arg1[%c20_102, %c0_103, %c0_104] : memref<28x8x28xf32, #tpu.memory_space<vmem>>, vector<1x8x28xf32>
    %125 = vector.shape_cast %124 : vector<1x8x28xf32> to vector<8x28xf32>
    %126 = arith.truncf %125 : vector<8x28xf32> to vector<8x28xbf16>
    %c21 = arith.constant 21 : index
    %c0_105 = arith.constant 0 : index
    %c0_106 = arith.constant 0 : index
    %127 = vector.load %arg9[%c21, %c0_105, %c0_106] : memref<29x8x28xbf16, #tpu.memory_space<vmem>>, vector<1x8x28xbf16>
    %128 = vector.shape_cast %127 : vector<1x8x28xbf16> to vector<8x28xbf16>
    %129 = vector.shape_cast %126 : vector<8x28xbf16> to vector<1x8x28xbf16>
    tpu.vector_store %arg9[%c21, %c0_105, %c0_106], %129 {strides = array<i32>} : memref<29x8x28xbf16, #tpu.memory_space<vmem>>, vector<1x8x28xbf16>,
    %c21_107 = arith.constant 21 : index
    %c0_108 = arith.constant 0 : index
    %c0_109 = arith.constant 0 : index
    %130 = vector.load %arg1[%c21_107, %c0_108, %c0_109] : memref<28x8x28xf32, #tpu.memory_space<vmem>>, vector<1x8x28xf32>
    %131 = vector.shape_cast %130 : vector<1x8x28xf32> to vector<8x28xf32>
    %132 = arith.truncf %131 : vector<8x28xf32> to vector<8x28xbf16>
    %c22 = arith.constant 22 : index
    %c0_110 = arith.constant 0 : index
    %c0_111 = arith.constant 0 : index
    %133 = vector.load %arg9[%c22, %c0_110, %c0_111] : memref<29x8x28xbf16, #tpu.memory_space<vmem>>, vector<1x8x28xbf16>
    %134 = vector.shape_cast %133 : vector<1x8x28xbf16> to vector<8x28xbf16>
    %135 = vector.shape_cast %132 : vector<8x28xbf16> to vector<1x8x28xbf16>
    tpu.vector_store %arg9[%c22, %c0_110, %c0_111], %135 {strides = array<i32>} : memref<29x8x28xbf16, #tpu.memory_space<vmem>>, vector<1x8x28xbf16>,
    %c22_112 = arith.constant 22 : index
    %c0_113 = arith.constant 0 : index
    %c0_114 = arith.constant 0 : index
    %136 = vector.load %arg1[%c22_112, %c0_113, %c0_114] : memref<28x8x28xf32, #tpu.memory_space<vmem>>, vector<1x8x28xf32>
    %137 = vector.shape_cast %136 : vector<1x8x28xf32> to vector<8x28xf32>
    %138 = arith.truncf %137 : vector<8x28xf32> to vector<8x28xbf16>
    %c23 = arith.constant 23 : index
    %c0_115 = arith.constant 0 : index
    %c0_116 = arith.constant 0 : index
    %139 = vector.load %arg9[%c23, %c0_115, %c0_116] : memref<29x8x28xbf16, #tpu.memory_space<vmem>>, vector<1x8x28xbf16>
    %140 = vector.shape_cast %139 : vector<1x8x28xbf16> to vector<8x28xbf16>
    %141 = vector.shape_cast %138 : vector<8x28xbf16> to vector<1x8x28xbf16>
    tpu.vector_store %arg9[%c23, %c0_115, %c0_116], %141 {strides = array<i32>} : memref<29x8x28xbf16, #tpu.memory_space<vmem>>, vector<1x8x28xbf16>,
    %c23_117 = arith.constant 23 : index
    %c0_118 = arith.constant 0 : index
    %c0_119 = arith.constant 0 : index
    %142 = vector.load %arg1[%c23_117, %c0_118, %c0_119] : memref<28x8x28xf32, #tpu.memory_space<vmem>>, vector<1x8x28xf32>
    %143 = vector.shape_cast %142 : vector<1x8x28xf32> to vector<8x28xf32>
    %144 = arith.truncf %143 : vector<8x28xf32> to vector<8x28xbf16>
    %c24 = arith.constant 24 : index
    %c0_120 = arith.constant 0 : index
    %c0_121 = arith.constant 0 : index
    %145 = vector.load %arg9[%c24, %c0_120, %c0_121] : memref<29x8x28xbf16, #tpu.memory_space<vmem>>, vector<1x8x28xbf16>
    %146 = vector.shape_cast %145 : vector<1x8x28xbf16> to vector<8x28xbf16>
    %147 = vector.shape_cast %144 : vector<8x28xbf16> to vector<1x8x28xbf16>
    tpu.vector_store %arg9[%c24, %c0_120, %c0_121], %147 {strides = array<i32>} : memref<29x8x28xbf16, #tpu.memory_space<vmem>>, vector<1x8x28xbf16>,
    %c24_122 = arith.constant 24 : index
    %c0_123 = arith.constant 0 : index
    %c0_124 = arith.constant 0 : index
    %148 = vector.load %arg1[%c24_122, %c0_123, %c0_124] : memref<28x8x28xf32, #tpu.memory_space<vmem>>, vector<1x8x28xf32>
    %149 = vector.shape_cast %148 : vector<1x8x28xf32> to vector<8x28xf32>
    %150 = arith.truncf %149 : vector<8x28xf32> to vector<8x28xbf16>
    %c25 = arith.constant 25 : index
    %c0_125 = arith.constant 0 : index
    %c0_126 = arith.constant 0 : index
    %151 = vector.load %arg9[%c25, %c0_125, %c0_126] : memref<29x8x28xbf16, #tpu.memory_space<vmem>>, vector<1x8x28xbf16>
    %152 = vector.shape_cast %151 : vector<1x8x28xbf16> to vector<8x28xbf16>
    %153 = vector.shape_cast %150 : vector<8x28xbf16> to vector<1x8x28xbf16>
    tpu.vector_store %arg9[%c25, %c0_125, %c0_126], %153 {strides = array<i32>} : memref<29x8x28xbf16, #tpu.memory_space<vmem>>, vector<1x8x28xbf16>,
    %c25_127 = arith.constant 25 : index
    %c0_128 = arith.constant 0 : index
    %c0_129 = arith.constant 0 : index
    %154 = vector.load %arg1[%c25_127, %c0_128, %c0_129] : memref<28x8x28xf32, #tpu.memory_space<vmem>>, vector<1x8x28xf32>
    %155 = vector.shape_cast %154 : vector<1x8x28xf32> to vector<8x28xf32>
    %156 = arith.truncf %155 : vector<8x28xf32> to vector<8x28xbf16>
    %c26 = arith.constant 26 : index
    %c0_130 = arith.constant 0 : index
    %c0_131 = arith.constant 0 : index
    %157 = vector.load %arg9[%c26, %c0_130, %c0_131] : memref<29x8x28xbf16, #tpu.memory_space<vmem>>, vector<1x8x28xbf16>
    %158 = vector.shape_cast %157 : vector<1x8x28xbf16> to vector<8x28xbf16>
    %159 = vector.shape_cast %156 : vector<8x28xbf16> to vector<1x8x28xbf16>
    tpu.vector_store %arg9[%c26, %c0_130, %c0_131], %159 {strides = array<i32>} : memref<29x8x28xbf16, #tpu.memory_space<vmem>>, vector<1x8x28xbf16>,
    %c26_132 = arith.constant 26 : index
    %c0_133 = arith.constant 0 : index
    %c0_134 = arith.constant 0 : index
    %160 = vector.load %arg1[%c26_132, %c0_133, %c0_134] : memref<28x8x28xf32, #tpu.memory_space<vmem>>, vector<1x8x28xf32>
    %161 = vector.shape_cast %160 : vector<1x8x28xf32> to vector<8x28xf32>
    %162 = arith.truncf %161 : vector<8x28xf32> to vector<8x28xbf16>
    %c27 = arith.constant 27 : index
    %c0_135 = arith.constant 0 : index
    %c0_136 = arith.constant 0 : index
    %163 = vector.load %arg9[%c27, %c0_135, %c0_136] : memref<29x8x28xbf16, #tpu.memory_space<vmem>>, vector<1x8x28xbf16>
    %164 = vector.shape_cast %163 : vector<1x8x28xbf16> to vector<8x28xbf16>
    %165 = vector.shape_cast %162 : vector<8x28xbf16> to vector<1x8x28xbf16>
    tpu.vector_store %arg9[%c27, %c0_135, %c0_136], %165 {strides = array<i32>} : memref<29x8x28xbf16, #tpu.memory_space<vmem>>, vector<1x8x28xbf16>,
    %c27_137 = arith.constant 27 : index
    %c0_138 = arith.constant 0 : index
    %c0_139 = arith.constant 0 : index
    %166 = vector.load %arg1[%c27_137, %c0_138, %c0_139] : memref<28x8x28xf32, #tpu.memory_space<vmem>>, vector<1x8x28xf32>
    %167 = vector.shape_cast %166 : vector<1x8x28xf32> to vector<8x28xf32>
    %168 = arith.truncf %167 : vector<8x28xf32> to vector<8x28xbf16>
    %c28 = arith.constant 28 : index
    %c0_140 = arith.constant 0 : index
    %c0_141 = arith.constant 0 : index
    %169 = vector.load %arg9[%c28, %c0_140, %c0_141] : memref<29x8x28xbf16, #tpu.memory_space<vmem>>, vector<1x8x28xbf16>
    %170 = vector.shape_cast %169 : vector<1x8x28xbf16> to vector<8x28xbf16>
    %171 = vector.shape_cast %168 : vector<8x28xbf16> to vector<1x8x28xbf16>
    tpu.vector_store %arg9[%c28, %c0_140, %c0_141], %171 {strides = array<i32>} : memref<29x8x28xbf16, #tpu.memory_space<vmem>>, vector<1x8x28xbf16>,
    %c0_142 = arith.constant 0 : index
    %c0_143 = arith.constant 0 : index
    %c0_144 = arith.constant 0 : index
    %172 = vector.load %arg9[%c0_142, %c0_143, %c0_144] : memref<29x8x28xbf16, #tpu.memory_space<vmem>>, vector<1x8x28xbf16>
    %173 = vector.shape_cast %172 : vector<1x8x28xbf16> to vector<8x28xbf16>
    %c2_145 = arith.constant 2 : index
    %c0_146 = arith.constant 0 : index
    %c0_147 = arith.constant 0 : index
    %174 = vector.load %arg9[%c2_145, %c0_146, %c0_147] : memref<29x8x28xbf16, #tpu.memory_space<vmem>>, vector<1x8x28xbf16>
    %175 = vector.shape_cast %174 : vector<1x8x28xbf16> to vector<8x28xbf16>
    %c4_148 = arith.constant 4 : index
    %c0_149 = arith.constant 0 : index
    %c0_150 = arith.constant 0 : index
    %176 = vector.load %arg9[%c4_148, %c0_149, %c0_150] : memref<29x8x28xbf16, #tpu.memory_space<vmem>>, vector<1x8x28xbf16>
    %177 = vector.shape_cast %176 : vector<1x8x28xbf16> to vector<8x28xbf16>
    %c6_151 = arith.constant 6 : index
    %c0_152 = arith.constant 0 : index
    %c0_153 = arith.constant 0 : index
    %178 = vector.load %arg9[%c6_151, %c0_152, %c0_153] : memref<29x8x28xbf16, #tpu.memory_space<vmem>>, vector<1x8x28xbf16>
    %179 = vector.shape_cast %178 : vector<1x8x28xbf16> to vector<8x28xbf16>
    %c8_154 = arith.constant 8 : index
    %c0_155 = arith.constant 0 : index
    %c0_156 = arith.constant 0 : index
    %180 = vector.load %arg9[%c8_154, %c0_155, %c0_156] : memref<29x8x28xbf16, #tpu.memory_space<vmem>>, vector<1x8x28xbf16>
    %181 = vector.shape_cast %180 : vector<1x8x28xbf16> to vector<8x28xbf16>
    %c10_157 = arith.constant 10 : index
    %c0_158 = arith.constant 0 : index
    %c0_159 = arith.constant 0 : index
    %182 = vector.load %arg9[%c10_157, %c0_158, %c0_159] : memref<29x8x28xbf16, #tpu.memory_space<vmem>>, vector<1x8x28xbf16>
    %183 = vector.shape_cast %182 : vector<1x8x28xbf16> to vector<8x28xbf16>
    %c12_160 = arith.constant 12 : index
    %c0_161 = arith.constant 0 : index
    %c0_162 = arith.constant 0 : index
    %184 = vector.load %arg9[%c12_160, %c0_161, %c0_162] : memref<29x8x28xbf16, #tpu.memory_space<vmem>>, vector<1x8x28xbf16>
    %185 = vector.shape_cast %184 : vector<1x8x28xbf16> to vector<8x28xbf16>
    %c14_163 = arith.constant 14 : index
    %c0_164 = arith.constant 0 : index
    %c0_165 = arith.constant 0 : index
    %186 = vector.load %arg9[%c14_163, %c0_164, %c0_165] : memref<29x8x28xbf16, #tpu.memory_space<vmem>>, vector<1x8x28xbf16>
    %187 = vector.shape_cast %186 : vector<1x8x28xbf16> to vector<8x28xbf16>
    %c16_166 = arith.constant 16 : index
    %c0_167 = arith.constant 0 : index
    %c0_168 = arith.constant 0 : index
    %188 = vector.load %arg9[%c16_166, %c0_167, %c0_168] : memref<29x8x28xbf16, #tpu.memory_space<vmem>>, vector<1x8x28xbf16>
    %189 = vector.shape_cast %188 : vector<1x8x28xbf16> to vector<8x28xbf16>
    %c18_169 = arith.constant 18 : index
    %c0_170 = arith.constant 0 : index
    %c0_171 = arith.constant 0 : index
    %190 = vector.load %arg9[%c18_169, %c0_170, %c0_171] : memref<29x8x28xbf16, #tpu.memory_space<vmem>>, vector<1x8x28xbf16>
    %191 = vector.shape_cast %190 : vector<1x8x28xbf16> to vector<8x28xbf16>
    %c20_172 = arith.constant 20 : index
    %c0_173 = arith.constant 0 : index
    %c0_174 = arith.constant 0 : index
    %192 = vector.load %arg9[%c20_172, %c0_173, %c0_174] : memref<29x8x28xbf16, #tpu.memory_space<vmem>>, vector<1x8x28xbf16>
    %193 = vector.shape_cast %192 : vector<1x8x28xbf16> to vector<8x28xbf16>
    %c22_175 = arith.constant 22 : index
    %c0_176 = arith.constant 0 : index
    %c0_177 = arith.constant 0 : index
    %194 = vector.load %arg9[%c22_175, %c0_176, %c0_177] : memref<29x8x28xbf16, #tpu.memory_space<vmem>>, vector<1x8x28xbf16>
    %195 = vector.shape_cast %194 : vector<1x8x28xbf16> to vector<8x28xbf16>
    %c24_178 = arith.constant 24 : index
    %c0_179 = arith.constant 0 : index
    %c0_180 = arith.constant 0 : index
    %196 = vector.load %arg9[%c24_178, %c0_179, %c0_180] : memref<29x8x28xbf16, #tpu.memory_space<vmem>>, vector<1x8x28xbf16>
    %197 = vector.shape_cast %196 : vector<1x8x28xbf16> to vector<8x28xbf16>
    %c26_181 = arith.constant 26 : index
    %c0_182 = arith.constant 0 : index
    %c0_183 = arith.constant 0 : index
    %198 = vector.load %arg9[%c26_181, %c0_182, %c0_183] : memref<29x8x28xbf16, #tpu.memory_space<vmem>>, vector<1x8x28xbf16>
    %199 = vector.shape_cast %198 : vector<1x8x28xbf16> to vector<8x28xbf16>
    %200 = tpu.concatenate %173, %175, %177, %179, %181, %183, %185, %187, %189, %191, %193, %195, %197, %199 in 0 : vector<8x28xbf16>, vector<8x28xbf16>, vector<8x28xbf16>, vector<8x28xbf16>, vector<8x28xbf16>, vector<8x28xbf16>, vector<8x28xbf16>, vector<8x28xbf16>, vector<8x28xbf16>, vector<8x28xbf16>, vector<8x28xbf16>, vector<8x28xbf16>, vector<8x28xbf16>, vector<8x28xbf16> -> vector<112x28xbf16>
    %c0_184 = arith.constant 0 : index
    %c0_185 = arith.constant 0 : index
    %c0_186 = arith.constant 0 : index
    %201 = vector.load %arg2[%c0_184, %c0_185, %c0_186] : memref<3x28x224xbf16, #tpu.memory_space<vmem>>, vector<1x28x224xbf16>
    %202 = vector.shape_cast %201 : vector<1x28x224xbf16> to vector<28x224xbf16>
    %cst_187 = arith.constant dense<0.000000e+00> : vector<112x224xf32>
    %203 = tpu.matmul %200, %202, %cst_187 {dimension_numbers = #tpu.dot_dimension_numbers<[1], [0], [0], [1], [0, 0, 1, 1], [], []>} : vector<112x28xbf16>, vector<28x224xbf16>, vector<112x224xf32> -> vector<112x224xf32>
    %c1_188 = arith.constant 1 : index
    %c0_189 = arith.constant 0 : index
    %c0_190 = arith.constant 0 : index
    %204 = vector.load %arg9[%c1_188, %c0_189, %c0_190] : memref<29x8x28xbf16, #tpu.memory_space<vmem>>, vector<1x8x28xbf16>
    %205 = vector.shape_cast %204 : vector<1x8x28xbf16> to vector<8x28xbf16>
    %c3_191 = arith.constant 3 : index
    %c0_192 = arith.constant 0 : index
    %c0_193 = arith.constant 0 : index
    %206 = vector.load %arg9[%c3_191, %c0_192, %c0_193] : memref<29x8x28xbf16, #tpu.memory_space<vmem>>, vector<1x8x28xbf16>
    %207 = vector.shape_cast %206 : vector<1x8x28xbf16> to vector<8x28xbf16>
    %c5_194 = arith.constant 5 : index
    %c0_195 = arith.constant 0 : index
    %c0_196 = arith.constant 0 : index
    %208 = vector.load %arg9[%c5_194, %c0_195, %c0_196] : memref<29x8x28xbf16, #tpu.memory_space<vmem>>, vector<1x8x28xbf16>
    %209 = vector.shape_cast %208 : vector<1x8x28xbf16> to vector<8x28xbf16>
    %c7_197 = arith.constant 7 : index
    %c0_198 = arith.constant 0 : index
    %c0_199 = arith.constant 0 : index
    %210 = vector.load %arg9[%c7_197, %c0_198, %c0_199] : memref<29x8x28xbf16, #tpu.memory_space<vmem>>, vector<1x8x28xbf16>
    %211 = vector.shape_cast %210 : vector<1x8x28xbf16> to vector<8x28xbf16>
    %c9_200 = arith.constant 9 : index
    %c0_201 = arith.constant 0 : index
    %c0_202 = arith.constant 0 : index
    %212 = vector.load %arg9[%c9_200, %c0_201, %c0_202] : memref<29x8x28xbf16, #tpu.memory_space<vmem>>, vector<1x8x28xbf16>
    %213 = vector.shape_cast %212 : vector<1x8x28xbf16> to vector<8x28xbf16>
    %c11_203 = arith.constant 11 : index
    %c0_204 = arith.constant 0 : index
    %c0_205 = arith.constant 0 : index
    %214 = vector.load %arg9[%c11_203, %c0_204, %c0_205] : memref<29x8x28xbf16, #tpu.memory_space<vmem>>, vector<1x8x28xbf16>
    %215 = vector.shape_cast %214 : vector<1x8x28xbf16> to vector<8x28xbf16>
    %c13_206 = arith.constant 13 : index
    %c0_207 = arith.constant 0 : index
    %c0_208 = arith.constant 0 : index
    %216 = vector.load %arg9[%c13_206, %c0_207, %c0_208] : memref<29x8x28xbf16, #tpu.memory_space<vmem>>, vector<1x8x28xbf16>
    %217 = vector.shape_cast %216 : vector<1x8x28xbf16> to vector<8x28xbf16>
    %c15_209 = arith.constant 15 : index
    %c0_210 = arith.constant 0 : index
    %c0_211 = arith.constant 0 : index
    %218 = vector.load %arg9[%c15_209, %c0_210, %c0_211] : memref<29x8x28xbf16, #tpu.memory_space<vmem>>, vector<1x8x28xbf16>
    %219 = vector.shape_cast %218 : vector<1x8x28xbf16> to vector<8x28xbf16>
    %c17_212 = arith.constant 17 : index
    %c0_213 = arith.constant 0 : index
    %c0_214 = arith.constant 0 : index
    %220 = vector.load %arg9[%c17_212, %c0_213, %c0_214] : memref<29x8x28xbf16, #tpu.memory_space<vmem>>, vector<1x8x28xbf16>
    %221 = vector.shape_cast %220 : vector<1x8x28xbf16> to vector<8x28xbf16>
    %c19_215 = arith.constant 19 : index
    %c0_216 = arith.constant 0 : index
    %c0_217 = arith.constant 0 : index
    %222 = vector.load %arg9[%c19_215, %c0_216, %c0_217] : memref<29x8x28xbf16, #tpu.memory_space<vmem>>, vector<1x8x28xbf16>
    %223 = vector.shape_cast %222 : vector<1x8x28xbf16> to vector<8x28xbf16>
    %c21_218 = arith.constant 21 : index
    %c0_219 = arith.constant 0 : index
    %c0_220 = arith.constant 0 : index
    %224 = vector.load %arg9[%c21_218, %c0_219, %c0_220] : memref<29x8x28xbf16, #tpu.memory_space<vmem>>, vector<1x8x28xbf16>
    %225 = vector.shape_cast %224 : vector<1x8x28xbf16> to vector<8x28xbf16>
    %c23_221 = arith.constant 23 : index
    %c0_222 = arith.constant 0 : index
    %c0_223 = arith.constant 0 : index
    %226 = vector.load %arg9[%c23_221, %c0_222, %c0_223] : memref<29x8x28xbf16, #tpu.memory_space<vmem>>, vector<1x8x28xbf16>
    %227 = vector.shape_cast %226 : vector<1x8x28xbf16> to vector<8x28xbf16>
    %c25_224 = arith.constant 25 : index
    %c0_225 = arith.constant 0 : index
    %c0_226 = arith.constant 0 : index
    %228 = vector.load %arg9[%c25_224, %c0_225, %c0_226] : memref<29x8x28xbf16, #tpu.memory_space<vmem>>, vector<1x8x28xbf16>
    %229 = vector.shape_cast %228 : vector<1x8x28xbf16> to vector<8x28xbf16>
    %c27_227 = arith.constant 27 : index
    %c0_228 = arith.constant 0 : index
    %c0_229 = arith.constant 0 : index
    %230 = vector.load %arg9[%c27_227, %c0_228, %c0_229] : memref<29x8x28xbf16, #tpu.memory_space<vmem>>, vector<1x8x28xbf16>
    %231 = vector.shape_cast %230 : vector<1x8x28xbf16> to vector<8x28xbf16>
    %232 = tpu.concatenate %205, %207, %209, %211, %213, %215, %217, %219, %221, %223, %225, %227, %229, %231 in 0 : vector<8x28xbf16>, vector<8x28xbf16>, vector<8x28xbf16>, vector<8x28xbf16>, vector<8x28xbf16>, vector<8x28xbf16>, vector<8x28xbf16>, vector<8x28xbf16>, vector<8x28xbf16>, vector<8x28xbf16>, vector<8x28xbf16>, vector<8x28xbf16>, vector<8x28xbf16>, vector<8x28xbf16> -> vector<112x28xbf16>
    %c1_230 = arith.constant 1 : index
    %c0_231 = arith.constant 0 : index
    %c0_232 = arith.constant 0 : index
    %233 = vector.load %arg2[%c1_230, %c0_231, %c0_232] : memref<3x28x224xbf16, #tpu.memory_space<vmem>>, vector<1x28x224xbf16>
    %234 = vector.shape_cast %233 : vector<1x28x224xbf16> to vector<28x224xbf16>
    %cst_233 = arith.constant dense<0.000000e+00> : vector<112x224xf32>
    %235 = tpu.matmul %232, %234, %cst_233 {dimension_numbers = #tpu.dot_dimension_numbers<[1], [0], [0], [1], [0, 0, 1, 1], [], []>} : vector<112x28xbf16>, vector<28x224xbf16>, vector<112x224xf32> -> vector<112x224xf32>
    %236 = arith.addf %203, %235 : vector<112x224xf32>
    %c2_234 = arith.constant 2 : index
    %c0_235 = arith.constant 0 : index
    %c0_236 = arith.constant 0 : index
    %237 = vector.load %arg9[%c2_234, %c0_235, %c0_236] : memref<29x8x28xbf16, #tpu.memory_space<vmem>>, vector<1x8x28xbf16>
    %238 = vector.shape_cast %237 : vector<1x8x28xbf16> to vector<8x28xbf16>
    %c4_237 = arith.constant 4 : index
    %c0_238 = arith.constant 0 : index
    %c0_239 = arith.constant 0 : index
    %239 = vector.load %arg9[%c4_237, %c0_238, %c0_239] : memref<29x8x28xbf16, #tpu.memory_space<vmem>>, vector<1x8x28xbf16>
    %240 = vector.shape_cast %239 : vector<1x8x28xbf16> to vector<8x28xbf16>
    %c6_240 = arith.constant 6 : index
    %c0_241 = arith.constant 0 : index
    %c0_242 = arith.constant 0 : index
    %241 = vector.load %arg9[%c6_240, %c0_241, %c0_242] : memref<29x8x28xbf16, #tpu.memory_space<vmem>>, vector<1x8x28xbf16>
    %242 = vector.shape_cast %241 : vector<1x8x28xbf16> to vector<8x28xbf16>
    %c8_243 = arith.constant 8 : index
    %c0_244 = arith.constant 0 : index
    %c0_245 = arith.constant 0 : index
    %243 = vector.load %arg9[%c8_243, %c0_244, %c0_245] : memref<29x8x28xbf16, #tpu.memory_space<vmem>>, vector<1x8x28xbf16>
    %244 = vector.shape_cast %243 : vector<1x8x28xbf16> to vector<8x28xbf16>
    %c10_246 = arith.constant 10 : index
    %c0_247 = arith.constant 0 : index
    %c0_248 = arith.constant 0 : index
    %245 = vector.load %arg9[%c10_246, %c0_247, %c0_248] : memref<29x8x28xbf16, #tpu.memory_space<vmem>>, vector<1x8x28xbf16>
    %246 = vector.shape_cast %245 : vector<1x8x28xbf16> to vector<8x28xbf16>
    %c12_249 = arith.constant 12 : index
    %c0_250 = arith.constant 0 : index
    %c0_251 = arith.constant 0 : index
    %247 = vector.load %arg9[%c12_249, %c0_250, %c0_251] : memref<29x8x28xbf16, #tpu.memory_space<vmem>>, vector<1x8x28xbf16>
    %248 = vector.shape_cast %247 : vector<1x8x28xbf16> to vector<8x28xbf16>
    %c14_252 = arith.constant 14 : index
    %c0_253 = arith.constant 0 : index
    %c0_254 = arith.constant 0 : index
    %249 = vector.load %arg9[%c14_252, %c0_253, %c0_254] : memref<29x8x28xbf16, #tpu.memory_space<vmem>>, vector<1x8x28xbf16>
    %250 = vector.shape_cast %249 : vector<1x8x28xbf16> to vector<8x28xbf16>
    %c16_255 = arith.constant 16 : index
    %c0_256 = arith.constant 0 : index
    %c0_257 = arith.constant 0 : index
    %251 = vector.load %arg9[%c16_255, %c0_256, %c0_257] : memref<29x8x28xbf16, #tpu.memory_space<vmem>>, vector<1x8x28xbf16>
    %252 = vector.shape_cast %251 : vector<1x8x28xbf16> to vector<8x28xbf16>
    %c18_258 = arith.constant 18 : index
    %c0_259 = arith.constant 0 : index
    %c0_260 = arith.constant 0 : index
    %253 = vector.load %arg9[%c18_258, %c0_259, %c0_260] : memref<29x8x28xbf16, #tpu.memory_space<vmem>>, vector<1x8x28xbf16>
    %254 = vector.shape_cast %253 : vector<1x8x28xbf16> to vector<8x28xbf16>
    %c20_261 = arith.constant 20 : index
    %c0_262 = arith.constant 0 : index
    %c0_263 = arith.constant 0 : index
    %255 = vector.load %arg9[%c20_261, %c0_262, %c0_263] : memref<29x8x28xbf16, #tpu.memory_space<vmem>>, vector<1x8x28xbf16>
    %256 = vector.shape_cast %255 : vector<1x8x28xbf16> to vector<8x28xbf16>
    %c22_264 = arith.constant 22 : index
    %c0_265 = arith.constant 0 : index
    %c0_266 = arith.constant 0 : index
    %257 = vector.load %arg9[%c22_264, %c0_265, %c0_266] : memref<29x8x28xbf16, #tpu.memory_space<vmem>>, vector<1x8x28xbf16>
    %258 = vector.shape_cast %257 : vector<1x8x28xbf16> to vector<8x28xbf16>
    %c24_267 = arith.constant 24 : index
    %c0_268 = arith.constant 0 : index
    %c0_269 = arith.constant 0 : index
    %259 = vector.load %arg9[%c24_267, %c0_268, %c0_269] : memref<29x8x28xbf16, #tpu.memory_space<vmem>>, vector<1x8x28xbf16>
    %260 = vector.shape_cast %259 : vector<1x8x28xbf16> to vector<8x28xbf16>
    %c26_270 = arith.constant 26 : index
    %c0_271 = arith.constant 0 : index
    %c0_272 = arith.constant 0 : index
    %261 = vector.load %arg9[%c26_270, %c0_271, %c0_272] : memref<29x8x28xbf16, #tpu.memory_space<vmem>>, vector<1x8x28xbf16>
    %262 = vector.shape_cast %261 : vector<1x8x28xbf16> to vector<8x28xbf16>
    %c28_273 = arith.constant 28 : index
    %c0_274 = arith.constant 0 : index
    %c0_275 = arith.constant 0 : index
    %263 = vector.load %arg9[%c28_273, %c0_274, %c0_275] : memref<29x8x28xbf16, #tpu.memory_space<vmem>>, vector<1x8x28xbf16>
    %264 = vector.shape_cast %263 : vector<1x8x28xbf16> to vector<8x28xbf16>
    %265 = tpu.concatenate %238, %240, %242, %244, %246, %248, %250, %252, %254, %256, %258, %260, %262, %264 in 0 : vector<8x28xbf16>, vector<8x28xbf16>, vector<8x28xbf16>, vector<8x28xbf16>, vector<8x28xbf16>, vector<8x28xbf16>, vector<8x28xbf16>, vector<8x28xbf16>, vector<8x28xbf16>, vector<8x28xbf16>, vector<8x28xbf16>, vector<8x28xbf16>, vector<8x28xbf16>, vector<8x28xbf16> -> vector<112x28xbf16>
    %c2_276 = arith.constant 2 : index
    %c0_277 = arith.constant 0 : index
    %c0_278 = arith.constant 0 : index
    %266 = vector.load %arg2[%c2_276, %c0_277, %c0_278] : memref<3x28x224xbf16, #tpu.memory_space<vmem>>, vector<1x28x224xbf16>
    %267 = vector.shape_cast %266 : vector<1x28x224xbf16> to vector<28x224xbf16>
    %cst_279 = arith.constant dense<0.000000e+00> : vector<112x224xf32>
    %268 = tpu.matmul %265, %267, %cst_279 {dimension_numbers = #tpu.dot_dimension_numbers<[1], [0], [0], [1], [0, 0, 1, 1], [], []>} : vector<112x28xbf16>, vector<28x224xbf16>, vector<112x224xf32> -> vector<112x224xf32>
    %269 = arith.addf %236, %268 : vector<112x224xf32>
    %c0_280 = arith.constant 0 : index
    %c0_281 = arith.constant 0 : index
    %270 = vector.load %arg3[%c0_280, %c0_281] : memref<1x224xf32, #tpu.memory_space<vmem>>, vector<1x224xf32>
    %271 = vector.broadcast %270 : vector<1x224xf32> to vector<112x224xf32>
    %272 = arith.addf %269, %271 : vector<112x224xf32>
    %cst_282 = arith.constant 0.000000e+00 : f32
    %273 = vector.broadcast %cst_282 : f32 to vector<112x224xf32>
    %274 = arith.maximumf %272, %273 : vector<112x224xf32>
    %cst_283 = arith.constant 0.000000e+00 : bf16
    %275 = vector.broadcast %cst_283 : bf16 to vector<8x224xbf16>
    %c0_284 = arith.constant 0 : index
    %c0_285 = arith.constant 0 : index
    %c0_286 = arith.constant 0 : index
    %276 = vector.load %arg10[%c0_284, %c0_285, %c0_286] : memref<15x8x224xbf16, #tpu.memory_space<vmem>>, vector<1x8x224xbf16>
    %277 = vector.shape_cast %276 : vector<1x8x224xbf16> to vector<8x224xbf16>
    %278 = vector.shape_cast %275 : vector<8x224xbf16> to vector<1x8x224xbf16>
    tpu.vector_store %arg10[%c0_284, %c0_285, %c0_286], %278 {strides = array<i32>} : memref<15x8x224xbf16, #tpu.memory_space<vmem>>, vector<1x8x224xbf16>,
    %279 = vector.extract_strided_slice %274 {offsets = [0, 0], sizes = [8, 224], strides = [1, 1]} : vector<112x224xf32> to vector<8x224xf32>
    %280 = arith.truncf %279 : vector<8x224xf32> to vector<8x224xbf16>
    %c1_287 = arith.constant 1 : index
    %c0_288 = arith.constant 0 : index
    %c0_289 = arith.constant 0 : index
    %281 = vector.load %arg10[%c1_287, %c0_288, %c0_289] : memref<15x8x224xbf16, #tpu.memory_space<vmem>>, vector<1x8x224xbf16>
    %282 = vector.shape_cast %281 : vector<1x8x224xbf16> to vector<8x224xbf16>
    %283 = vector.shape_cast %280 : vector<8x224xbf16> to vector<1x8x224xbf16>
    tpu.vector_store %arg10[%c1_287, %c0_288, %c0_289], %283 {strides = array<i32>} : memref<15x8x224xbf16, #tpu.memory_space<vmem>>, vector<1x8x224xbf16>,
    %284 = vector.extract_strided_slice %274 {offsets = [8, 0], sizes = [8, 224], strides = [1, 1]} : vector<112x224xf32> to vector<8x224xf32>
    %285 = arith.truncf %284 : vector<8x224xf32> to vector<8x224xbf16>
    %c2_290 = arith.constant 2 : index
    %c0_291 = arith.constant 0 : index
    %c0_292 = arith.constant 0 : index
    %286 = vector.load %arg10[%c2_290, %c0_291, %c0_292] : memref<15x8x224xbf16, #tpu.memory_space<vmem>>, vector<1x8x224xbf16>
    %287 = vector.shape_cast %286 : vector<1x8x224xbf16> to vector<8x224xbf16>
    %288 = vector.shape_cast %285 : vector<8x224xbf16> to vector<1x8x224xbf16>
    tpu.vector_store %arg10[%c2_290, %c0_291, %c0_292], %288 {strides = array<i32>} : memref<15x8x224xbf16, #tpu.memory_space<vmem>>, vector<1x8x224xbf16>,
    %289 = vector.extract_strided_slice %274 {offsets = [16, 0], sizes = [8, 224], strides = [1, 1]} : vector<112x224xf32> to vector<8x224xf32>
    %290 = arith.truncf %289 : vector<8x224xf32> to vector<8x224xbf16>
    %c3_293 = arith.constant 3 : index
    %c0_294 = arith.constant 0 : index
    %c0_295 = arith.constant 0 : index
    %291 = vector.load %arg10[%c3_293, %c0_294, %c0_295] : memref<15x8x224xbf16, #tpu.memory_space<vmem>>, vector<1x8x224xbf16>
    %292 = vector.shape_cast %291 : vector<1x8x224xbf16> to vector<8x224xbf16>
    %293 = vector.shape_cast %290 : vector<8x224xbf16> to vector<1x8x224xbf16>
    tpu.vector_store %arg10[%c3_293, %c0_294, %c0_295], %293 {strides = array<i32>} : memref<15x8x224xbf16, #tpu.memory_space<vmem>>, vector<1x8x224xbf16>,
    %294 = vector.extract_strided_slice %274 {offsets = [24, 0], sizes = [8, 224], strides = [1, 1]} : vector<112x224xf32> to vector<8x224xf32>
    %295 = arith.truncf %294 : vector<8x224xf32> to vector<8x224xbf16>
    %c4_296 = arith.constant 4 : index
    %c0_297 = arith.constant 0 : index
    %c0_298 = arith.constant 0 : index
    %296 = vector.load %arg10[%c4_296, %c0_297, %c0_298] : memref<15x8x224xbf16, #tpu.memory_space<vmem>>, vector<1x8x224xbf16>
    %297 = vector.shape_cast %296 : vector<1x8x224xbf16> to vector<8x224xbf16>
    %298 = vector.shape_cast %295 : vector<8x224xbf16> to vector<1x8x224xbf16>
    tpu.vector_store %arg10[%c4_296, %c0_297, %c0_298], %298 {strides = array<i32>} : memref<15x8x224xbf16, #tpu.memory_space<vmem>>, vector<1x8x224xbf16>,
    %299 = vector.extract_strided_slice %274 {offsets = [32, 0], sizes = [8, 224], strides = [1, 1]} : vector<112x224xf32> to vector<8x224xf32>
    %300 = arith.truncf %299 : vector<8x224xf32> to vector<8x224xbf16>
    %c5_299 = arith.constant 5 : index
    %c0_300 = arith.constant 0 : index
    %c0_301 = arith.constant 0 : index
    %301 = vector.load %arg10[%c5_299, %c0_300, %c0_301] : memref<15x8x224xbf16, #tpu.memory_space<vmem>>, vector<1x8x224xbf16>
    %302 = vector.shape_cast %301 : vector<1x8x224xbf16> to vector<8x224xbf16>
    %303 = vector.shape_cast %300 : vector<8x224xbf16> to vector<1x8x224xbf16>
    tpu.vector_store %arg10[%c5_299, %c0_300, %c0_301], %303 {strides = array<i32>} : memref<15x8x224xbf16, #tpu.memory_space<vmem>>, vector<1x8x224xbf16>,
    %304 = vector.extract_strided_slice %274 {offsets = [40, 0], sizes = [8, 224], strides = [1, 1]} : vector<112x224xf32> to vector<8x224xf32>
    %305 = arith.truncf %304 : vector<8x224xf32> to vector<8x224xbf16>
    %c6_302 = arith.constant 6 : index
    %c0_303 = arith.constant 0 : index
    %c0_304 = arith.constant 0 : index
    %306 = vector.load %arg10[%c6_302, %c0_303, %c0_304] : memref<15x8x224xbf16, #tpu.memory_space<vmem>>, vector<1x8x224xbf16>
    %307 = vector.shape_cast %306 : vector<1x8x224xbf16> to vector<8x224xbf16>
    %308 = vector.shape_cast %305 : vector<8x224xbf16> to vector<1x8x224xbf16>
    tpu.vector_store %arg10[%c6_302, %c0_303, %c0_304], %308 {strides = array<i32>} : memref<15x8x224xbf16, #tpu.memory_space<vmem>>, vector<1x8x224xbf16>,
    %309 = vector.extract_strided_slice %274 {offsets = [48, 0], sizes = [8, 224], strides = [1, 1]} : vector<112x224xf32> to vector<8x224xf32>
    %310 = arith.truncf %309 : vector<8x224xf32> to vector<8x224xbf16>
    %c7_305 = arith.constant 7 : index
    %c0_306 = arith.constant 0 : index
    %c0_307 = arith.constant 0 : index
    %311 = vector.load %arg10[%c7_305, %c0_306, %c0_307] : memref<15x8x224xbf16, #tpu.memory_space<vmem>>, vector<1x8x224xbf16>
    %312 = vector.shape_cast %311 : vector<1x8x224xbf16> to vector<8x224xbf16>
    %313 = vector.shape_cast %310 : vector<8x224xbf16> to vector<1x8x224xbf16>
    tpu.vector_store %arg10[%c7_305, %c0_306, %c0_307], %313 {strides = array<i32>} : memref<15x8x224xbf16, #tpu.memory_space<vmem>>, vector<1x8x224xbf16>,
    %314 = vector.extract_strided_slice %274 {offsets = [56, 0], sizes = [8, 224], strides = [1, 1]} : vector<112x224xf32> to vector<8x224xf32>
    %315 = arith.truncf %314 : vector<8x224xf32> to vector<8x224xbf16>
    %c8_308 = arith.constant 8 : index
    %c0_309 = arith.constant 0 : index
    %c0_310 = arith.constant 0 : index
    %316 = vector.load %arg10[%c8_308, %c0_309, %c0_310] : memref<15x8x224xbf16, #tpu.memory_space<vmem>>, vector<1x8x224xbf16>
    %317 = vector.shape_cast %316 : vector<1x8x224xbf16> to vector<8x224xbf16>
    %318 = vector.shape_cast %315 : vector<8x224xbf16> to vector<1x8x224xbf16>
    tpu.vector_store %arg10[%c8_308, %c0_309, %c0_310], %318 {strides = array<i32>} : memref<15x8x224xbf16, #tpu.memory_space<vmem>>, vector<1x8x224xbf16>,
    %319 = vector.extract_strided_slice %274 {offsets = [64, 0], sizes = [8, 224], strides = [1, 1]} : vector<112x224xf32> to vector<8x224xf32>
    %320 = arith.truncf %319 : vector<8x224xf32> to vector<8x224xbf16>
    %c9_311 = arith.constant 9 : index
    %c0_312 = arith.constant 0 : index
    %c0_313 = arith.constant 0 : index
    %321 = vector.load %arg10[%c9_311, %c0_312, %c0_313] : memref<15x8x224xbf16, #tpu.memory_space<vmem>>, vector<1x8x224xbf16>
    %322 = vector.shape_cast %321 : vector<1x8x224xbf16> to vector<8x224xbf16>
    %323 = vector.shape_cast %320 : vector<8x224xbf16> to vector<1x8x224xbf16>
    tpu.vector_store %arg10[%c9_311, %c0_312, %c0_313], %323 {strides = array<i32>} : memref<15x8x224xbf16, #tpu.memory_space<vmem>>, vector<1x8x224xbf16>,
    %324 = vector.extract_strided_slice %274 {offsets = [72, 0], sizes = [8, 224], strides = [1, 1]} : vector<112x224xf32> to vector<8x224xf32>
    %325 = arith.truncf %324 : vector<8x224xf32> to vector<8x224xbf16>
    %c10_314 = arith.constant 10 : index
    %c0_315 = arith.constant 0 : index
    %c0_316 = arith.constant 0 : index
    %326 = vector.load %arg10[%c10_314, %c0_315, %c0_316] : memref<15x8x224xbf16, #tpu.memory_space<vmem>>, vector<1x8x224xbf16>
    %327 = vector.shape_cast %326 : vector<1x8x224xbf16> to vector<8x224xbf16>
    %328 = vector.shape_cast %325 : vector<8x224xbf16> to vector<1x8x224xbf16>
    tpu.vector_store %arg10[%c10_314, %c0_315, %c0_316], %328 {strides = array<i32>} : memref<15x8x224xbf16, #tpu.memory_space<vmem>>, vector<1x8x224xbf16>,
    %329 = vector.extract_strided_slice %274 {offsets = [80, 0], sizes = [8, 224], strides = [1, 1]} : vector<112x224xf32> to vector<8x224xf32>
    %330 = arith.truncf %329 : vector<8x224xf32> to vector<8x224xbf16>
    %c11_317 = arith.constant 11 : index
    %c0_318 = arith.constant 0 : index
    %c0_319 = arith.constant 0 : index
    %331 = vector.load %arg10[%c11_317, %c0_318, %c0_319] : memref<15x8x224xbf16, #tpu.memory_space<vmem>>, vector<1x8x224xbf16>
    %332 = vector.shape_cast %331 : vector<1x8x224xbf16> to vector<8x224xbf16>
    %333 = vector.shape_cast %330 : vector<8x224xbf16> to vector<1x8x224xbf16>
    tpu.vector_store %arg10[%c11_317, %c0_318, %c0_319], %333 {strides = array<i32>} : memref<15x8x224xbf16, #tpu.memory_space<vmem>>, vector<1x8x224xbf16>,
    %334 = vector.extract_strided_slice %274 {offsets = [88, 0], sizes = [8, 224], strides = [1, 1]} : vector<112x224xf32> to vector<8x224xf32>
    %335 = arith.truncf %334 : vector<8x224xf32> to vector<8x224xbf16>
    %c12_320 = arith.constant 12 : index
    %c0_321 = arith.constant 0 : index
    %c0_322 = arith.constant 0 : index
    %336 = vector.load %arg10[%c12_320, %c0_321, %c0_322] : memref<15x8x224xbf16, #tpu.memory_space<vmem>>, vector<1x8x224xbf16>
    %337 = vector.shape_cast %336 : vector<1x8x224xbf16> to vector<8x224xbf16>
    %338 = vector.shape_cast %335 : vector<8x224xbf16> to vector<1x8x224xbf16>
    tpu.vector_store %arg10[%c12_320, %c0_321, %c0_322], %338 {strides = array<i32>} : memref<15x8x224xbf16, #tpu.memory_space<vmem>>, vector<1x8x224xbf16>,
    %339 = vector.extract_strided_slice %274 {offsets = [96, 0], sizes = [8, 224], strides = [1, 1]} : vector<112x224xf32> to vector<8x224xf32>
    %340 = arith.truncf %339 : vector<8x224xf32> to vector<8x224xbf16>
    %c13_323 = arith.constant 13 : index
    %c0_324 = arith.constant 0 : index
    %c0_325 = arith.constant 0 : index
    %341 = vector.load %arg10[%c13_323, %c0_324, %c0_325] : memref<15x8x224xbf16, #tpu.memory_space<vmem>>, vector<1x8x224xbf16>
    %342 = vector.shape_cast %341 : vector<1x8x224xbf16> to vector<8x224xbf16>
    %343 = vector.shape_cast %340 : vector<8x224xbf16> to vector<1x8x224xbf16>
    tpu.vector_store %arg10[%c13_323, %c0_324, %c0_325], %343 {strides = array<i32>} : memref<15x8x224xbf16, #tpu.memory_space<vmem>>, vector<1x8x224xbf16>,
    %344 = vector.extract_strided_slice %274 {offsets = [104, 0], sizes = [8, 224], strides = [1, 1]} : vector<112x224xf32> to vector<8x224xf32>
    %345 = arith.truncf %344 : vector<8x224xf32> to vector<8x224xbf16>
    %c14_326 = arith.constant 14 : index
    %c0_327 = arith.constant 0 : index
    %c0_328 = arith.constant 0 : index
    %346 = vector.load %arg10[%c14_326, %c0_327, %c0_328] : memref<15x8x224xbf16, #tpu.memory_space<vmem>>, vector<1x8x224xbf16>
    %347 = vector.shape_cast %346 : vector<1x8x224xbf16> to vector<8x224xbf16>
    %348 = vector.shape_cast %345 : vector<8x224xbf16> to vector<1x8x224xbf16>
    tpu.vector_store %arg10[%c14_326, %c0_327, %c0_328], %348 {strides = array<i32>} : memref<15x8x224xbf16, #tpu.memory_space<vmem>>, vector<1x8x224xbf16>,
    %c0_329 = arith.constant 0 : index
    %c0_330 = arith.constant 0 : index
    %c0_331 = arith.constant 0 : index
    %349 = vector.load %arg10[%c0_329, %c0_330, %c0_331] : memref<15x8x224xbf16, #tpu.memory_space<vmem>>, vector<1x8x224xbf16>
    %350 = vector.shape_cast %349 : vector<1x8x224xbf16> to vector<8x224xbf16>
    %c2_332 = arith.constant 2 : index
    %c0_333 = arith.constant 0 : index
    %c0_334 = arith.constant 0 : index
    %351 = vector.load %arg10[%c2_332, %c0_333, %c0_334] : memref<15x8x224xbf16, #tpu.memory_space<vmem>>, vector<1x8x224xbf16>
    %352 = vector.shape_cast %351 : vector<1x8x224xbf16> to vector<8x224xbf16>
    %c4_335 = arith.constant 4 : index
    %c0_336 = arith.constant 0 : index
    %c0_337 = arith.constant 0 : index
    %353 = vector.load %arg10[%c4_335, %c0_336, %c0_337] : memref<15x8x224xbf16, #tpu.memory_space<vmem>>, vector<1x8x224xbf16>
    %354 = vector.shape_cast %353 : vector<1x8x224xbf16> to vector<8x224xbf16>
    %c6_338 = arith.constant 6 : index
    %c0_339 = arith.constant 0 : index
    %c0_340 = arith.constant 0 : index
    %355 = vector.load %arg10[%c6_338, %c0_339, %c0_340] : memref<15x8x224xbf16, #tpu.memory_space<vmem>>, vector<1x8x224xbf16>
    %356 = vector.shape_cast %355 : vector<1x8x224xbf16> to vector<8x224xbf16>
    %c8_341 = arith.constant 8 : index
    %c0_342 = arith.constant 0 : index
    %c0_343 = arith.constant 0 : index
    %357 = vector.load %arg10[%c8_341, %c0_342, %c0_343] : memref<15x8x224xbf16, #tpu.memory_space<vmem>>, vector<1x8x224xbf16>
    %358 = vector.shape_cast %357 : vector<1x8x224xbf16> to vector<8x224xbf16>
    %c10_344 = arith.constant 10 : index
    %c0_345 = arith.constant 0 : index
    %c0_346 = arith.constant 0 : index
    %359 = vector.load %arg10[%c10_344, %c0_345, %c0_346] : memref<15x8x224xbf16, #tpu.memory_space<vmem>>, vector<1x8x224xbf16>
    %360 = vector.shape_cast %359 : vector<1x8x224xbf16> to vector<8x224xbf16>
    %c12_347 = arith.constant 12 : index
    %c0_348 = arith.constant 0 : index
    %c0_349 = arith.constant 0 : index
    %361 = vector.load %arg10[%c12_347, %c0_348, %c0_349] : memref<15x8x224xbf16, #tpu.memory_space<vmem>>, vector<1x8x224xbf16>
    %362 = vector.shape_cast %361 : vector<1x8x224xbf16> to vector<8x224xbf16>
    %363 = tpu.concatenate %350, %352, %354, %356, %358, %360, %362 in 0 : vector<8x224xbf16>, vector<8x224xbf16>, vector<8x224xbf16>, vector<8x224xbf16>, vector<8x224xbf16>, vector<8x224xbf16>, vector<8x224xbf16> -> vector<56x224xbf16>
    %c0_350 = arith.constant 0 : index
    %c0_351 = arith.constant 0 : index
    %c0_352 = arith.constant 0 : index
    %364 = vector.load %arg4[%c0_350, %c0_351, %c0_352] : memref<3x224x112xbf16, #tpu.memory_space<vmem>>, vector<1x224x112xbf16>
    %365 = vector.shape_cast %364 : vector<1x224x112xbf16> to vector<224x112xbf16>
    %cst_353 = arith.constant dense<0.000000e+00> : vector<56x112xf32>
    %366 = tpu.matmul %363, %365, %cst_353 {dimension_numbers = #tpu.dot_dimension_numbers<[1], [0], [0], [1], [0, 0, 1, 1], [], []>} : vector<56x224xbf16>, vector<224x112xbf16>, vector<56x112xf32> -> vector<56x112xf32>
    %c1_354 = arith.constant 1 : index
    %c0_355 = arith.constant 0 : index
    %c0_356 = arith.constant 0 : index
    %367 = vector.load %arg10[%c1_354, %c0_355, %c0_356] : memref<15x8x224xbf16, #tpu.memory_space<vmem>>, vector<1x8x224xbf16>
    %368 = vector.shape_cast %367 : vector<1x8x224xbf16> to vector<8x224xbf16>
    %c3_357 = arith.constant 3 : index
    %c0_358 = arith.constant 0 : index
    %c0_359 = arith.constant 0 : index
    %369 = vector.load %arg10[%c3_357, %c0_358, %c0_359] : memref<15x8x224xbf16, #tpu.memory_space<vmem>>, vector<1x8x224xbf16>
    %370 = vector.shape_cast %369 : vector<1x8x224xbf16> to vector<8x224xbf16>
    %c5_360 = arith.constant 5 : index
    %c0_361 = arith.constant 0 : index
    %c0_362 = arith.constant 0 : index
    %371 = vector.load %arg10[%c5_360, %c0_361, %c0_362] : memref<15x8x224xbf16, #tpu.memory_space<vmem>>, vector<1x8x224xbf16>
    %372 = vector.shape_cast %371 : vector<1x8x224xbf16> to vector<8x224xbf16>
    %c7_363 = arith.constant 7 : index
    %c0_364 = arith.constant 0 : index
    %c0_365 = arith.constant 0 : index
    %373 = vector.load %arg10[%c7_363, %c0_364, %c0_365] : memref<15x8x224xbf16, #tpu.memory_space<vmem>>, vector<1x8x224xbf16>
    %374 = vector.shape_cast %373 : vector<1x8x224xbf16> to vector<8x224xbf16>
    %c9_366 = arith.constant 9 : index
    %c0_367 = arith.constant 0 : index
    %c0_368 = arith.constant 0 : index
    %375 = vector.load %arg10[%c9_366, %c0_367, %c0_368] : memref<15x8x224xbf16, #tpu.memory_space<vmem>>, vector<1x8x224xbf16>
    %376 = vector.shape_cast %375 : vector<1x8x224xbf16> to vector<8x224xbf16>
    %c11_369 = arith.constant 11 : index
    %c0_370 = arith.constant 0 : index
    %c0_371 = arith.constant 0 : index
    %377 = vector.load %arg10[%c11_369, %c0_370, %c0_371] : memref<15x8x224xbf16, #tpu.memory_space<vmem>>, vector<1x8x224xbf16>
    %378 = vector.shape_cast %377 : vector<1x8x224xbf16> to vector<8x224xbf16>
    %c13_372 = arith.constant 13 : index
    %c0_373 = arith.constant 0 : index
    %c0_374 = arith.constant 0 : index
    %379 = vector.load %arg10[%c13_372, %c0_373, %c0_374] : memref<15x8x224xbf16, #tpu.memory_space<vmem>>, vector<1x8x224xbf16>
    %380 = vector.shape_cast %379 : vector<1x8x224xbf16> to vector<8x224xbf16>
    %381 = tpu.concatenate %368, %370, %372, %374, %376, %378, %380 in 0 : vector<8x224xbf16>, vector<8x224xbf16>, vector<8x224xbf16>, vector<8x224xbf16>, vector<8x224xbf16>, vector<8x224xbf16>, vector<8x224xbf16> -> vector<56x224xbf16>
    %c1_375 = arith.constant 1 : index
    %c0_376 = arith.constant 0 : index
    %c0_377 = arith.constant 0 : index
    %382 = vector.load %arg4[%c1_375, %c0_376, %c0_377] : memref<3x224x112xbf16, #tpu.memory_space<vmem>>, vector<1x224x112xbf16>
    %383 = vector.shape_cast %382 : vector<1x224x112xbf16> to vector<224x112xbf16>
    %cst_378 = arith.constant dense<0.000000e+00> : vector<56x112xf32>
    %384 = tpu.matmul %381, %383, %cst_378 {dimension_numbers = #tpu.dot_dimension_numbers<[1], [0], [0], [1], [0, 0, 1, 1], [], []>} : vector<56x224xbf16>, vector<224x112xbf16>, vector<56x112xf32> -> vector<56x112xf32>
    %385 = arith.addf %366, %384 : vector<56x112xf32>
    %c2_379 = arith.constant 2 : index
    %c0_380 = arith.constant 0 : index
    %c0_381 = arith.constant 0 : index
    %386 = vector.load %arg10[%c2_379, %c0_380, %c0_381] : memref<15x8x224xbf16, #tpu.memory_space<vmem>>, vector<1x8x224xbf16>
    %387 = vector.shape_cast %386 : vector<1x8x224xbf16> to vector<8x224xbf16>
    %c4_382 = arith.constant 4 : index
    %c0_383 = arith.constant 0 : index
    %c0_384 = arith.constant 0 : index
    %388 = vector.load %arg10[%c4_382, %c0_383, %c0_384] : memref<15x8x224xbf16, #tpu.memory_space<vmem>>, vector<1x8x224xbf16>
    %389 = vector.shape_cast %388 : vector<1x8x224xbf16> to vector<8x224xbf16>
    %c6_385 = arith.constant 6 : index
    %c0_386 = arith.constant 0 : index
    %c0_387 = arith.constant 0 : index
    %390 = vector.load %arg10[%c6_385, %c0_386, %c0_387] : memref<15x8x224xbf16, #tpu.memory_space<vmem>>, vector<1x8x224xbf16>
    %391 = vector.shape_cast %390 : vector<1x8x224xbf16> to vector<8x224xbf16>
    %c8_388 = arith.constant 8 : index
    %c0_389 = arith.constant 0 : index
    %c0_390 = arith.constant 0 : index
    %392 = vector.load %arg10[%c8_388, %c0_389, %c0_390] : memref<15x8x224xbf16, #tpu.memory_space<vmem>>, vector<1x8x224xbf16>
    %393 = vector.shape_cast %392 : vector<1x8x224xbf16> to vector<8x224xbf16>
    %c10_391 = arith.constant 10 : index
    %c0_392 = arith.constant 0 : index
    %c0_393 = arith.constant 0 : index
    %394 = vector.load %arg10[%c10_391, %c0_392, %c0_393] : memref<15x8x224xbf16, #tpu.memory_space<vmem>>, vector<1x8x224xbf16>
    %395 = vector.shape_cast %394 : vector<1x8x224xbf16> to vector<8x224xbf16>
    %c12_394 = arith.constant 12 : index
    %c0_395 = arith.constant 0 : index
    %c0_396 = arith.constant 0 : index
    %396 = vector.load %arg10[%c12_394, %c0_395, %c0_396] : memref<15x8x224xbf16, #tpu.memory_space<vmem>>, vector<1x8x224xbf16>
    %397 = vector.shape_cast %396 : vector<1x8x224xbf16> to vector<8x224xbf16>
    %c14_397 = arith.constant 14 : index
    %c0_398 = arith.constant 0 : index
    %c0_399 = arith.constant 0 : index
    %398 = vector.load %arg10[%c14_397, %c0_398, %c0_399] : memref<15x8x224xbf16, #tpu.memory_space<vmem>>, vector<1x8x224xbf16>
    %399 = vector.shape_cast %398 : vector<1x8x224xbf16> to vector<8x224xbf16>
    %400 = tpu.concatenate %387, %389, %391, %393, %395, %397, %399 in 0 : vector<8x224xbf16>, vector<8x224xbf16>, vector<8x224xbf16>, vector<8x224xbf16>, vector<8x224xbf16>, vector<8x224xbf16>, vector<8x224xbf16> -> vector<56x224xbf16>
    %c2_400 = arith.constant 2 : index
    %c0_401 = arith.constant 0 : index
    %c0_402 = arith.constant 0 : index
    %401 = vector.load %arg4[%c2_400, %c0_401, %c0_402] : memref<3x224x112xbf16, #tpu.memory_space<vmem>>, vector<1x224x112xbf16>
    %402 = vector.shape_cast %401 : vector<1x224x112xbf16> to vector<224x112xbf16>
    %cst_403 = arith.constant dense<0.000000e+00> : vector<56x112xf32>
    %403 = tpu.matmul %400, %402, %cst_403 {dimension_numbers = #tpu.dot_dimension_numbers<[1], [0], [0], [1], [0, 0, 1, 1], [], []>} : vector<56x224xbf16>, vector<224x112xbf16>, vector<56x112xf32> -> vector<56x112xf32>
    %404 = arith.addf %385, %403 : vector<56x112xf32>
    %c0_404 = arith.constant 0 : index
    %c0_405 = arith.constant 0 : index
    %405 = vector.load %arg5[%c0_404, %c0_405] : memref<1x112xf32, #tpu.memory_space<vmem>>, vector<1x112xf32>
    %406 = vector.broadcast %405 : vector<1x112xf32> to vector<56x112xf32>
    %407 = arith.addf %404, %406 : vector<56x112xf32>
    %cst_406 = arith.constant 0.000000e+00 : f32
    %408 = vector.broadcast %cst_406 : f32 to vector<56x112xf32>
    %409 = arith.maximumf %407, %408 : vector<56x112xf32>
    %cst_407 = arith.constant 0.000000e+00 : bf16
    %410 = vector.broadcast %cst_407 : bf16 to vector<8x112xbf16>
    %c0_408 = arith.constant 0 : index
    %c0_409 = arith.constant 0 : index
    %c0_410 = arith.constant 0 : index
    %411 = vector.load %arg11[%c0_408, %c0_409, %c0_410] : memref<9x8x112xbf16, #tpu.memory_space<vmem>>, vector<1x8x112xbf16>
    %412 = vector.shape_cast %411 : vector<1x8x112xbf16> to vector<8x112xbf16>
    %413 = vector.shape_cast %410 : vector<8x112xbf16> to vector<1x8x112xbf16>
    tpu.vector_store %arg11[%c0_408, %c0_409, %c0_410], %413 {strides = array<i32>} : memref<9x8x112xbf16, #tpu.memory_space<vmem>>, vector<1x8x112xbf16>,
    %cst_411 = arith.constant 0.000000e+00 : bf16
    %414 = vector.broadcast %cst_411 : bf16 to vector<8x112xbf16>
    %c8_412 = arith.constant 8 : index
    %c0_413 = arith.constant 0 : index
    %c0_414 = arith.constant 0 : index
    %415 = vector.load %arg11[%c8_412, %c0_413, %c0_414] : memref<9x8x112xbf16, #tpu.memory_space<vmem>>, vector<1x8x112xbf16>
    %416 = vector.shape_cast %415 : vector<1x8x112xbf16> to vector<8x112xbf16>
    %417 = vector.shape_cast %414 : vector<8x112xbf16> to vector<1x8x112xbf16>
    tpu.vector_store %arg11[%c8_412, %c0_413, %c0_414], %417 {strides = array<i32>} : memref<9x8x112xbf16, #tpu.memory_space<vmem>>, vector<1x8x112xbf16>,
    %418 = vector.extract_strided_slice %409 {offsets = [0, 0], sizes = [8, 112], strides = [1, 1]} : vector<56x112xf32> to vector<8x112xf32>
    %419 = arith.truncf %418 : vector<8x112xf32> to vector<8x112xbf16>
    %c1_415 = arith.constant 1 : index
    %c0_416 = arith.constant 0 : index
    %c0_417 = arith.constant 0 : index
    %420 = vector.load %arg11[%c1_415, %c0_416, %c0_417] : memref<9x8x112xbf16, #tpu.memory_space<vmem>>, vector<1x8x112xbf16>
    %421 = vector.shape_cast %420 : vector<1x8x112xbf16> to vector<8x112xbf16>
    %422 = vector.shape_cast %419 : vector<8x112xbf16> to vector<1x8x112xbf16>
    tpu.vector_store %arg11[%c1_415, %c0_416, %c0_417], %422 {strides = array<i32>} : memref<9x8x112xbf16, #tpu.memory_space<vmem>>, vector<1x8x112xbf16>,
    %423 = vector.extract_strided_slice %409 {offsets = [8, 0], sizes = [8, 112], strides = [1, 1]} : vector<56x112xf32> to vector<8x112xf32>
    %424 = arith.truncf %423 : vector<8x112xf32> to vector<8x112xbf16>
    %c2_418 = arith.constant 2 : index
    %c0_419 = arith.constant 0 : index
    %c0_420 = arith.constant 0 : index
    %425 = vector.load %arg11[%c2_418, %c0_419, %c0_420] : memref<9x8x112xbf16, #tpu.memory_space<vmem>>, vector<1x8x112xbf16>
    %426 = vector.shape_cast %425 : vector<1x8x112xbf16> to vector<8x112xbf16>
    %427 = vector.shape_cast %424 : vector<8x112xbf16> to vector<1x8x112xbf16>
    tpu.vector_store %arg11[%c2_418, %c0_419, %c0_420], %427 {strides = array<i32>} : memref<9x8x112xbf16, #tpu.memory_space<vmem>>, vector<1x8x112xbf16>,
    %428 = vector.extract_strided_slice %409 {offsets = [16, 0], sizes = [8, 112], strides = [1, 1]} : vector<56x112xf32> to vector<8x112xf32>
    %429 = arith.truncf %428 : vector<8x112xf32> to vector<8x112xbf16>
    %c3_421 = arith.constant 3 : index
    %c0_422 = arith.constant 0 : index
    %c0_423 = arith.constant 0 : index
    %430 = vector.load %arg11[%c3_421, %c0_422, %c0_423] : memref<9x8x112xbf16, #tpu.memory_space<vmem>>, vector<1x8x112xbf16>
    %431 = vector.shape_cast %430 : vector<1x8x112xbf16> to vector<8x112xbf16>
    %432 = vector.shape_cast %429 : vector<8x112xbf16> to vector<1x8x112xbf16>
    tpu.vector_store %arg11[%c3_421, %c0_422, %c0_423], %432 {strides = array<i32>} : memref<9x8x112xbf16, #tpu.memory_space<vmem>>, vector<1x8x112xbf16>,
    %433 = vector.extract_strided_slice %409 {offsets = [24, 0], sizes = [8, 112], strides = [1, 1]} : vector<56x112xf32> to vector<8x112xf32>
    %434 = arith.truncf %433 : vector<8x112xf32> to vector<8x112xbf16>
    %c4_424 = arith.constant 4 : index
    %c0_425 = arith.constant 0 : index
    %c0_426 = arith.constant 0 : index
    %435 = vector.load %arg11[%c4_424, %c0_425, %c0_426] : memref<9x8x112xbf16, #tpu.memory_space<vmem>>, vector<1x8x112xbf16>
    %436 = vector.shape_cast %435 : vector<1x8x112xbf16> to vector<8x112xbf16>
    %437 = vector.shape_cast %434 : vector<8x112xbf16> to vector<1x8x112xbf16>
    tpu.vector_store %arg11[%c4_424, %c0_425, %c0_426], %437 {strides = array<i32>} : memref<9x8x112xbf16, #tpu.memory_space<vmem>>, vector<1x8x112xbf16>,
    %438 = vector.extract_strided_slice %409 {offsets = [32, 0], sizes = [8, 112], strides = [1, 1]} : vector<56x112xf32> to vector<8x112xf32>
    %439 = arith.truncf %438 : vector<8x112xf32> to vector<8x112xbf16>
    %c5_427 = arith.constant 5 : index
    %c0_428 = arith.constant 0 : index
    %c0_429 = arith.constant 0 : index
    %440 = vector.load %arg11[%c5_427, %c0_428, %c0_429] : memref<9x8x112xbf16, #tpu.memory_space<vmem>>, vector<1x8x112xbf16>
    %441 = vector.shape_cast %440 : vector<1x8x112xbf16> to vector<8x112xbf16>
    %442 = vector.shape_cast %439 : vector<8x112xbf16> to vector<1x8x112xbf16>
    tpu.vector_store %arg11[%c5_427, %c0_428, %c0_429], %442 {strides = array<i32>} : memref<9x8x112xbf16, #tpu.memory_space<vmem>>, vector<1x8x112xbf16>,
    %443 = vector.extract_strided_slice %409 {offsets = [40, 0], sizes = [8, 112], strides = [1, 1]} : vector<56x112xf32> to vector<8x112xf32>
    %444 = arith.truncf %443 : vector<8x112xf32> to vector<8x112xbf16>
    %c6_430 = arith.constant 6 : index
    %c0_431 = arith.constant 0 : index
    %c0_432 = arith.constant 0 : index
    %445 = vector.load %arg11[%c6_430, %c0_431, %c0_432] : memref<9x8x112xbf16, #tpu.memory_space<vmem>>, vector<1x8x112xbf16>
    %446 = vector.shape_cast %445 : vector<1x8x112xbf16> to vector<8x112xbf16>
    %447 = vector.shape_cast %444 : vector<8x112xbf16> to vector<1x8x112xbf16>
    tpu.vector_store %arg11[%c6_430, %c0_431, %c0_432], %447 {strides = array<i32>} : memref<9x8x112xbf16, #tpu.memory_space<vmem>>, vector<1x8x112xbf16>,
    %448 = vector.extract_strided_slice %409 {offsets = [48, 0], sizes = [8, 112], strides = [1, 1]} : vector<56x112xf32> to vector<8x112xf32>
    %449 = arith.truncf %448 : vector<8x112xf32> to vector<8x112xbf16>
    %c7_433 = arith.constant 7 : index
    %c0_434 = arith.constant 0 : index
    %c0_435 = arith.constant 0 : index
    %450 = vector.load %arg11[%c7_433, %c0_434, %c0_435] : memref<9x8x112xbf16, #tpu.memory_space<vmem>>, vector<1x8x112xbf16>
    %451 = vector.shape_cast %450 : vector<1x8x112xbf16> to vector<8x112xbf16>
    %452 = vector.shape_cast %449 : vector<8x112xbf16> to vector<1x8x112xbf16>
    tpu.vector_store %arg11[%c7_433, %c0_434, %c0_435], %452 {strides = array<i32>} : memref<9x8x112xbf16, #tpu.memory_space<vmem>>, vector<1x8x112xbf16>,
    %c0_436 = arith.constant 0 : index
    %c0_437 = arith.constant 0 : index
    %c0_438 = arith.constant 0 : index
    %453 = vector.load %arg11[%c0_436, %c0_437, %c0_438] : memref<9x8x112xbf16, #tpu.memory_space<vmem>>, vector<1x8x112xbf16>
    %454 = vector.shape_cast %453 : vector<1x8x112xbf16> to vector<8x112xbf16>
    %c2_439 = arith.constant 2 : index
    %c0_440 = arith.constant 0 : index
    %c0_441 = arith.constant 0 : index
    %455 = vector.load %arg11[%c2_439, %c0_440, %c0_441] : memref<9x8x112xbf16, #tpu.memory_space<vmem>>, vector<1x8x112xbf16>
    %456 = vector.shape_cast %455 : vector<1x8x112xbf16> to vector<8x112xbf16>
    %c4_442 = arith.constant 4 : index
    %c0_443 = arith.constant 0 : index
    %c0_444 = arith.constant 0 : index
    %457 = vector.load %arg11[%c4_442, %c0_443, %c0_444] : memref<9x8x112xbf16, #tpu.memory_space<vmem>>, vector<1x8x112xbf16>
    %458 = vector.shape_cast %457 : vector<1x8x112xbf16> to vector<8x112xbf16>
    %c6_445 = arith.constant 6 : index
    %c0_446 = arith.constant 0 : index
    %c0_447 = arith.constant 0 : index
    %459 = vector.load %arg11[%c6_445, %c0_446, %c0_447] : memref<9x8x112xbf16, #tpu.memory_space<vmem>>, vector<1x8x112xbf16>
    %460 = vector.shape_cast %459 : vector<1x8x112xbf16> to vector<8x112xbf16>
    %461 = tpu.concatenate %454, %456, %458, %460 in 0 : vector<8x112xbf16>, vector<8x112xbf16>, vector<8x112xbf16>, vector<8x112xbf16> -> vector<32x112xbf16>
    %c0_448 = arith.constant 0 : index
    %c0_449 = arith.constant 0 : index
    %c0_450 = arith.constant 0 : index
    %462 = vector.load %arg6[%c0_448, %c0_449, %c0_450] : memref<3x112x40xbf16, #tpu.memory_space<vmem>>, vector<1x112x40xbf16>
    %463 = vector.shape_cast %462 : vector<1x112x40xbf16> to vector<112x40xbf16>
    %cst_451 = arith.constant dense<0.000000e+00> : vector<32x40xf32>
    %464 = tpu.matmul %461, %463, %cst_451 {dimension_numbers = #tpu.dot_dimension_numbers<[1], [0], [0], [1], [0, 0, 1, 1], [], []>} : vector<32x112xbf16>, vector<112x40xbf16>, vector<32x40xf32> -> vector<32x40xf32>
    %c1_452 = arith.constant 1 : index
    %c0_453 = arith.constant 0 : index
    %c0_454 = arith.constant 0 : index
    %465 = vector.load %arg11[%c1_452, %c0_453, %c0_454] : memref<9x8x112xbf16, #tpu.memory_space<vmem>>, vector<1x8x112xbf16>
    %466 = vector.shape_cast %465 : vector<1x8x112xbf16> to vector<8x112xbf16>
    %c3_455 = arith.constant 3 : index
    %c0_456 = arith.constant 0 : index
    %c0_457 = arith.constant 0 : index
    %467 = vector.load %arg11[%c3_455, %c0_456, %c0_457] : memref<9x8x112xbf16, #tpu.memory_space<vmem>>, vector<1x8x112xbf16>
    %468 = vector.shape_cast %467 : vector<1x8x112xbf16> to vector<8x112xbf16>
    %c5_458 = arith.constant 5 : index
    %c0_459 = arith.constant 0 : index
    %c0_460 = arith.constant 0 : index
    %469 = vector.load %arg11[%c5_458, %c0_459, %c0_460] : memref<9x8x112xbf16, #tpu.memory_space<vmem>>, vector<1x8x112xbf16>
    %470 = vector.shape_cast %469 : vector<1x8x112xbf16> to vector<8x112xbf16>
    %c7_461 = arith.constant 7 : index
    %c0_462 = arith.constant 0 : index
    %c0_463 = arith.constant 0 : index
    %471 = vector.load %arg11[%c7_461, %c0_462, %c0_463] : memref<9x8x112xbf16, #tpu.memory_space<vmem>>, vector<1x8x112xbf16>
    %472 = vector.shape_cast %471 : vector<1x8x112xbf16> to vector<8x112xbf16>
    %473 = tpu.concatenate %466, %468, %470, %472 in 0 : vector<8x112xbf16>, vector<8x112xbf16>, vector<8x112xbf16>, vector<8x112xbf16> -> vector<32x112xbf16>
    %c1_464 = arith.constant 1 : index
    %c0_465 = arith.constant 0 : index
    %c0_466 = arith.constant 0 : index
    %474 = vector.load %arg6[%c1_464, %c0_465, %c0_466] : memref<3x112x40xbf16, #tpu.memory_space<vmem>>, vector<1x112x40xbf16>
    %475 = vector.shape_cast %474 : vector<1x112x40xbf16> to vector<112x40xbf16>
    %cst_467 = arith.constant dense<0.000000e+00> : vector<32x40xf32>
    %476 = tpu.matmul %473, %475, %cst_467 {dimension_numbers = #tpu.dot_dimension_numbers<[1], [0], [0], [1], [0, 0, 1, 1], [], []>} : vector<32x112xbf16>, vector<112x40xbf16>, vector<32x40xf32> -> vector<32x40xf32>
    %477 = arith.addf %464, %476 : vector<32x40xf32>
    %c2_468 = arith.constant 2 : index
    %c0_469 = arith.constant 0 : index
    %c0_470 = arith.constant 0 : index
    %478 = vector.load %arg11[%c2_468, %c0_469, %c0_470] : memref<9x8x112xbf16, #tpu.memory_space<vmem>>, vector<1x8x112xbf16>
    %479 = vector.shape_cast %478 : vector<1x8x112xbf16> to vector<8x112xbf16>
    %c4_471 = arith.constant 4 : index
    %c0_472 = arith.constant 0 : index
    %c0_473 = arith.constant 0 : index
    %480 = vector.load %arg11[%c4_471, %c0_472, %c0_473] : memref<9x8x112xbf16, #tpu.memory_space<vmem>>, vector<1x8x112xbf16>
    %481 = vector.shape_cast %480 : vector<1x8x112xbf16> to vector<8x112xbf16>
    %c6_474 = arith.constant 6 : index
    %c0_475 = arith.constant 0 : index
    %c0_476 = arith.constant 0 : index
    %482 = vector.load %arg11[%c6_474, %c0_475, %c0_476] : memref<9x8x112xbf16, #tpu.memory_space<vmem>>, vector<1x8x112xbf16>
    %483 = vector.shape_cast %482 : vector<1x8x112xbf16> to vector<8x112xbf16>
    %c8_477 = arith.constant 8 : index
    %c0_478 = arith.constant 0 : index
    %c0_479 = arith.constant 0 : index
    %484 = vector.load %arg11[%c8_477, %c0_478, %c0_479] : memref<9x8x112xbf16, #tpu.memory_space<vmem>>, vector<1x8x112xbf16>
    %485 = vector.shape_cast %484 : vector<1x8x112xbf16> to vector<8x112xbf16>
    %486 = tpu.concatenate %479, %481, %483, %485 in 0 : vector<8x112xbf16>, vector<8x112xbf16>, vector<8x112xbf16>, vector<8x112xbf16> -> vector<32x112xbf16>
    %c2_480 = arith.constant 2 : index
    %c0_481 = arith.constant 0 : index
    %c0_482 = arith.constant 0 : index
    %487 = vector.load %arg6[%c2_480, %c0_481, %c0_482] : memref<3x112x40xbf16, #tpu.memory_space<vmem>>, vector<1x112x40xbf16>
    %488 = vector.shape_cast %487 : vector<1x112x40xbf16> to vector<112x40xbf16>
    %cst_483 = arith.constant dense<0.000000e+00> : vector<32x40xf32>
    %489 = tpu.matmul %486, %488, %cst_483 {dimension_numbers = #tpu.dot_dimension_numbers<[1], [0], [0], [1], [0, 0, 1, 1], [], []>} : vector<32x112xbf16>, vector<112x40xbf16>, vector<32x40xf32> -> vector<32x40xf32>
    %490 = arith.addf %477, %489 : vector<32x40xf32>
    %c0_484 = arith.constant 0 : index
    %c0_485 = arith.constant 0 : index
    %491 = vector.load %arg7[%c0_484, %c0_485] : memref<1x40xf32, #tpu.memory_space<vmem>>, vector<1x40xf32>
    %492 = vector.broadcast %491 : vector<1x40xf32> to vector<32x40xf32>
    %493 = arith.addf %490, %492 : vector<32x40xf32>
    %cst_486 = arith.constant 0.000000e+00 : f32
    %494 = vector.broadcast %cst_486 : f32 to vector<32x40xf32>
    %495 = arith.maximumf %493, %494 : vector<32x40xf32>
    %496 = vector.extract_strided_slice %495 {offsets = [0, 0], sizes = [8, 40], strides = [1, 1]} : vector<32x40xf32> to vector<8x40xf32>
    %497 = vector.extract_strided_slice %495 {offsets = [8, 0], sizes = [8, 40], strides = [1, 1]} : vector<32x40xf32> to vector<8x40xf32>
    %498 = arith.addf %496, %497 : vector<8x40xf32>
    %499 = vector.extract_strided_slice %495 {offsets = [16, 0], sizes = [8, 40], strides = [1, 1]} : vector<32x40xf32> to vector<8x40xf32>
    %500 = arith.addf %498, %499 : vector<8x40xf32>
    %501 = vector.extract_strided_slice %495 {offsets = [24, 0], sizes = [8, 40], strides = [1, 1]} : vector<32x40xf32> to vector<8x40xf32>
    %502 = arith.addf %500, %501 : vector<8x40xf32>
    %503 = vector.extract_strided_slice %502 {offsets = [0, 0], sizes = [8, 10], strides = [1, 1]} : vector<8x40xf32> to vector<8x10xf32>
    %504 = vector.extract_strided_slice %502 {offsets = [0, 10], sizes = [8, 10], strides = [1, 1]} : vector<8x40xf32> to vector<8x10xf32>
    %505 = arith.addf %503, %504 : vector<8x10xf32>
    %506 = vector.extract_strided_slice %502 {offsets = [0, 20], sizes = [8, 10], strides = [1, 1]} : vector<8x40xf32> to vector<8x10xf32>
    %507 = arith.addf %505, %506 : vector<8x10xf32>
    %508 = vector.extract_strided_slice %502 {offsets = [0, 30], sizes = [8, 10], strides = [1, 1]} : vector<8x40xf32> to vector<8x10xf32>
    %509 = arith.addf %507, %508 : vector<8x10xf32>
    %cst_487 = arith.constant 6.250000e-02 : f32
    %510 = vector.broadcast %cst_487 : f32 to vector<8x10xf32>
    %511 = arith.mulf %509, %510 : vector<8x10xf32>
    %c0_488 = arith.constant 0 : index
    %c0_489 = arith.constant 0 : index
    %512 = vector.load %arg8[%c0_488, %c0_489] : memref<8x10xf32, #tpu.memory_space<vmem>>, vector<8x10xf32>
    tpu.vector_store %arg8[%c0_488, %c0_489], %511 {strides = array<i32>} : memref<8x10xf32, #tpu.memory_space<vmem>>, vector<8x10xf32>,
    return
  }
  func.func @transform_0(%arg0: i32) -> (i32, i32, i32) {
    %c0_i32 = arith.constant 0 : i32
    %c0_i32_0 = arith.constant 0 : i32
    %c0_i32_1 = arith.constant 0 : i32
    return %c0_i32, %arg0, %c0_i32_0 : i32, i32, i32
  }
  func.func @transform_1(%arg0: i32) -> (i32, i32, i32) {
    %c0_i32 = arith.constant 0 : i32
    %c0_i32_0 = arith.constant 0 : i32
    %c0_i32_1 = arith.constant 0 : i32
    %c0_i32_2 = arith.constant 0 : i32
    return %c0_i32, %c0_i32_0, %c0_i32_1 : i32, i32, i32
  }
  func.func @transform_2(%arg0: i32) -> (i32, i32) {
    %c0_i32 = arith.constant 0 : i32
    %c0_i32_0 = arith.constant 0 : i32
    %c0_i32_1 = arith.constant 0 : i32
    return %c0_i32, %c0_i32_0 : i32, i32
  }
  func.func @transform_3(%arg0: i32) -> (i32, i32, i32) {
    %c0_i32 = arith.constant 0 : i32
    %c0_i32_0 = arith.constant 0 : i32
    %c0_i32_1 = arith.constant 0 : i32
    %c0_i32_2 = arith.constant 0 : i32
    return %c0_i32, %c0_i32_0, %c0_i32_1 : i32, i32, i32
  }
  func.func @transform_4(%arg0: i32) -> (i32, i32) {
    %c0_i32 = arith.constant 0 : i32
    %c0_i32_0 = arith.constant 0 : i32
    %c0_i32_1 = arith.constant 0 : i32
    return %c0_i32, %c0_i32_0 : i32, i32
  }
  func.func @transform_5(%arg0: i32) -> (i32, i32, i32) {
    %c0_i32 = arith.constant 0 : i32
    %c0_i32_0 = arith.constant 0 : i32
    %c0_i32_1 = arith.constant 0 : i32
    %c0_i32_2 = arith.constant 0 : i32
    return %c0_i32, %c0_i32_0, %c0_i32_1 : i32, i32, i32
  }
  func.func @transform_6(%arg0: i32) -> (i32, i32) {
    %c0_i32 = arith.constant 0 : i32
    %c0_i32_0 = arith.constant 0 : i32
    %c0_i32_1 = arith.constant 0 : i32
    return %c0_i32, %c0_i32_0 : i32, i32
  }
  func.func @transform_7(%arg0: i32) -> (i32, i32) {
    %c0_i32 = arith.constant 0 : i32
    %c0_i32_0 = arith.constant 0 : i32
    return %arg0, %c0_i32 : i32, i32
  }
}

</mosaic_0001>

<llo_original>
// kernel: mnist_cnn_forward.1
$region0: #{mnist_cnn_forward.1}
  #allocation0 [shape = 'u32[]', space=smem, size = 0x4, offset = 0x4, fixed_abs, tag = 'smem constant byte address 0x4 - core index']
  #allocation1 [shape = 'u32[144,128]{1,0:T(1,128)}', space=vmem, size = 0x12000, scoped, tag = 'internal scratch']
  #allocation2 [shape = 'bf16[29,8,28]{2,1,0:T(8,128)(2,1)}', space=vmem, size = 0xe800, scoped, tag = 'scratch operand']
  #allocation3 [shape = 'bf16[15,8,224]{2,1,0:T(8,128)(2,1)}', space=vmem, size = 0xf000, scoped, tag = 'scratch operand']
  #allocation4 [shape = 'bf16[9,8,112]{2,1,0:T(8,128)(2,1)}', space=vmem, size = 0x4800, scoped, tag = 'scratch operand']
  %s0 = inlined_call_operand.vmem [shape: f32[28,8,28], index: 0, kind: input, shape index: {}]
  %s1 = inlined_call_operand.vmem [shape: bf16[3,28,224], index: 1, kind: input, shape index: {}]
  %s2 = inlined_call_operand.vmem [shape: f32[1,224], index: 2, kind: input, shape index: {}]
  %s3 = inlined_call_operand.vmem [shape: bf16[3,224,112], index: 3, kind: input, shape index: {}]
  %s4 = inlined_call_operand.vmem [shape: f32[1,112], index: 4, kind: input, shape index: {}]
  %s5 = inlined_call_operand.vmem [shape: bf16[3,112,40], index: 5, kind: input, shape index: {}]
  %s6 = inlined_call_operand.vmem [shape: f32[1,40], index: 6, kind: input, shape index: {}]
  %s7 = inlined_call_operand.hbm [shape: f32[8,10], index: 7, kind: output, shape index: {}]
  %s8 = sld [smem:[#allocation0]]
  $region38: #{mnist_cnn_forward.1} parent=0
    _
  %s10 = ssub.s32 1, %s8
  %s11 = scalar_select 0, %s10, %s8
  $region1: #{mnist_cnn_forward.1} parent=0
    #allocation5 [shape = 'u8[4096]{0}', space=vmem, size = 0x1000, scoped, tag = 'output window, operand 0, single buffered']
    #allocation6 [shape = 's32[1]{0}', space=sflag, size = 0x4, scoped, tag = 'scoped memory for mnist_cnn_forward.1']
    %12 = vsyncpa [#allocation6], 0
    // Predicated region
    $region2: #{mnist_cnn_forward.1} parent=1 // pred_check
      _
    $region3: #{mnist_cnn_forward.1} parent=1 // pred_check_branch
      %14 = sbr.rel (0) target = $region5
    $region4: #{mnist_cnn_forward.1} parent=1 // pred_region
      _
    $region5: #{mnist_cnn_forward.1} parent=1 // pred_fallthru
      _
    // Predicated region
    $region6: #{mnist_cnn_forward.1} parent=1 // pred_check
      _
    $region7: #{mnist_cnn_forward.1} parent=1 // pred_check_branch
      %16 = sbr.rel (0) target = $region9
    $region8: #{mnist_cnn_forward.1} parent=1 // pred_region
      _
    $region9: #{mnist_cnn_forward.1} parent=1 // pred_fallthru
      _
    // Predicated region
    $region10: #{mnist_cnn_forward.1} parent=1 // pred_check
      _
    $region11: #{mnist_cnn_forward.1} parent=1 // pred_check_branch
      %18 = sbr.rel (0) target = $region13
    $region12: #{mnist_cnn_forward.1} parent=1 // pred_region
      _
    $region13: #{mnist_cnn_forward.1} parent=1 // pred_fallthru
      _
    // Predicated region
    $region14: #{mnist_cnn_forward.1} parent=1 // pred_check
      _
    $region15: #{mnist_cnn_forward.1} parent=1 // pred_check_branch
      %20 = sbr.rel (0) target = $region17
    $region16: #{mnist_cnn_forward.1} parent=1 // pred_region
      _
    $region17: #{mnist_cnn_forward.1} parent=1 // pred_fallthru
      _
    // Predicated region
    $region18: #{mnist_cnn_forward.1} parent=1 // pred_check
      _
    $region19: #{mnist_cnn_forward.1} parent=1 // pred_check_branch
      %22 = sbr.rel (0) target = $region21
    $region20: #{mnist_cnn_forward.1} parent=1 // pred_region
      _
    $region21: #{mnist_cnn_forward.1} parent=1 // pred_fallthru
      _
    // Predicated region
    $region22: #{mnist_cnn_forward.1} parent=1 // pred_check
      _
    $region23: #{mnist_cnn_forward.1} parent=1 // pred_check_branch
      %24 = sbr.rel (0) target = $region25
    $region24: #{mnist_cnn_forward.1} parent=1 // pred_region
      _
    $region25: #{mnist_cnn_forward.1} parent=1 // pred_fallthru
      _
    // Predicated region
    $region26: #{mnist_cnn_forward.1} parent=1 // pred_check
      _
    $region27: #{mnist_cnn_forward.1} parent=1 // pred_check_branch
      %26 = sbr.rel (0) target = $region29
    $region28: #{mnist_cnn_forward.1} parent=1 // pred_region
      _
    $region29: #{mnist_cnn_forward.1} parent=1 // pred_fallthru
      _
    %vm28 = vcmask 224256
    %29 = vst.msk [vmem:[#allocation2] sm:$0xf] %vm28, 0
    %v30 = vld [vmem:[%s0] sm:$0xff]
    %v31 = vpack.c.bf16 %v30, %v30
    %s32 = scalar_lea.vmem [#allocation2], 4
    %33 = vst.msk [vmem:[%s32] sm:$0xf] %vm28, %v31
    %s34 = scalar_lea.vmem %s0, 8
    %v35 = vld [vmem:[%s34] sm:$0xff]
    %v36 = vpack.c.bf16 %v35, %v35
    %s37 = scalar_lea.vmem [#allocation2], 8
    %38 = vst.msk [vmem:[%s37] sm:$0xf] %vm28, %v36
    %s39 = scalar_lea.vmem %s0, 16
    %v40 = vld [vmem:[%s39] sm:$0xff]
    %v41 = vpack.c.bf16 %v40, %v40
    %s42 = scalar_lea.vmem [#allocation2], 12
    %43 = vst.msk [vmem:[%s42] sm:$0xf] %vm28, %v41
    %s44 = scalar_lea.vmem %s0, 24
    %v45 = vld [vmem:[%s44] sm:$0xff]
    %v46 = vpack.c.bf16 %v45, %v45
    %s47 = scalar_lea.vmem [#allocation2], 16
    %48 = vst.msk [vmem:[%s47] sm:$0xf] %vm28, %v46
    %s49 = scalar_lea.vmem %s0, 32
    %v50 = vld [vmem:[%s49] sm:$0xff]
    %v51 = vpack.c.bf16 %v50, %v50
    %s52 = scalar_lea.vmem [#allocation2], 20
    %53 = vst.msk [vmem:[%s52] sm:$0xf] %vm28, %v51
    %s54 = scalar_lea.vmem %s0, 40
    %v55 = vld [vmem:[%s54] sm:$0xff]
    %v56 = vpack.c.bf16 %v55, %v55
    %s57 = scalar_lea.vmem [#allocation2], 24
    %58 = vst.msk [vmem:[%s57] sm:$0xf] %vm28, %v56
    %s59 = scalar_lea.vmem %s0, 48
    %v60 = vld [vmem:[%s59] sm:$0xff]
    %v61 = vpack.c.bf16 %v60, %v60
    %s62 = scalar_lea.vmem [#allocation2], 28
    %63 = vst.msk [vmem:[%s62] sm:$0xf] %vm28, %v61
    %s64 = scalar_lea.vmem %s0, 56
    %v65 = vld [vmem:[%s64] sm:$0xff]
    %v66 = vpack.c.bf16 %v65, %v65
    %s67 = scalar_lea.vmem [#allocation2], 32
    %68 = vst.msk [vmem:[%s67] sm:$0xf] %vm28, %v66
    %s69 = scalar_lea.vmem %s0, 64
    %v70 = vld [vmem:[%s69] sm:$0xff]
    %v71 = vpack.c.bf16 %v70, %v70
    %s72 = scalar_lea.vmem [#allocation2], 36
    %73 = vst.msk [vmem:[%s72] sm:$0xf] %vm28, %v71
    %s74 = scalar_lea.vmem %s0, 72
    %v75 = vld [vmem:[%s74] sm:$0xff]
    %v76 = vpack.c.bf16 %v75, %v75
    %s77 = scalar_lea.vmem [#allocation2], 40
    %78 = vst.msk [vmem:[%s77] sm:$0xf] %vm28, %v76
    %s79 = scalar_lea.vmem %s0, 80
    %v80 = vld [vmem:[%s79] sm:$0xff]
    %v81 = vpack.c.bf16 %v80, %v80
    %s82 = scalar_lea.vmem [#allocation2], 44
    %83 = vst.msk [vmem:[%s82] sm:$0xf] %vm28, %v81
    %s84 = scalar_lea.vmem %s0, 88
    %v85 = vld [vmem:[%s84] sm:$0xff]
    %v86 = vpack.c.bf16 %v85, %v85
    %s87 = scalar_lea.vmem [#allocation2], 48
    %88 = vst.msk [vmem:[%s87] sm:$0xf] %vm28, %v86
    %s89 = scalar_lea.vmem %s0, 96
    %v90 = vld [vmem:[%s89] sm:$0xff]
    %v91 = vpack.c.bf16 %v90, %v90
    %s92 = scalar_lea.vmem [#allocation2], 52
    %93 = vst.msk [vmem:[%s92] sm:$0xf] %vm28, %v91
    %s94 = scalar_lea.vmem %s0, 104
    %v95 = vld [vmem:[%s94] sm:$0xff]
    %v96 = vpack.c.bf16 %v95, %v95
    %s97 = scalar_lea.vmem [#allocation2], 56
    %98 = vst.msk [vmem:[%s97] sm:$0xf] %vm28, %v96
    %s99 = scalar_lea.vmem %s0, 112
    %v100 = vld [vmem:[%s99] sm:$0xff]
    %v101 = vpack.c.bf16 %v100, %v100
    %s102 = scalar_lea.vmem [#allocation2], 60
    %103 = vst.msk [vmem:[%s102] sm:$0xf] %vm28, %v101
    %s104 = scalar_lea.vmem %s0, 120
    %v105 = vld [vmem:[%s104] sm:$0xff]
    %v106 = vpack.c.bf16 %v105, %v105
    %s107 = scalar_lea.vmem [#allocation2], 64
    %108 = vst.msk [vmem:[%s107] sm:$0xf] %vm28, %v106
    %s109 = scalar_lea.vmem %s0, 128
    %v110 = vld [vmem:[%s109] sm:$0xff]
    %v111 = vpack.c.bf16 %v110, %v110
    %s112 = scalar_lea.vmem [#allocation2], 68
    %113 = vst.msk [vmem:[%s112] sm:$0xf] %vm28, %v111
    %s114 = scalar_lea.vmem %s0, 136
    %v115 = vld [vmem:[%s114] sm:$0xff]
    %v116 = vpack.c.bf16 %v115, %v115
    %s117 = scalar_lea.vmem [#allocation2], 72
    %118 = vst.msk [vmem:[%s117] sm:$0xf] %vm28, %v116
    %s119 = scalar_lea.vmem %s0, 144
    %v120 = vld [vmem:[%s119] sm:$0xff]
    %v121 = vpack.c.bf16 %v120, %v120
    %s122 = scalar_lea.vmem [#allocation2], 76
    %123 = vst.msk [vmem:[%s122] sm:$0xf] %vm28, %v121
    %s124 = scalar_lea.vmem %s0, 152
    %v125 = vld [vmem:[%s124] sm:$0xff]
    %v126 = vpack.c.bf16 %v125, %v125
    %s127 = scalar_lea.vmem [#allocation2], 80
    %128 = vst.msk [vmem:[%s127] sm:$0xf] %vm28, %v126
    %s129 = scalar_lea.vmem %s0, 160
    %v130 = vld [vmem:[%s129] sm:$0xff]
    %v131 = vpack.c.bf16 %v130, %v130
    %s132 = scalar_lea.vmem [#allocation2], 84
    %133 = vst.msk [vmem:[%s132] sm:$0xf] %vm28, %v131
    %s134 = scalar_lea.vmem %s0, 168
    %v135 = vld [vmem:[%s134] sm:$0xff]
    %v136 = vpack.c.bf16 %v135, %v135
    %s137 = scalar_lea.vmem [#allocation2], 88
    %138 = vst.msk [vmem:[%s137] sm:$0xf] %vm28, %v136
    %s139 = scalar_lea.vmem %s0, 176
    %v140 = vld [vmem:[%s139] sm:$0xff]
    %v141 = vpack.c.bf16 %v140, %v140
    %s142 = scalar_lea.vmem [#allocation2], 92
    %143 = vst.msk [vmem:[%s142] sm:$0xf] %vm28, %v141
    %s144 = scalar_lea.vmem %s0, 184
    %v145 = vld [vmem:[%s144] sm:$0xff]
    %v146 = vpack.c.bf16 %v145, %v145
    %s147 = scalar_lea.vmem [#allocation2], 96
    %148 = vst.msk [vmem:[%s147] sm:$0xf] %vm28, %v146
    %s149 = scalar_lea.vmem %s0, 192
    %v150 = vld [vmem:[%s149] sm:$0xff]
    %v151 = vpack.c.bf16 %v150, %v150
    %s152 = scalar_lea.vmem [#allocation2], 100
    %153 = vst.msk [vmem:[%s152] sm:$0xf] %vm28, %v151
    %s154 = scalar_lea.vmem %s0, 200
    %v155 = vld [vmem:[%s154] sm:$0xff]
    %v156 = vpack.c.bf16 %v155, %v155
    %s157 = scalar_lea.vmem [#allocation2], 104
    %158 = vst.msk [vmem:[%s157] sm:$0xf] %vm28, %v156
    %s159 = scalar_lea.vmem %s0, 208
    %v160 = vld [vmem:[%s159] sm:$0xff]
    %v161 = vpack.c.bf16 %v160, %v160
    %s162 = scalar_lea.vmem [#allocation2], 108
    %163 = vst.msk [vmem:[%s162] sm:$0xf] %vm28, %v161
    %s164 = scalar_lea.vmem %s0, 216
    %v165 = vld [vmem:[%s164] sm:$0xff]
    %v166 = vpack.c.bf16 %v165, %v165
    %s167 = scalar_lea.vmem [#allocation2], 112
    %168 = vst.msk [vmem:[%s167] sm:$0xf] %vm28, %v166
    %v169 = vld [vmem:[#allocation2] sm:$0xf]
    %v170 = vld [vmem:[%s37] sm:$0xf]
    %v171 = vld [vmem:[%s47] sm:$0xf]
    %v172 = vld [vmem:[%s57] sm:$0xf]
    %v173 = vld [vmem:[%s67] sm:$0xf]
    %v174 = vld [vmem:[%s77] sm:$0xf]
    %v175 = vld [vmem:[%s87] sm:$0xf]
    %v176 = vld [vmem:[%s97] sm:$0xf]
    %v177 = vld [vmem:[%s107] sm:$0xf]
    %v178 = vld [vmem:[%s117] sm:$0xf]
    %v179 = vld [vmem:[%s127] sm:$0xf]
    %v180 = vld [vmem:[%s137] sm:$0xf]
    %v181 = vld [vmem:[%s147] sm:$0xf]
    %v182 = vld [vmem:[%s157] sm:$0xf]
    %v184 = vunpack.c.l.b16 %v170
    %v185 = vpack.c.b16 %v184, %v184
    %v187 = vunpack.c.l.b16 %v172
    %v188 = vpack.c.b16 %v187, %v187
    %v190 = vunpack.c.l.b16 %v174
    %v191 = vpack.c.b16 %v190, %v190
    %v193 = vunpack.c.l.b16 %v176
    %v194 = vpack.c.b16 %v193, %v193
    %v196 = vunpack.c.l.b16 %v178
    %v197 = vpack.c.b16 %v196, %v196
    %v199 = vunpack.c.l.b16 %v180
    %v200 = vpack.c.b16 %v199, %v199
    %v202 = vunpack.c.l.b16 %v182
    %v203 = vpack.c.b16 %v202, %v202
    %vm204 = vcmask 1043456
    %v207 = vsel %vm204, %v169, %v185
    %v210 = vsel %vm204, %v171, %v188
    %v213 = vsel %vm204, %v173, %v191
    %v216 = vsel %vm204, %v175, %v194
    %v219 = vsel %vm204, %v177, %v197
    %v222 = vsel %vm204, %v179, %v200
    %v225 = vsel %vm204, %v181, %v203
    %v226 = vld [vmem:[%s1] sm:$0xff]
    %v227 = vld [vmem:[%s1 + $0x8] sm:$0xff]
    %v228 = vld [vmem:[%s1 + $0x10] sm:$0xff]
    %v229 = vld [vmem:[%s1 + $0x18] sm:$0x33]
    %v230 = vld [vmem:[%s32] sm:$0xf]
    %v231 = vld [vmem:[%s42] sm:$0xf]
    %v232 = vld [vmem:[%s52] sm:$0xf]
    %v233 = vld [vmem:[%s62] sm:$0xf]
    %v234 = vld [vmem:[%s72] sm:$0xf]
    %v235 = vld [vmem:[%s82] sm:$0xf]
    %v236 = vld [vmem:[%s92] sm:$0xf]
    %v237 = vld [vmem:[%s102] sm:$0xf]
    %v238 = vld [vmem:[%s112] sm:$0xf]
    %v239 = vld [vmem:[%s122] sm:$0xf]
    %v240 = vld [vmem:[%s132] sm:$0xf]
    %v241 = vld [vmem:[%s142] sm:$0xf]
    %v242 = vld [vmem:[%s152] sm:$0xf]
    %v243 = vld [vmem:[%s162] sm:$0xf]
    %v245 = vunpack.c.l.b16 %v231
    %v246 = vpack.c.b16 %v245, %v245
    %v248 = vunpack.c.l.b16 %v233
    %v249 = vpack.c.b16 %v248, %v248
    %v251 = vunpack.c.l.b16 %v235
    %v252 = vpack.c.b16 %v251, %v251
    %v254 = vunpack.c.l.b16 %v237
    %v255 = vpack.c.b16 %v254, %v254
    %v257 = vunpack.c.l.b16 %v239
    %v258 = vpack.c.b16 %v257, %v257
    %v260 = vunpack.c.l.b16 %v241
    %v261 = vpack.c.b16 %v260, %v260
    %v263 = vunpack.c.l.b16 %v243
    %v264 = vpack.c.b16 %v263, %v263
    %v267 = vsel %vm204, %v230, %v246
    %v270 = vsel %vm204, %v232, %v249
    %v273 = vsel %vm204, %v234, %v252
    %v276 = vsel %vm204, %v236, %v255
    %v279 = vsel %vm204, %v238, %v258
    %v282 = vsel %vm204, %v240, %v261
    %v285 = vsel %vm204, %v242, %v264
    %s286 = scalar_lea.vmem %s1, 32
    %v287 = vld [vmem:[%s286] sm:$0xff]
    %v288 = vld [vmem:[%s286 + $0x8] sm:$0xff]
    %v289 = vld [vmem:[%s286 + $0x10] sm:$0xff]
    %v290 = vld [vmem:[%s286 + $0x18] sm:$0x33]
    %v295 = vunpack.c.l.b16 %v287
    %v296 = vunpack.c.h.b16 %v287
    %v297 = vunpack.c.l.b16 %v288
    %v298 = vunpack.c.h.b16 %v288
    %v299 = vunpack.c.l.b16 %v289
    %v300 = vunpack.c.h.b16 %v289
    %v301 = vunpack.c.l.b16 %v290
    %v302 = vunpack.c.h.b16 %v290
    %v303 = vpack.c.b16 %v297, %v295
    %v304 = vpack.c.b16 %v298, %v296
    %v305 = vpack.c.b16 %v301, %v299
    %v306 = vpack.c.b16 %v302, %v300
    %vm309 = vcmask 228352
    %v310 = vsel %vm309, %v267, 0
    %v312 = vsel %vm309, %v270, 0
    %v314 = vsel %vm309, %v273, 0
    %v316 = vsel %vm309, %v276, 0
    %v318 = vsel %vm309, %v279, 0
    %v320 = vsel %vm309, %v282, 0
    %v322 = vsel %vm309, %v285, 0
    %vm324 = vcmask 1045504
    %v326 = vsel %vm324, %v305, 0
    %v329 = vsel %vm324, %v306, 0
    %331 = vmatprep.subr.bf16.mxu0 %v304
    %332 = vmatpush1.bf16.msra.mxu0 %v303
    %333 = vmatprep.subr.bf16.mxu0 %v329
    %334 = vmatpush1.bf16.msra.mxu0 %v326
    %335 = vmatprep.subr.bf16.mxu0 0
    %336 = vmatpush1.bf16.msra.mxu0 0
    %337 = vmatprep.subr.bf16.mxu0 0
    %338 = vmatpush1.bf16.msra.mxu0 0
    %339 = vmatprep.subr.bf16.mxu0 0
    %340 = vmatpush1.bf16.msra.mxu0 0
    %341 = vmatprep.subr.bf16.mxu0 0
    %342 = vmatpush1.bf16.msra.mxu0 0
    %343 = vmatprep.subr.bf16.mxu0 0
    %344 = vmatpush1.bf16.msra.mxu0 0
    %345 = vmatprep.subr.bf16.mxu0 0
    %346 = vmatpush1.bf16.msra.mxu0 0
    %347 = vmatprep.subr.bf16.mxu0 0
    %348 = vmatpush1.bf16.msra.mxu0 0
    %349 = vmatprep.subr.bf16.mxu0 0
    %350 = vmatpush1.bf16.msra.mxu0 0
    %351 = vmatprep.subr.bf16.mxu0 0
    %352 = vmatpush1.bf16.msra.mxu0 0
    %353 = vmatprep.subr.bf16.mxu0 0
    %354 = vmatpush1.bf16.msra.mxu0 0
    %355 = vmatprep.subr.bf16.mxu0 0
    %356 = vmatpush1.bf16.msra.mxu0 0
    %357 = vmatprep.subr.bf16.mxu0 0
    %358 = vmatpush1.bf16.msra.mxu0 0
    %359 = vmatprep.subr.bf16.mxu0 0
    %360 = vmatpush1.bf16.msra.mxu0 0
    %361 = vmatprep.subr.bf16.mxu0 0
    %362 = vmatpush1.bf16.msra.mxu0 0
    %363 = vmatprep.mubr.bf16.mxu0 0
    %364 = vmatmul.mubr.bf16.gmra.mrb[0].mxu0 %v310
    %v365 = vpop.f32.mrb[0].mxu0
    %v366 = vadd.f32 0.0, %v365
    %v367 = vpop.f32.mrb[0].mxu0
    %v368 = vadd.f32 0.0, %v367
    %v369 = vpop.f32.mrb[0].mxu0
    %v370 = vadd.f32 0.0, %v369
    %v371 = vpop.f32.mrb[0].mxu0
    %v372 = vadd.f32 0.0, %v371
    %373 = vmatprep.mubr.bf16.mxu0 0
    %374 = vmatmul.mubr.bf16.gmra.mrb[0].mxu0 %v312
    %v375 = vpop.f32.mrb[0].mxu0
    %v376 = vadd.f32 0.0, %v375
    %v377 = vpop.f32.mrb[0].mxu0
    %v378 = vadd.f32 0.0, %v377
    %v379 = vpop.f32.mrb[0].mxu0
    %v380 = vadd.f32 0.0, %v379
    %v381 = vpop.f32.mrb[0].mxu0
    %v382 = vadd.f32 0.0, %v381
    %383 = vmatprep.mubr.bf16.mxu0 0
    %384 = vmatmul.mubr.bf16.gmra.mrb[0].mxu0 %v314
    %v385 = vpop.f32.mrb[0].mxu0
    %v386 = vadd.f32 0.0, %v385
    %v387 = vpop.f32.mrb[0].mxu0
    %v388 = vadd.f32 0.0, %v387
    %v389 = vpop.f32.mrb[0].mxu0
    %v390 = vadd.f32 0.0, %v389
    %v391 = vpop.f32.mrb[0].mxu0
    %v392 = vadd.f32 0.0, %v391
    %393 = vmatprep.mubr.bf16.mxu0 0
    %394 = vmatmul.mubr.bf16.gmra.mrb[0].mxu0 %v316
    %v395 = vpop.f32.mrb[0].mxu0
    %v396 = vadd.f32 0.0, %v395
    %v397 = vpop.f32.mrb[0].mxu0
    %v398 = vadd.f32 0.0, %v397
    %v399 = vpop.f32.mrb[0].mxu0
    %v400 = vadd.f32 0.0, %v399
    %v401 = vpop.f32.mrb[0].mxu0
    %v402 = vadd.f32 0.0, %v401
    %403 = vmatprep.mubr.bf16.mxu0 0
    %404 = vmatmul.mubr.bf16.gmra.mrb[0].mxu0 %v318
    %v405 = vpop.f32.mrb[0].mxu0
    %v406 = vadd.f32 0.0, %v405
    %v407 = vpop.f32.mrb[0].mxu0
    %v408 = vadd.f32 0.0, %v407
    %v409 = vpop.f32.mrb[0].mxu0
    %v410 = vadd.f32 0.0, %v409
    %v411 = vpop.f32.mrb[0].mxu0
    %v412 = vadd.f32 0.0, %v411
    %413 = vmatprep.mubr.bf16.mxu0 0
    %414 = vmatmul.mubr.bf16.gmra.mrb[0].mxu0 %v320
    %v415 = vpop.f32.mrb[0].mxu0
    %v416 = vadd.f32 0.0, %v415
    %v417 = vpop.f32.mrb[0].mxu0
    %v418 = vadd.f32 0.0, %v417
    %v419 = vpop.f32.mrb[0].mxu0
    %v420 = vadd.f32 0.0, %v419
    %v421 = vpop.f32.mrb[0].mxu0
    %v422 = vadd.f32 0.0, %v421
    %423 = vmatprep.mubr.bf16.mxu0 0
    %424 = vmatmul.mubr.bf16.gmra.mrb[0].mxu0 %v322
    %v425 = vpop.f32.mrb[0].mxu0
    %v426 = vadd.f32 0.0, %v425
    %v427 = vpop.f32.mrb[0].mxu0
    %v428 = vadd.f32 0.0, %v427
    %v429 = vpop.f32.mrb[0].mxu0
    %v430 = vadd.f32 0.0, %v429
    %v431 = vpop.f32.mrb[0].mxu0
    %v432 = vadd.f32 0.0, %v431
    %433 = vdwg.mxu0
    %v438 = vunpack.c.l.b16 %v226
    %v439 = vunpack.c.h.b16 %v226
    %v440 = vunpack.c.l.b16 %v227
    %v441 = vunpack.c.h.b16 %v227
    %v442 = vunpack.c.l.b16 %v228
    %v443 = vunpack.c.h.b16 %v228
    %v444 = vunpack.c.l.b16 %v229
    %v445 = vunpack.c.h.b16 %v229
    %v446 = vpack.c.b16 %v440, %v438
    %v447 = vpack.c.b16 %v441, %v439
    %v448 = vpack.c.b16 %v444, %v442
    %v449 = vpack.c.b16 %v445, %v443
    %v452 = vsel %vm309, %v207, 0
    %v454 = vsel %vm309, %v210, 0
    %v456 = vsel %vm309, %v213, 0
    %v458 = vsel %vm309, %v216, 0
    %v460 = vsel %vm309, %v219, 0
    %v462 = vsel %vm309, %v222, 0
    %v464 = vsel %vm309, %v225, 0
    %v467 = vsel %vm324, %v448, 0
    %v470 = vsel %vm324, %v449, 0
    %472 = vmatprep.subr.bf16.mxu0 %v447
    %473 = vmatpush1.bf16.msra.mxu0 %v446
    %474 = vmatprep.subr.bf16.mxu0 %v470
    %475 = vmatpush1.bf16.msra.mxu0 %v467
    %476 = vmatprep.subr.bf16.mxu0 0
    %477 = vmatpush1.bf16.msra.mxu0 0
    %478 = vmatprep.subr.bf16.mxu0 0
    %479 = vmatpush1.bf16.msra.mxu0 0
    %480 = vmatprep.subr.bf16.mxu0 0
    %481 = vmatpush1.bf16.msra.mxu0 0
    %482 = vmatprep.subr.bf16.mxu0 0
    %483 = vmatpush1.bf16.msra.mxu0 0
    %484 = vmatprep.subr.bf16.mxu0 0
    %485 = vmatpush1.bf16.msra.mxu0 0
    %486 = vmatprep.subr.bf16.mxu0 0
    %487 = vmatpush1.bf16.msra.mxu0 0
    %488 = vmatprep.subr.bf16.mxu0 0
    %489 = vmatpush1.bf16.msra.mxu0 0
    %490 = vmatprep.subr.bf16.mxu0 0
    %491 = vmatpush1.bf16.msra.mxu0 0
    %492 = vmatprep.subr.bf16.mxu0 0
    %493 = vmatpush1.bf16.msra.mxu0 0
    %494 = vmatprep.subr.bf16.mxu0 0
    %495 = vmatpush1.bf16.msra.mxu0 0
    %496 = vmatprep.subr.bf16.mxu0 0
    %497 = vmatpush1.bf16.msra.mxu0 0
    %498 = vmatprep.subr.bf16.mxu0 0
    %499 = vmatpush1.bf16.msra.mxu0 0
    %500 = vmatprep.subr.bf16.mxu0 0
    %501 = vmatpush1.bf16.msra.mxu0 0
    %502 = vmatprep.subr.bf16.mxu0 0
    %503 = vmatpush1.bf16.msra.mxu0 0
    %504 = vmatprep.mubr.bf16.mxu0 0
    %505 = vmatmul.mubr.bf16.gmra.mrb[0].mxu0 %v452
    %v506 = vpop.f32.mrb[0].mxu0
    %v507 = vadd.f32 %v366, %v506
    %v508 = vpop.f32.mrb[0].mxu0
    %v509 = vadd.f32 %v368, %v508
    %v510 = vpop.f32.mrb[0].mxu0
    %v511 = vadd.f32 %v370, %v510
    %v512 = vpop.f32.mrb[0].mxu0
    %v513 = vadd.f32 %v372, %v512
    %514 = vmatprep.mubr.bf16.mxu0 0
    %515 = vmatmul.mubr.bf16.gmra.mrb[0].mxu0 %v454
    %v516 = vpop.f32.mrb[0].mxu0
    %v517 = vadd.f32 %v376, %v516
    %v518 = vpop.f32.mrb[0].mxu0
    %v519 = vadd.f32 %v378, %v518
    %v520 = vpop.f32.mrb[0].mxu0
    %v521 = vadd.f32 %v380, %v520
    %v522 = vpop.f32.mrb[0].mxu0
    %v523 = vadd.f32 %v382, %v522
    %524 = vmatprep.mubr.bf16.mxu0 0
    %525 = vmatmul.mubr.bf16.gmra.mrb[0].mxu0 %v456
    %v526 = vpop.f32.mrb[0].mxu0
    %v527 = vadd.f32 %v386, %v526
    %v528 = vpop.f32.mrb[0].mxu0
    %v529 = vadd.f32 %v388, %v528
    %v530 = vpop.f32.mrb[0].mxu0
    %v531 = vadd.f32 %v390, %v530
    %v532 = vpop.f32.mrb[0].mxu0
    %v533 = vadd.f32 %v392, %v532
    %534 = vmatprep.mubr.bf16.mxu0 0
    %535 = vmatmul.mubr.bf16.gmra.mrb[0].mxu0 %v458
    %v536 = vpop.f32.mrb[0].mxu0
    %v537 = vadd.f32 %v396, %v536
    %v538 = vpop.f32.mrb[0].mxu0
    %v539 = vadd.f32 %v398, %v538
    %v540 = vpop.f32.mrb[0].mxu0
    %v541 = vadd.f32 %v400, %v540
    %v542 = vpop.f32.mrb[0].mxu0
    %v543 = vadd.f32 %v402, %v542
    %544 = vmatprep.mubr.bf16.mxu0 0
    %545 = vmatmul.mubr.bf16.gmra.mrb[0].mxu0 %v460
    %v546 = vpop.f32.mrb[0].mxu0
    %v547 = vadd.f32 %v406, %v546
    %v548 = vpop.f32.mrb[0].mxu0
    %v549 = vadd.f32 %v408, %v548
    %v550 = vpop.f32.mrb[0].mxu0
    %v551 = vadd.f32 %v410, %v550
    %v552 = vpop.f32.mrb[0].mxu0
    %v553 = vadd.f32 %v412, %v552
    %554 = vmatprep.mubr.bf16.mxu0 0
    %555 = vmatmul.mubr.bf16.gmra.mrb[0].mxu0 %v462
    %v556 = vpop.f32.mrb[0].mxu0
    %v557 = vadd.f32 %v416, %v556
    %v558 = vpop.f32.mrb[0].mxu0
    %v559 = vadd.f32 %v418, %v558
    %v560 = vpop.f32.mrb[0].mxu0
    %v561 = vadd.f32 %v420, %v560
    %v562 = vpop.f32.mrb[0].mxu0
    %v563 = vadd.f32 %v422, %v562
    %564 = vmatprep.mubr.bf16.mxu0 0
    %565 = vmatmul.mubr.bf16.gmra.mrb[0].mxu0 %v464
    %v566 = vpop.f32.mrb[0].mxu0
    %v567 = vadd.f32 %v426, %v566
    %v568 = vpop.f32.mrb[0].mxu0
    %v569 = vadd.f32 %v428, %v568
    %v570 = vpop.f32.mrb[0].mxu0
    %v571 = vadd.f32 %v430, %v570
    %v572 = vpop.f32.mrb[0].mxu0
    %v573 = vadd.f32 %v432, %v572
    %574 = vdwg.mxu0
    %v575 = vld [vmem:[%s167] sm:$0xf]
    %v577 = vunpack.c.l.b16 %v171
    %v578 = vpack.c.b16 %v577, %v577
    %v580 = vunpack.c.l.b16 %v173
    %v581 = vpack.c.b16 %v580, %v580
    %v583 = vunpack.c.l.b16 %v175
    %v584 = vpack.c.b16 %v583, %v583
    %v586 = vunpack.c.l.b16 %v177
    %v587 = vpack.c.b16 %v586, %v586
    %v589 = vunpack.c.l.b16 %v179
    %v590 = vpack.c.b16 %v589, %v589
    %v592 = vunpack.c.l.b16 %v181
    %v593 = vpack.c.b16 %v592, %v592
    %v595 = vunpack.c.l.b16 %v575
    %v596 = vpack.c.b16 %v595, %v595
    %v599 = vsel %vm204, %v170, %v578
    %v602 = vsel %vm204, %v172, %v581
    %v605 = vsel %vm204, %v174, %v584
    %v608 = vsel %vm204, %v176, %v587
    %v611 = vsel %vm204, %v178, %v590
    %v614 = vsel %vm204, %v180, %v593
    %v617 = vsel %vm204, %v182, %v596
    %s618 = scalar_lea.vmem %s1, 64
    %v619 = vld [vmem:[%s618] sm:$0xff]
    %v620 = vld [vmem:[%s618 + $0x8] sm:$0xff]
    %v621 = vld [vmem:[%s618 + $0x10] sm:$0xff]
    %v622 = vld [vmem:[%s618 + $0x18] sm:$0x33]
    %v627 = vunpack.c.l.b16 %v619
    %v628 = vunpack.c.h.b16 %v619
    %v629 = vunpack.c.l.b16 %v620
    %v630 = vunpack.c.h.b16 %v620
    %v631 = vunpack.c.l.b16 %v621
    %v632 = vunpack.c.h.b16 %v621
    %v633 = vunpack.c.l.b16 %v622
    %v634 = vunpack.c.h.b16 %v622
    %v635 = vpack.c.b16 %v629, %v627
    %v636 = vpack.c.b16 %v630, %v628
    %v637 = vpack.c.b16 %v633, %v631
    %v638 = vpack.c.b16 %v634, %v632
    %v641 = vsel %vm309, %v599, 0
    %v643 = vsel %vm309, %v602, 0
    %v645 = vsel %vm309, %v605, 0
    %v647 = vsel %vm309, %v608, 0
    %v649 = vsel %vm309, %v611, 0
    %v651 = vsel %vm309, %v614, 0
    %v653 = vsel %vm309, %v617, 0
    %v656 = vsel %vm324, %v637, 0
    %v659 = vsel %vm324, %v638, 0
    %661 = vmatprep.subr.bf16.mxu0 %v636
    %662 = vmatpush1.bf16.msra.mxu0 %v635
    %663 = vmatprep.subr.bf16.mxu0 %v659
    %664 = vmatpush1.bf16.msra.mxu0 %v656
    %665 = vmatprep.subr.bf16.mxu0 0
    %666 = vmatpush1.bf16.msra.mxu0 0
    %667 = vmatprep.subr.bf16.mxu0 0
    %668 = vmatpush1.bf16.msra.mxu0 0
    %669 = vmatprep.subr.bf16.mxu0 0
    %670 = vmatpush1.bf16.msra.mxu0 0
    %671 = vmatprep.subr.bf16.mxu0 0
    %672 = vmatpush1.bf16.msra.mxu0 0
    %673 = vmatprep.subr.bf16.mxu0 0
    %674 = vmatpush1.bf16.msra.mxu0 0
    %675 = vmatprep.subr.bf16.mxu0 0
    %676 = vmatpush1.bf16.msra.mxu0 0
    %677 = vmatprep.subr.bf16.mxu0 0
    %678 = vmatpush1.bf16.msra.mxu0 0
    %679 = vmatprep.subr.bf16.mxu0 0
    %680 = vmatpush1.bf16.msra.mxu0 0
    %681 = vmatprep.subr.bf16.mxu0 0
    %682 = vmatpush1.bf16.msra.mxu0 0
    %683 = vmatprep.subr.bf16.mxu0 0
    %684 = vmatpush1.bf16.msra.mxu0 0
    %685 = vmatprep.subr.bf16.mxu0 0
    %686 = vmatpush1.bf16.msra.mxu0 0
    %687 = vmatprep.subr.bf16.mxu0 0
    %688 = vmatpush1.bf16.msra.mxu0 0
    %689 = vmatprep.subr.bf16.mxu0 0
    %690 = vmatpush1.bf16.msra.mxu0 0
    %691 = vmatprep.subr.bf16.mxu0 0
    %692 = vmatpush1.bf16.msra.mxu0 0
    %693 = vmatprep.mubr.bf16.mxu0 0
    %694 = vmatmul.mubr.bf16.gmra.mrb[0].mxu0 %v641
    %v695 = vpop.f32.mrb[0].mxu0
    %v696 = vadd.f32 0.0, %v695
    %v697 = vpop.f32.mrb[0].mxu0
    %v698 = vadd.f32 0.0, %v697
    %v699 = vpop.f32.mrb[0].mxu0
    %v700 = vadd.f32 0.0, %v699
    %v701 = vpop.f32.mrb[0].mxu0
    %v702 = vadd.f32 0.0, %v701
    %703 = vmatprep.mubr.bf16.mxu0 0
    %704 = vmatmul.mubr.bf16.gmra.mrb[0].mxu0 %v643
    %v705 = vpop.f32.mrb[0].mxu0
    %v706 = vadd.f32 0.0, %v705
    %v707 = vpop.f32.mrb[0].mxu0
    %v708 = vadd.f32 0.0, %v707
    %v709 = vpop.f32.mrb[0].mxu0
    %v710 = vadd.f32 0.0, %v709
    %v711 = vpop.f32.mrb[0].mxu0
    %v712 = vadd.f32 0.0, %v711
    %713 = vmatprep.mubr.bf16.mxu0 0
    %714 = vmatmul.mubr.bf16.gmra.mrb[0].mxu0 %v645
    %v715 = vpop.f32.mrb[0].mxu0
    %v716 = vadd.f32 0.0, %v715
    %v717 = vpop.f32.mrb[0].mxu0
    %v718 = vadd.f32 0.0, %v717
    %v719 = vpop.f32.mrb[0].mxu0
    %v720 = vadd.f32 0.0, %v719
    %v721 = vpop.f32.mrb[0].mxu0
    %v722 = vadd.f32 0.0, %v721
    %723 = vmatprep.mubr.bf16.mxu0 0
    %724 = vmatmul.mubr.bf16.gmra.mrb[0].mxu0 %v647
    %v725 = vpop.f32.mrb[0].mxu0
    %v726 = vadd.f32 0.0, %v725
    %v727 = vpop.f32.mrb[0].mxu0
    %v728 = vadd.f32 0.0, %v727
    %v729 = vpop.f32.mrb[0].mxu0
    %v730 = vadd.f32 0.0, %v729
    %v731 = vpop.f32.mrb[0].mxu0
    %v732 = vadd.f32 0.0, %v731
    %733 = vmatprep.mubr.bf16.mxu0 0
    %734 = vmatmul.mubr.bf16.gmra.mrb[0].mxu0 %v649
    %v735 = vpop.f32.mrb[0].mxu0
    %v736 = vadd.f32 0.0, %v735
    %v737 = vpop.f32.mrb[0].mxu0
    %v738 = vadd.f32 0.0, %v737
    %v739 = vpop.f32.mrb[0].mxu0
    %v740 = vadd.f32 0.0, %v739
    %v741 = vpop.f32.mrb[0].mxu0
    %v742 = vadd.f32 0.0, %v741
    %743 = vmatprep.mubr.bf16.mxu0 0
    %744 = vmatmul.mubr.bf16.gmra.mrb[0].mxu0 %v651
    %v745 = vpop.f32.mrb[0].mxu0
    %v746 = vadd.f32 0.0, %v745
    %v747 = vpop.f32.mrb[0].mxu0
    %v748 = vadd.f32 0.0, %v747
    %v749 = vpop.f32.mrb[0].mxu0
    %v750 = vadd.f32 0.0, %v749
    %v751 = vpop.f32.mrb[0].mxu0
    %v752 = vadd.f32 0.0, %v751
    %753 = vmatprep.mubr.bf16.mxu0 0
    %754 = vmatmul.mubr.bf16.gmra.mrb[0].mxu0 %v653
    %v755 = vpop.f32.mrb[0].mxu0
    %v756 = vadd.f32 0.0, %v755
    %v757 = vpop.f32.mrb[0].mxu0
    %v758 = vadd.f32 0.0, %v757
    %v759 = vpop.f32.mrb[0].mxu0
    %v760 = vadd.f32 0.0, %v759
    %v761 = vpop.f32.mrb[0].mxu0
    %v762 = vadd.f32 0.0, %v761
    %763 = vdwg.mxu0
    %v764 = vadd.f32 %v507, %v696
    %v765 = vadd.f32 %v509, %v698
    %v766 = vadd.f32 %v511, %v700
    %v767 = vadd.f32 %v513, %v702
    %v768 = vadd.f32 %v517, %v706
    %v769 = vadd.f32 %v519, %v708
    %v770 = vadd.f32 %v521, %v710
    %v771 = vadd.f32 %v523, %v712
    %v772 = vadd.f32 %v527, %v716
    %v773 = vadd.f32 %v529, %v718
    %v774 = vadd.f32 %v531, %v720
    %v775 = vadd.f32 %v533, %v722
    %v776 = vadd.f32 %v537, %v726
    %v777 = vadd.f32 %v539, %v728
    %v778 = vadd.f32 %v541, %v730
    %v779 = vadd.f32 %v543, %v732
    %v780 = vadd.f32 %v547, %v736
    %v781 = vadd.f32 %v549, %v738
    %v782 = vadd.f32 %v551, %v740
    %v783 = vadd.f32 %v553, %v742
    %v784 = vadd.f32 %v557, %v746
    %v785 = vadd.f32 %v559, %v748
    %v786 = vadd.f32 %v561, %v750
    %v787 = vadd.f32 %v563, %v752
    %v788 = vadd.f32 %v567, %v756
    %v789 = vadd.f32 %v569, %v758
    %v790 = vadd.f32 %v571, %v760
    %v791 = vadd.f32 %v573, %v762
    %v792 = vld [vmem:[%s2] sm:$0x3]
    %v794 = vlaneseq
    %v795 = vshrl.u32 %v794, 7
    %v796 = vsub.s32 0, %v795
    %v797 = vrot.slane %v792, %v796
    %v798 = vlaneseq
    %v799 = vshrl.u32 %v798, 7
    %v800 = vsub.s32 1, %v799
    %v801 = vrot.slane %v792, %v800
    %v804 = vadd.f32 %v764, %v797
    %v805 = vadd.f32 %v765, %v801
    %v806 = vadd.f32 %v766, %v797
    %v807 = vadd.f32 %v767, %v801
    %v808 = vadd.f32 %v768, %v797
    %v809 = vadd.f32 %v769, %v801
    %v810 = vadd.f32 %v770, %v797
    %v811 = vadd.f32 %v771, %v801
    %v812 = vadd.f32 %v772, %v797
    %v813 = vadd.f32 %v773, %v801
    %v814 = vadd.f32 %v774, %v797
    %v815 = vadd.f32 %v775, %v801
    %v816 = vadd.f32 %v776, %v797
    %v817 = vadd.f32 %v777, %v801
    %v818 = vadd.f32 %v778, %v797
    %v819 = vadd.f32 %v779, %v801
    %v820 = vadd.f32 %v780, %v797
    %v821 = vadd.f32 %v781, %v801
    %v822 = vadd.f32 %v782, %v797
    %v823 = vadd.f32 %v783, %v801
    %v824 = vadd.f32 %v784, %v797
    %v825 = vadd.f32 %v785, %v801
    %v826 = vadd.f32 %v786, %v797
    %v827 = vadd.f32 %v787, %v801
    %v828 = vadd.f32 %v788, %v797
    %v829 = vadd.f32 %v789, %v801
    %v830 = vadd.f32 %v790, %v797
    %v831 = vadd.f32 %v791, %v801
    %v832 = vmax.f32 %v804, 0.0
    %v833 = vmax.f32 %v805, 0.0
    %v834 = vmax.f32 %v806, 0.0
    %v835 = vmax.f32 %v807, 0.0
    %v836 = vmax.f32 %v808, 0.0
    %v837 = vmax.f32 %v809, 0.0
    %v838 = vmax.f32 %v810, 0.0
    %v839 = vmax.f32 %v811, 0.0
    %v840 = vmax.f32 %v812, 0.0
    %v841 = vmax.f32 %v813, 0.0
    %v842 = vmax.f32 %v814, 0.0
    %v843 = vmax.f32 %v815, 0.0
    %v844 = vmax.f32 %v816, 0.0
    %v845 = vmax.f32 %v817, 0.0
    %v846 = vmax.f32 %v818, 0.0
    %v847 = vmax.f32 %v819, 0.0
    %v848 = vmax.f32 %v820, 0.0
    %v849 = vmax.f32 %v821, 0.0
    %v850 = vmax.f32 %v822, 0.0
    %v851 = vmax.f32 %v823, 0.0
    %v852 = vmax.f32 %v824, 0.0
    %v853 = vmax.f32 %v825, 0.0
    %v854 = vmax.f32 %v826, 0.0
    %v855 = vmax.f32 %v827, 0.0
    %v856 = vmax.f32 %v828, 0.0
    %v857 = vmax.f32 %v829, 0.0
    %v858 = vmax.f32 %v830, 0.0
    %v859 = vmax.f32 %v831, 0.0
    %vm860 = vcmask 785412
    %vm861 = vmor %vm860, %vm204
    %862 = vst.msk [vmem:[#allocation3] sm:$0xff] %vm861, 0
    %v863 = vpack.c.bf16 %v832, %v832
    %v864 = vpack.c.bf16 %v833, %v833
    %v867 = vunpack.c.l.b16 %v863
    %v868 = vunpack.c.l.b16 %v864
    %v869 = vpack.c.b16 %v868, %v867
    %s871 = scalar_lea.vmem [#allocation3], 8
    %872 = vst.msk [vmem:[%s871] sm:$0xff] %vm861, %v869
    %v873 = vpack.c.bf16 %v834, %v834
    %v874 = vpack.c.bf16 %v835, %v835
    %v877 = vunpack.c.l.b16 %v873
    %v878 = vunpack.c.l.b16 %v874
    %v879 = vpack.c.b16 %v878, %v877
    %s881 = scalar_lea.vmem [#allocation3], 16
    %882 = vst.msk [vmem:[%s881] sm:$0xff] %vm861, %v879
    %v883 = vpack.c.bf16 %v836, %v836
    %v884 = vpack.c.bf16 %v837, %v837
    %v887 = vunpack.c.l.b16 %v883
    %v888 = vunpack.c.l.b16 %v884
    %v889 = vpack.c.b16 %v888, %v887
    %s891 = scalar_lea.vmem [#allocation3], 24
    %892 = vst.msk [vmem:[%s891] sm:$0xff] %vm861, %v889
    %v893 = vpack.c.bf16 %v838, %v838
    %v894 = vpack.c.bf16 %v839, %v839
    %v897 = vunpack.c.l.b16 %v893
    %v898 = vunpack.c.l.b16 %v894
    %v899 = vpack.c.b16 %v898, %v897
    %s901 = scalar_lea.vmem [#allocation3], 32
    %902 = vst.msk [vmem:[%s901] sm:$0xff] %vm861, %v899
    %v903 = vpack.c.bf16 %v840, %v840
    %v904 = vpack.c.bf16 %v841, %v841
    %v907 = vunpack.c.l.b16 %v903
    %v908 = vunpack.c.l.b16 %v904
    %v909 = vpack.c.b16 %v908, %v907
    %s911 = scalar_lea.vmem [#allocation3], 40
    %912 = vst.msk [vmem:[%s911] sm:$0xff] %vm861, %v909
    %v913 = vpack.c.bf16 %v842, %v842
    %v914 = vpack.c.bf16 %v843, %v843
    %v917 = vunpack.c.l.b16 %v913
    %v918 = vunpack.c.l.b16 %v914
    %v919 = vpack.c.b16 %v918, %v917
    %s921 = scalar_lea.vmem [#allocation3], 48
    %922 = vst.msk [vmem:[%s921] sm:$0xff] %vm861, %v919
    %v923 = vpack.c.bf16 %v844, %v844
    %v924 = vpack.c.bf16 %v845, %v845
    %v927 = vunpack.c.l.b16 %v923
    %v928 = vunpack.c.l.b16 %v924
    %v929 = vpack.c.b16 %v928, %v927
    %s931 = scalar_lea.vmem [#allocation3], 56
    %932 = vst.msk [vmem:[%s931] sm:$0xff] %vm861, %v929
    %v933 = vpack.c.bf16 %v846, %v846
    %v934 = vpack.c.bf16 %v847, %v847
    %v937 = vunpack.c.l.b16 %v933
    %v938 = vunpack.c.l.b16 %v934
    %v939 = vpack.c.b16 %v938, %v937
    %s941 = scalar_lea.vmem [#allocation3], 64
    %942 = vst.msk [vmem:[%s941] sm:$0xff] %vm861, %v939
    %v943 = vpack.c.bf16 %v848, %v848
    %v944 = vpack.c.bf16 %v849, %v849
    %v947 = vunpack.c.l.b16 %v943
    %v948 = vunpack.c.l.b16 %v944
    %v949 = vpack.c.b16 %v948, %v947
    %s951 = scalar_lea.vmem [#allocation3], 72
    %952 = vst.msk [vmem:[%s951] sm:$0xff] %vm861, %v949
    %v953 = vpack.c.bf16 %v850, %v850
    %v954 = vpack.c.bf16 %v851, %v851
    %v957 = vunpack.c.l.b16 %v953
    %v958 = vunpack.c.l.b16 %v954
    %v959 = vpack.c.b16 %v958, %v957
    %s961 = scalar_lea.vmem [#allocation3], 80
    %962 = vst.msk [vmem:[%s961] sm:$0xff] %vm861, %v959
    %v963 = vpack.c.bf16 %v852, %v852
    %v964 = vpack.c.bf16 %v853, %v853
    %v967 = vunpack.c.l.b16 %v963
    %v968 = vunpack.c.l.b16 %v964
    %v969 = vpack.c.b16 %v968, %v967
    %s971 = scalar_lea.vmem [#allocation3], 88
    %972 = vst.msk [vmem:[%s971] sm:$0xff] %vm861, %v969
    %v973 = vpack.c.bf16 %v854, %v854
    %v974 = vpack.c.bf16 %v855, %v855
    %v977 = vunpack.c.l.b16 %v973
    %v978 = vunpack.c.l.b16 %v974
    %v979 = vpack.c.b16 %v978, %v977
    %s981 = scalar_lea.vmem [#allocation3], 96
    %982 = vst.msk [vmem:[%s981] sm:$0xff] %vm861, %v979
    %v983 = vpack.c.bf16 %v856, %v856
    %v984 = vpack.c.bf16 %v857, %v857
    %v987 = vunpack.c.l.b16 %v983
    %v988 = vunpack.c.l.b16 %v984
    %v989 = vpack.c.b16 %v988, %v987
    %s991 = scalar_lea.vmem [#allocation3], 104
    %992 = vst.msk [vmem:[%s991] sm:$0xff] %vm861, %v989
    %v993 = vpack.c.bf16 %v858, %v858
    %v994 = vpack.c.bf16 %v859, %v859
    %v997 = vunpack.c.l.b16 %v993
    %v998 = vunpack.c.l.b16 %v994
    %v999 = vpack.c.b16 %v998, %v997
    %s1001 = scalar_lea.vmem [#allocation3], 112
    %1002 = vst.msk [vmem:[%s1001] sm:$0xff] %vm861, %v999
    %v1003 = vld [vmem:[#allocation3] sm:$0xff]
    %v1004 = vld [vmem:[%s881] sm:$0xff]
    %v1005 = vld [vmem:[%s901] sm:$0xff]
    %v1006 = vld [vmem:[%s921] sm:$0xff]
    %v1007 = vld [vmem:[%s941] sm:$0xff]
    %v1008 = vld [vmem:[%s961] sm:$0xff]
    %v1009 = vld [vmem:[%s981] sm:$0xff]
    %v1011 = vunpack.c.l.b16 %v1003
    %v1012 = vunpack.c.h.b16 %v1003
    %v1013 = vpack.c.b16 %v1011, %v1011
    %v1014 = vpack.c.b16 %v1012, %v1012
    %v1016 = vunpack.c.l.b16 %v1004
    %v1017 = vunpack.c.h.b16 %v1004
    %v1018 = vpack.c.b16 %v1016, %v1016
    %v1019 = vpack.c.b16 %v1017, %v1017
    %v1021 = vunpack.c.l.b16 %v1005
    %v1022 = vunpack.c.h.b16 %v1005
    %v1023 = vpack.c.b16 %v1021, %v1021
    %v1024 = vpack.c.b16 %v1022, %v1022
    %v1026 = vunpack.c.l.b16 %v1006
    %v1027 = vunpack.c.h.b16 %v1006
    %v1028 = vpack.c.b16 %v1026, %v1026
    %v1029 = vpack.c.b16 %v1027, %v1027
    %v1031 = vunpack.c.l.b16 %v1007
    %v1032 = vunpack.c.h.b16 %v1007
    %v1033 = vpack.c.b16 %v1031, %v1031
    %v1034 = vpack.c.b16 %v1032, %v1032
    %v1036 = vunpack.c.l.b16 %v1008
    %v1037 = vunpack.c.h.b16 %v1008
    %v1038 = vpack.c.b16 %v1036, %v1036
    %v1039 = vpack.c.b16 %v1037, %v1037
    %v1041 = vunpack.c.l.b16 %v1009
    %v1042 = vunpack.c.h.b16 %v1009
    %v1043 = vpack.c.b16 %v1041, %v1041
    %v1044 = vpack.c.b16 %v1042, %v1042
    %v1048 = vsel %vm204, %v1013, %v1018
    %v1052 = vsel %vm204, %v1014, %v1019
    %v1055 = vsel %vm204, %v1023, %v1028
    %v1059 = vsel %vm204, %v1024, %v1029
    %v1062 = vsel %vm204, %v1033, %v1038
    %v1066 = vsel %vm204, %v1034, %v1039
    %v1067 = vld [vmem:[%s3] sm:$0xf]
    %v1068 = vld [vmem:[%s3 + $0x4] sm:$0xf]
    %v1069 = vld [vmem:[%s3 + $0x8] sm:$0xf]
    %v1070 = vld [vmem:[%s3 + $0xc] sm:$0xf]
    %v1071 = vld [vmem:[%s3 + $0x10] sm:$0xf]
    %v1072 = vld [vmem:[%s3 + $0x14] sm:$0xf]
    %v1073 = vld [vmem:[%s3 + $0x18] sm:$0xf]
    %v1074 = vld [vmem:[%s3 + $0x1c] sm:$0xf]
    %v1075 = vld [vmem:[%s3 + $0x20] sm:$0xf]
    %v1076 = vld [vmem:[%s3 + $0x24] sm:$0xf]
    %v1077 = vld [vmem:[%s3 + $0x28] sm:$0xf]
    %v1078 = vld [vmem:[%s3 + $0x2c] sm:$0xf]
    %v1079 = vld [vmem:[%s3 + $0x30] sm:$0xf]
    %v1080 = vld [vmem:[%s3 + $0x34] sm:$0xf]
    %v1081 = vld [vmem:[%s3 + $0x38] sm:$0xf]
    %v1082 = vld [vmem:[%s3 + $0x3c] sm:$0xf]
    %v1083 = vld [vmem:[%s3 + $0x40] sm:$0xf]
    %v1084 = vld [vmem:[%s3 + $0x44] sm:$0xf]
    %v1085 = vld [vmem:[%s3 + $0x48] sm:$0xf]
    %v1086 = vld [vmem:[%s3 + $0x4c] sm:$0xf]
    %v1087 = vld [vmem:[%s3 + $0x50] sm:$0xf]
    %v1088 = vld [vmem:[%s3 + $0x54] sm:$0xf]
    %v1089 = vld [vmem:[%s3 + $0x58] sm:$0xf]
    %v1090 = vld [vmem:[%s3 + $0x5c] sm:$0xf]
    %v1091 = vld [vmem:[%s3 + $0x60] sm:$0xf]
    %v1092 = vld [vmem:[%s3 + $0x64] sm:$0xf]
    %v1093 = vld [vmem:[%s3 + $0x68] sm:$0xf]
    %v1094 = vld [vmem:[%s3 + $0x6c] sm:$0xf]
    %v1095 = vld [vmem:[%s871] sm:$0xff]
    %v1096 = vld [vmem:[%s891] sm:$0xff]
    %v1097 = vld [vmem:[%s911] sm:$0xff]
    %v1098 = vld [vmem:[%s931] sm:$0xff]
    %v1099 = vld [vmem:[%s951] sm:$0xff]
    %v1100 = vld [vmem:[%s971] sm:$0xff]
    %v1101 = vld [vmem:[%s991] sm:$0xff]
    %v1103 = vunpack.c.l.b16 %v1095
    %v1104 = vunpack.c.h.b16 %v1095
    %v1105 = vpack.c.b16 %v1103, %v1103
    %v1106 = vpack.c.b16 %v1104, %v1104
    %v1108 = vunpack.c.l.b16 %v1096
    %v1109 = vunpack.c.h.b16 %v1096
    %v1110 = vpack.c.b16 %v1108, %v1108
    %v1111 = vpack.c.b16 %v1109, %v1109
    %v1113 = vunpack.c.l.b16 %v1097
    %v1114 = vunpack.c.h.b16 %v1097
    %v1115 = vpack.c.b16 %v1113, %v1113
    %v1116 = vpack.c.b16 %v1114, %v1114
    %v1118 = vunpack.c.l.b16 %v1098
    %v1119 = vunpack.c.h.b16 %v1098
    %v1120 = vpack.c.b16 %v1118, %v1118
    %v1121 = vpack.c.b16 %v1119, %v1119
    %v1123 = vunpack.c.l.b16 %v1099
    %v1124 = vunpack.c.h.b16 %v1099
    %v1125 = vpack.c.b16 %v1123, %v1123
    %v1126 = vpack.c.b16 %v1124, %v1124
    %v1128 = vunpack.c.l.b16 %v1100
    %v1129 = vunpack.c.h.b16 %v1100
    %v1130 = vpack.c.b16 %v1128, %v1128
    %v1131 = vpack.c.b16 %v1129, %v1129
    %v1133 = vunpack.c.l.b16 %v1101
    %v1134 = vunpack.c.h.b16 %v1101
    %v1135 = vpack.c.b16 %v1133, %v1133
    %v1136 = vpack.c.b16 %v1134, %v1134
    %v1140 = vsel %vm204, %v1105, %v1110
    %v1144 = vsel %vm204, %v1106, %v1111
    %v1147 = vsel %vm204, %v1115, %v1120
    %v1151 = vsel %vm204, %v1116, %v1121
    %v1154 = vsel %vm204, %v1125, %v1130
    %v1158 = vsel %vm204, %v1126, %v1131
    %s1159 = scalar_lea.vmem %s3, 112
    %v1160 = vld [vmem:[%s1159] sm:$0xf]
    %v1161 = vld [vmem:[%s1159 + $0x4] sm:$0xf]
    %v1162 = vld [vmem:[%s1159 + $0x8] sm:$0xf]
    %v1163 = vld [vmem:[%s1159 + $0xc] sm:$0xf]
    %v1164 = vld [vmem:[%s1159 + $0x10] sm:$0xf]
    %v1165 = vld [vmem:[%s1159 + $0x14] sm:$0xf]
    %v1166 = vld [vmem:[%s1159 + $0x18] sm:$0xf]
    %v1167 = vld [vmem:[%s1159 + $0x1c] sm:$0xf]
    %v1168 = vld [vmem:[%s1159 + $0x20] sm:$0xf]
    %v1169 = vld [vmem:[%s1159 + $0x24] sm:$0xf]
    %v1170 = vld [vmem:[%s1159 + $0x28] sm:$0xf]
    %v1171 = vld [vmem:[%s1159 + $0x2c] sm:$0xf]
    %v1172 = vld [vmem:[%s1159 + $0x30] sm:$0xf]
    %v1173 = vld [vmem:[%s1159 + $0x34] sm:$0xf]
    %v1174 = vld [vmem:[%s1159 + $0x38] sm:$0xf]
    %v1175 = vld [vmem:[%s1159 + $0x3c] sm:$0xf]
    %v1176 = vld [vmem:[%s1159 + $0x40] sm:$0xf]
    %v1177 = vld [vmem:[%s1159 + $0x44] sm:$0xf]
    %v1178 = vld [vmem:[%s1159 + $0x48] sm:$0xf]
    %v1179 = vld [vmem:[%s1159 + $0x4c] sm:$0xf]
    %v1180 = vld [vmem:[%s1159 + $0x50] sm:$0xf]
    %v1181 = vld [vmem:[%s1159 + $0x54] sm:$0xf]
    %v1182 = vld [vmem:[%s1159 + $0x58] sm:$0xf]
    %v1183 = vld [vmem:[%s1159 + $0x5c] sm:$0xf]
    %v1184 = vld [vmem:[%s1159 + $0x60] sm:$0xf]
    %v1185 = vld [vmem:[%s1159 + $0x64] sm:$0xf]
    %v1186 = vld [vmem:[%s1159 + $0x68] sm:$0xf]
    %v1187 = vld [vmem:[%s1159 + $0x6c] sm:$0xf]
    %v1216 = vunpack.c.l.b16 %v1160
    %v1217 = vunpack.c.l.b16 %v1161
    %v1218 = vunpack.c.l.b16 %v1162
    %v1219 = vunpack.c.l.b16 %v1163
    %v1220 = vunpack.c.l.b16 %v1164
    %v1221 = vunpack.c.l.b16 %v1165
    %v1222 = vunpack.c.l.b16 %v1166
    %v1223 = vunpack.c.l.b16 %v1167
    %v1224 = vunpack.c.l.b16 %v1168
    %v1225 = vunpack.c.l.b16 %v1169
    %v1226 = vunpack.c.l.b16 %v1170
    %v1227 = vunpack.c.l.b16 %v1171
    %v1228 = vunpack.c.l.b16 %v1172
    %v1229 = vunpack.c.l.b16 %v1173
    %v1230 = vunpack.c.l.b16 %v1174
    %v1231 = vunpack.c.l.b16 %v1175
    %v1232 = vunpack.c.l.b16 %v1176
    %v1233 = vunpack.c.l.b16 %v1177
    %v1234 = vunpack.c.l.b16 %v1178
    %v1235 = vunpack.c.l.b16 %v1179
    %v1236 = vunpack.c.l.b16 %v1180
    %v1237 = vunpack.c.l.b16 %v1181
    %v1238 = vunpack.c.l.b16 %v1182
    %v1239 = vunpack.c.l.b16 %v1183
    %v1240 = vunpack.c.l.b16 %v1184
    %v1241 = vunpack.c.l.b16 %v1185
    %v1242 = vunpack.c.l.b16 %v1186
    %v1243 = vunpack.c.l.b16 %v1187
    %v1244 = vpack.c.b16 %v1217, %v1216
    %v1245 = vpack.c.b16 %v1219, %v1218
    %v1246 = vpack.c.b16 %v1221, %v1220
    %v1247 = vpack.c.b16 %v1223, %v1222
    %v1248 = vpack.c.b16 %v1225, %v1224
    %v1249 = vpack.c.b16 %v1227, %v1226
    %v1250 = vpack.c.b16 %v1229, %v1228
    %v1251 = vpack.c.b16 %v1231, %v1230
    %v1252 = vpack.c.b16 %v1233, %v1232
    %v1253 = vpack.c.b16 %v1235, %v1234
    %v1254 = vpack.c.b16 %v1237, %v1236
    %v1255 = vpack.c.b16 %v1239, %v1238
    %v1256 = vpack.c.b16 %v1241, %v1240
    %v1257 = vpack.c.b16 %v1243, %v1242
    %vm1272 = vcmask 785408
    %v1273 = vsel %vm1272, %v1144, 0
    %v1275 = vsel %vm1272, %v1151, 0
    %v1277 = vsel %vm1272, %v1158, 0
    %v1280 = vsel %vm1272, %v1136, 0
    %1282 = vmatprep.subr.bf16.mxu0 0
    %1283 = vmatpush1.bf16.msra.mxu0 %v1244
    %1284 = vmatprep.subr.bf16.mxu0 0
    %1285 = vmatpush1.bf16.msra.mxu0 %v1245
    %1286 = vmatprep.subr.bf16.mxu0 0
    %1287 = vmatpush1.bf16.msra.mxu0 %v1246
    %1288 = vmatprep.subr.bf16.mxu0 0
    %1289 = vmatpush1.bf16.msra.mxu0 %v1247
    %1290 = vmatprep.subr.bf16.mxu0 0
    %1291 = vmatpush1.bf16.msra.mxu0 %v1248
    %1292 = vmatprep.subr.bf16.mxu0 0
    %1293 = vmatpush1.bf16.msra.mxu0 %v1249
    %1294 = vmatprep.subr.bf16.mxu0 0
    %1295 = vmatpush1.bf16.msra.mxu0 %v1250
    %1296 = vmatprep.subr.bf16.mxu0 0
    %1297 = vmatpush1.bf16.msra.mxu0 %v1251
    %1298 = vmatprep.subr.bf16.mxu0 0
    %1299 = vmatpush1.bf16.msra.mxu0 %v1252
    %1300 = vmatprep.subr.bf16.mxu0 0
    %1301 = vmatpush1.bf16.msra.mxu0 %v1253
    %1302 = vmatprep.subr.bf16.mxu0 0
    %1303 = vmatpush1.bf16.msra.mxu0 %v1254
    %1304 = vmatprep.subr.bf16.mxu0 0
    %1305 = vmatpush1.bf16.msra.mxu0 %v1255
    %1306 = vmatprep.subr.bf16.mxu0 0
    %1307 = vmatpush1.bf16.msra.mxu0 %v1256
    %1308 = vmatprep.subr.bf16.mxu0 0
    %1309 = vmatpush1.bf16.msra.mxu0 %v1257
    %1310 = vmatprep.subr.bf16.mxu0 0
    %1311 = vmatpush1.bf16.msra.mxu0 0
    %1312 = vmatprep.subr.bf16.mxu0 0
    %1313 = vmatpush1.bf16.msra.mxu0 0
    %1314 = vmatprep.mubr.bf16.mxu0 %v1273
    %1315 = vmatmul.mubr.bf16.gmra.mrb[0].mxu0 %v1140
    %v1316 = vpop.f32.mrb[0].mxu0
    %v1317 = vadd.f32 0.0, %v1316
    %v1318 = vpop.f32.mrb[0].mxu0
    %v1319 = vpop.f32.mrb[0].mxu0
    %v1320 = vadd.f32 0.0, %v1319
    %v1321 = vpop.f32.mrb[0].mxu0
    %1322 = vmatprep.mubr.bf16.mxu0 %v1275
    %1323 = vmatmul.mubr.bf16.gmra.mrb[0].mxu0 %v1147
    %v1324 = vpop.f32.mrb[0].mxu0
    %v1325 = vadd.f32 0.0, %v1324
    %v1326 = vpop.f32.mrb[0].mxu0
    %v1327 = vpop.f32.mrb[0].mxu0
    %v1328 = vadd.f32 0.0, %v1327
    %v1329 = vpop.f32.mrb[0].mxu0
    %1330 = vmatprep.mubr.bf16.mxu0 %v1277
    %1331 = vmatmul.mubr.bf16.gmra.mrb[0].mxu0 %v1154
    %v1332 = vpop.f32.mrb[0].mxu0
    %v1333 = vadd.f32 0.0, %v1332
    %v1334 = vpop.f32.mrb[0].mxu0
    %v1335 = vpop.f32.mrb[0].mxu0
    %v1336 = vadd.f32 0.0, %v1335
    %v1337 = vpop.f32.mrb[0].mxu0
    %1338 = vmatprep.mubr.bf16.mxu0 %v1280
    %1339 = vmatmul.mubr.bf16.gmra.mrb[0].mxu0 %v1135
    %v1340 = vpop.f32.mrb[0].mxu0
    %v1341 = vadd.f32 0.0, %v1340
    %v1342 = vpop.f32.mrb[0].mxu0
    %v1343 = vpop.f32.mrb[0].mxu0
    %v1344 = vpop.f32.mrb[0].mxu0
    %1345 = vdwg.mxu0
    %v1374 = vunpack.c.l.b16 %v1067
    %v1375 = vunpack.c.l.b16 %v1068
    %v1376 = vunpack.c.l.b16 %v1069
    %v1377 = vunpack.c.l.b16 %v1070
    %v1378 = vunpack.c.l.b16 %v1071
    %v1379 = vunpack.c.l.b16 %v1072
    %v1380 = vunpack.c.l.b16 %v1073
    %v1381 = vunpack.c.l.b16 %v1074
    %v1382 = vunpack.c.l.b16 %v1075
    %v1383 = vunpack.c.l.b16 %v1076
    %v1384 = vunpack.c.l.b16 %v1077
    %v1385 = vunpack.c.l.b16 %v1078
    %v1386 = vunpack.c.l.b16 %v1079
    %v1387 = vunpack.c.l.b16 %v1080
    %v1388 = vunpack.c.l.b16 %v1081
    %v1389 = vunpack.c.l.b16 %v1082
    %v1390 = vunpack.c.l.b16 %v1083
    %v1391 = vunpack.c.l.b16 %v1084
    %v1392 = vunpack.c.l.b16 %v1085
    %v1393 = vunpack.c.l.b16 %v1086
    %v1394 = vunpack.c.l.b16 %v1087
    %v1395 = vunpack.c.l.b16 %v1088
    %v1396 = vunpack.c.l.b16 %v1089
    %v1397 = vunpack.c.l.b16 %v1090
    %v1398 = vunpack.c.l.b16 %v1091
    %v1399 = vunpack.c.l.b16 %v1092
    %v1400 = vunpack.c.l.b16 %v1093
    %v1401 = vunpack.c.l.b16 %v1094
    %v1402 = vpack.c.b16 %v1375, %v1374
    %v1403 = vpack.c.b16 %v1377, %v1376
    %v1404 = vpack.c.b16 %v1379, %v1378
    %v1405 = vpack.c.b16 %v1381, %v1380
    %v1406 = vpack.c.b16 %v1383, %v1382
    %v1407 = vpack.c.b16 %v1385, %v1384
    %v1408 = vpack.c.b16 %v1387, %v1386
    %v1409 = vpack.c.b16 %v1389, %v1388
    %v1410 = vpack.c.b16 %v1391, %v1390
    %v1411 = vpack.c.b16 %v1393, %v1392
    %v1412 = vpack.c.b16 %v1395, %v1394
    %v1413 = vpack.c.b16 %v1397, %v1396
    %v1414 = vpack.c.b16 %v1399, %v1398
    %v1415 = vpack.c.b16 %v1401, %v1400
    %v1430 = vsel %vm1272, %v1052, 0
    %v1432 = vsel %vm1272, %v1059, 0
    %v1434 = vsel %vm1272, %v1066, 0
    %v1437 = vsel %vm1272, %v1044, 0
    %1439 = vmatprep.subr.bf16.mxu0 0
    %1440 = vmatpush1.bf16.msra.mxu0 %v1402
    %1441 = vmatprep.subr.bf16.mxu0 0
    %1442 = vmatpush1.bf16.msra.mxu0 %v1403
    %1443 = vmatprep.subr.bf16.mxu0 0
    %1444 = vmatpush1.bf16.msra.mxu0 %v1404
    %1445 = vmatprep.subr.bf16.mxu0 0
    %1446 = vmatpush1.bf16.msra.mxu0 %v1405
    %1447 = vmatprep.subr.bf16.mxu0 0
    %1448 = vmatpush1.bf16.msra.mxu0 %v1406
    %1449 = vmatprep.subr.bf16.mxu0 0
    %1450 = vmatpush1.bf16.msra.mxu0 %v1407
    %1451 = vmatprep.subr.bf16.mxu0 0
    %1452 = vmatpush1.bf16.msra.mxu0 %v1408
    %1453 = vmatprep.subr.bf16.mxu0 0
    %1454 = vmatpush1.bf16.msra.mxu0 %v1409
    %1455 = vmatprep.subr.bf16.mxu0 0
    %1456 = vmatpush1.bf16.msra.mxu0 %v1410
    %1457 = vmatprep.subr.bf16.mxu0 0
    %1458 = vmatpush1.bf16.msra.mxu0 %v1411
    %1459 = vmatprep.subr.bf16.mxu0 0
    %1460 = vmatpush1.bf16.msra.mxu0 %v1412
    %1461 = vmatprep.subr.bf16.mxu0 0
    %1462 = vmatpush1.bf16.msra.mxu0 %v1413
    %1463 = vmatprep.subr.bf16.mxu0 0
    %1464 = vmatpush1.bf16.msra.mxu0 %v1414
    %1465 = vmatprep.subr.bf16.mxu0 0
    %1466 = vmatpush1.bf16.msra.mxu0 %v1415
    %1467 = vmatprep.subr.bf16.mxu0 0
    %1468 = vmatpush1.bf16.msra.mxu0 0
    %1469 = vmatprep.subr.bf16.mxu0 0
    %1470 = vmatpush1.bf16.msra.mxu0 0
    %1471 = vmatprep.mubr.bf16.mxu0 %v1430
    %1472 = vmatmul.mubr.bf16.gmra.mrb[0].mxu0 %v1048
    %v1473 = vpop.f32.mrb[0].mxu0
    %v1474 = vadd.f32 %v1317, %v1473
    %v1475 = vpop.f32.mrb[0].mxu0
    %v1476 = vpop.f32.mrb[0].mxu0
    %v1477 = vadd.f32 %v1320, %v1476
    %v1478 = vpop.f32.mrb[0].mxu0
    %1479 = vmatprep.mubr.bf16.mxu0 %v1432
    %1480 = vmatmul.mubr.bf16.gmra.mrb[0].mxu0 %v1055
    %v1481 = vpop.f32.mrb[0].mxu0
    %v1482 = vadd.f32 %v1325, %v1481
    %v1483 = vpop.f32.mrb[0].mxu0
    %v1484 = vpop.f32.mrb[0].mxu0
    %v1485 = vadd.f32 %v1328, %v1484
    %v1486 = vpop.f32.mrb[0].mxu0
    %1487 = vmatprep.mubr.bf16.mxu0 %v1434
    %1488 = vmatmul.mubr.bf16.gmra.mrb[0].mxu0 %v1062
    %v1489 = vpop.f32.mrb[0].mxu0
    %v1490 = vadd.f32 %v1333, %v1489
    %v1491 = vpop.f32.mrb[0].mxu0
    %v1492 = vpop.f32.mrb[0].mxu0
    %v1493 = vadd.f32 %v1336, %v1492
    %v1494 = vpop.f32.mrb[0].mxu0
    %1495 = vmatprep.mubr.bf16.mxu0 %v1437
    %1496 = vmatmul.mubr.bf16.gmra.mrb[0].mxu0 %v1043
    %v1497 = vpop.f32.mrb[0].mxu0
    %v1498 = vadd.f32 %v1341, %v1497
    %v1499 = vpop.f32.mrb[0].mxu0
    %v1500 = vpop.f32.mrb[0].mxu0
    %v1501 = vpop.f32.mrb[0].mxu0
    %1502 = vdwg.mxu0
    %v1503 = vld [vmem:[%s1001] sm:$0xff]
    %v1505 = vunpack.c.l.b16 %v1503
    %v1506 = vunpack.c.h.b16 %v1503
    %v1507 = vpack.c.b16 %v1505, %v1505
    %v1508 = vpack.c.b16 %v1506, %v1506
    %v1510 = vsel %vm204, %v1018, %v1023
    %v1512 = vsel %vm204, %v1019, %v1024
    %v1513 = vsel %vm204, %v1028, %v1033
    %v1515 = vsel %vm204, %v1029, %v1034
    %v1517 = vsel %vm204, %v1038, %v1043
    %v1519 = vsel %vm204, %v1039, %v1044
    %s1520 = scalar_lea.vmem %s3, 224
    %v1521 = vld [vmem:[%s1520] sm:$0xf]
    %v1522 = vld [vmem:[%s1520 + $0x4] sm:$0xf]
    %v1523 = vld [vmem:[%s1520 + $0x8] sm:$0xf]
    %v1524 = vld [vmem:[%s1520 + $0xc] sm:$0xf]
    %v1525 = vld [vmem:[%s1520 + $0x10] sm:$0xf]
    %v1526 = vld [vmem:[%s1520 + $0x14] sm:$0xf]
    %v1527 = vld [vmem:[%s1520 + $0x18] sm:$0xf]
    %v1528 = vld [vmem:[%s1520 + $0x1c] sm:$0xf]
    %v1529 = vld [vmem:[%s1520 + $0x20] sm:$0xf]
    %v1530 = vld [vmem:[%s1520 + $0x24] sm:$0xf]
    %v1531 = vld [vmem:[%s1520 + $0x28] sm:$0xf]
    %v1532 = vld [vmem:[%s1520 + $0x2c] sm:$0xf]
    %v1533 = vld [vmem:[%s1520 + $0x30] sm:$0xf]
    %v1534 = vld [vmem:[%s1520 + $0x34] sm:$0xf]
    %v1535 = vld [vmem:[%s1520 + $0x38] sm:$0xf]
    %v1536 = vld [vmem:[%s1520 + $0x3c] sm:$0xf]
    %v1537 = vld [vmem:[%s1520 + $0x40] sm:$0xf]
    %v1538 = vld [vmem:[%s1520 + $0x44] sm:$0xf]
    %v1539 = vld [vmem:[%s1520 + $0x48] sm:$0xf]
    %v1540 = vld [vmem:[%s1520 + $0x4c] sm:$0xf]
    %v1541 = vld [vmem:[%s1520 + $0x50] sm:$0xf]
    %v1542 = vld [vmem:[%s1520 + $0x54] sm:$0xf]
    %v1543 = vld [vmem:[%s1520 + $0x58] sm:$0xf]
    %v1544 = vld [vmem:[%s1520 + $0x5c] sm:$0xf]
    %v1545 = vld [vmem:[%s1520 + $0x60] sm:$0xf]
    %v1546 = vld [vmem:[%s1520 + $0x64] sm:$0xf]
    %v1547 = vld [vmem:[%s1520 + $0x68] sm:$0xf]
    %v1548 = vld [vmem:[%s1520 + $0x6c] sm:$0xf]
    %v1577 = vunpack.c.l.b16 %v1521
    %v1578 = vunpack.c.l.b16 %v1522
    %v1579 = vunpack.c.l.b16 %v1523
    %v1580 = vunpack.c.l.b16 %v1524
    %v1581 = vunpack.c.l.b16 %v1525
    %v1582 = vunpack.c.l.b16 %v1526
    %v1583 = vunpack.c.l.b16 %v1527
    %v1584 = vunpack.c.l.b16 %v1528
    %v1585 = vunpack.c.l.b16 %v1529
    %v1586 = vunpack.c.l.b16 %v1530
    %v1587 = vunpack.c.l.b16 %v1531
    %v1588 = vunpack.c.l.b16 %v1532
    %v1589 = vunpack.c.l.b16 %v1533
    %v1590 = vunpack.c.l.b16 %v1534
    %v1591 = vunpack.c.l.b16 %v1535
    %v1592 = vunpack.c.l.b16 %v1536
    %v1593 = vunpack.c.l.b16 %v1537
    %v1594 = vunpack.c.l.b16 %v1538
    %v1595 = vunpack.c.l.b16 %v1539
    %v1596 = vunpack.c.l.b16 %v1540
    %v1597 = vunpack.c.l.b16 %v1541
    %v1598 = vunpack.c.l.b16 %v1542
    %v1599 = vunpack.c.l.b16 %v1543
    %v1600 = vunpack.c.l.b16 %v1544
    %v1601 = vunpack.c.l.b16 %v1545
    %v1602 = vunpack.c.l.b16 %v1546
    %v1603 = vunpack.c.l.b16 %v1547
    %v1604 = vunpack.c.l.b16 %v1548
    %v1605 = vpack.c.b16 %v1578, %v1577
    %v1606 = vpack.c.b16 %v1580, %v1579
    %v1607 = vpack.c.b16 %v1582, %v1581
    %v1608 = vpack.c.b16 %v1584, %v1583
    %v1609 = vpack.c.b16 %v1586, %v1585
    %v1610 = vpack.c.b16 %v1588, %v1587
    %v1611 = vpack.c.b16 %v1590, %v1589
    %v1612 = vpack.c.b16 %v1592, %v1591
    %v1613 = vpack.c.b16 %v1594, %v1593
    %v1614 = vpack.c.b16 %v1596, %v1595
    %v1615 = vpack.c.b16 %v1598, %v1597
    %v1616 = vpack.c.b16 %v1600, %v1599
    %v1617 = vpack.c.b16 %v1602, %v1601
    %v1618 = vpack.c.b16 %v1604, %v1603
    %v1633 = vsel %vm1272, %v1512, 0
    %v1635 = vsel %vm1272, %v1515, 0
    %v1637 = vsel %vm1272, %v1519, 0
    %v1640 = vsel %vm1272, %v1508, 0
    %1642 = vmatprep.subr.bf16.mxu0 0
    %1643 = vmatpush1.bf16.msra.mxu0 %v1605
    %1644 = vmatprep.subr.bf16.mxu0 0
    %1645 = vmatpush1.bf16.msra.mxu0 %v1606
    %1646 = vmatprep.subr.bf16.mxu0 0
    %1647 = vmatpush1.bf16.msra.mxu0 %v1607
    %1648 = vmatprep.subr.bf16.mxu0 0
    %1649 = vmatpush1.bf16.msra.mxu0 %v1608
    %1650 = vmatprep.subr.bf16.mxu0 0
    %1651 = vmatpush1.bf16.msra.mxu0 %v1609
    %1652 = vmatprep.subr.bf16.mxu0 0
    %1653 = vmatpush1.bf16.msra.mxu0 %v1610
    %1654 = vmatprep.subr.bf16.mxu0 0
    %1655 = vmatpush1.bf16.msra.mxu0 %v1611
    %1656 = vmatprep.subr.bf16.mxu0 0
    %1657 = vmatpush1.bf16.msra.mxu0 %v1612
    %1658 = vmatprep.subr.bf16.mxu0 0
    %1659 = vmatpush1.bf16.msra.mxu0 %v1613
    %1660 = vmatprep.subr.bf16.mxu0 0
    %1661 = vmatpush1.bf16.msra.mxu0 %v1614
    %1662 = vmatprep.subr.bf16.mxu0 0
    %1663 = vmatpush1.bf16.msra.mxu0 %v1615
    %1664 = vmatprep.subr.bf16.mxu0 0
    %1665 = vmatpush1.bf16.msra.mxu0 %v1616
    %1666 = vmatprep.subr.bf16.mxu0 0
    %1667 = vmatpush1.bf16.msra.mxu0 %v1617
    %1668 = vmatprep.subr.bf16.mxu0 0
    %1669 = vmatpush1.bf16.msra.mxu0 %v1618
    %1670 = vmatprep.subr.bf16.mxu0 0
    %1671 = vmatpush1.bf16.msra.mxu0 0
    %1672 = vmatprep.subr.bf16.mxu0 0
    %1673 = vmatpush1.bf16.msra.mxu0 0
    %1674 = vmatprep.mubr.bf16.mxu0 %v1633
    %1675 = vmatmul.mubr.bf16.gmra.mrb[0].mxu0 %v1510
    %v1676 = vpop.f32.mrb[0].mxu0
    %v1677 = vadd.f32 0.0, %v1676
    %v1678 = vpop.f32.mrb[0].mxu0
    %v1679 = vpop.f32.mrb[0].mxu0
    %v1680 = vadd.f32 0.0, %v1679
    %v1681 = vpop.f32.mrb[0].mxu0
    %1682 = vmatprep.mubr.bf16.mxu0 %v1635
    %1683 = vmatmul.mubr.bf16.gmra.mrb[0].mxu0 %v1513
    %v1684 = vpop.f32.mrb[0].mxu0
    %v1685 = vadd.f32 0.0, %v1684
    %v1686 = vpop.f32.mrb[0].mxu0
    %v1687 = vpop.f32.mrb[0].mxu0
    %v1688 = vadd.f32 0.0, %v1687
    %v1689 = vpop.f32.mrb[0].mxu0
    %1690 = vmatprep.mubr.bf16.mxu0 %v1637
    %1691 = vmatmul.mubr.bf16.gmra.mrb[0].mxu0 %v1517
    %v1692 = vpop.f32.mrb[0].mxu0
    %v1693 = vadd.f32 0.0, %v1692
    %v1694 = vpop.f32.mrb[0].mxu0
    %v1695 = vpop.f32.mrb[0].mxu0
    %v1696 = vadd.f32 0.0, %v1695
    %v1697 = vpop.f32.mrb[0].mxu0
    %1698 = vmatprep.mubr.bf16.mxu0 %v1640
    %1699 = vmatmul.mubr.bf16.gmra.mrb[0].mxu0 %v1507
    %v1700 = vpop.f32.mrb[0].mxu0
    %v1701 = vadd.f32 0.0, %v1700
    %v1702 = vpop.f32.mrb[0].mxu0
    %v1703 = vpop.f32.mrb[0].mxu0
    %v1704 = vpop.f32.mrb[0].mxu0
    %1705 = vdwg.mxu0
    %v1706 = vadd.f32 %v1474, %v1677
    %v1707 = vadd.f32 %v1477, %v1680
    %v1708 = vadd.f32 %v1482, %v1685
    %v1709 = vadd.f32 %v1485, %v1688
    %v1710 = vadd.f32 %v1490, %v1693
    %v1711 = vadd.f32 %v1493, %v1696
    %v1712 = vadd.f32 %v1498, %v1701
    %v1713 = vld [vmem:[%s4] sm:$0x1]
    %v1715 = vlaneseq
    %v1716 = vshrl.u32 %v1715, 7
    %v1717 = vsub.s32 0, %v1716
    %v1718 = vrot.slane %v1713, %v1717
    %v1720 = vadd.f32 %v1706, %v1718
    %v1721 = vadd.f32 %v1707, %v1718
    %v1722 = vadd.f32 %v1708, %v1718
    %v1723 = vadd.f32 %v1709, %v1718
    %v1724 = vadd.f32 %v1710, %v1718
    %v1725 = vadd.f32 %v1711, %v1718
    %v1726 = vadd.f32 %v1712, %v1718
    %v1727 = vmax.f32 %v1720, 0.0
    %v1728 = vmax.f32 %v1721, 0.0
    %v1729 = vmax.f32 %v1722, 0.0
    %v1730 = vmax.f32 %v1723, 0.0
    %v1731 = vmax.f32 %v1724, 0.0
    %v1732 = vmax.f32 %v1725, 0.0
    %v1733 = vmax.f32 %v1726, 0.0
    %vm1734 = vcmask 912384
    %1735 = vst.msk [vmem:[#allocation4] sm:$0xf] %vm1734, 0
    %s1736 = scalar_lea.vmem [#allocation4], 32
    %1737 = vst.msk [vmem:[%s1736] sm:$0xf] %vm1734, 0
    %v1738 = vpack.c.bf16 %v1727, %v1727
    %s1739 = scalar_lea.vmem [#allocation4], 4
    %1740 = vst.msk [vmem:[%s1739] sm:$0xf] %vm1734, %v1738
    %v1741 = vpack.c.bf16 %v1728, %v1728
    %s1742 = scalar_lea.vmem [#allocation4], 8
    %1743 = vst.msk [vmem:[%s1742] sm:$0xf] %vm1734, %v1741
    %v1744 = vpack.c.bf16 %v1729, %v1729
    %s1745 = scalar_lea.vmem [#allocation4], 12
    %1746 = vst.msk [vmem:[%s1745] sm:$0xf] %vm1734, %v1744
    %v1747 = vpack.c.bf16 %v1730, %v1730
    %s1748 = scalar_lea.vmem [#allocation4], 16
    %1749 = vst.msk [vmem:[%s1748] sm:$0xf] %vm1734, %v1747
    %v1750 = vpack.c.bf16 %v1731, %v1731
    %s1751 = scalar_lea.vmem [#allocation4], 20
    %1752 = vst.msk [vmem:[%s1751] sm:$0xf] %vm1734, %v1750
    %v1753 = vpack.c.bf16 %v1732, %v1732
    %s1754 = scalar_lea.vmem [#allocation4], 24
    %1755 = vst.msk [vmem:[%s1754] sm:$0xf] %vm1734, %v1753
    %v1756 = vpack.c.bf16 %v1733, %v1733
    %s1757 = scalar_lea.vmem [#allocation4], 28
    %1758 = vst.msk [vmem:[%s1757] sm:$0xf] %vm1734, %v1756
    %v1759 = vld [vmem:[#allocation4] sm:$0xf]
    %v1760 = vld [vmem:[%s1742] sm:$0xf]
    %v1761 = vld [vmem:[%s1748] sm:$0xf]
    %v1762 = vld [vmem:[%s1754] sm:$0xf]
    %v1764 = vunpack.c.l.b16 %v1760
    %v1765 = vpack.c.b16 %v1764, %v1764
    %v1767 = vunpack.c.l.b16 %v1762
    %v1768 = vpack.c.b16 %v1767, %v1767
    %v1771 = vsel %vm204, %v1759, %v1765
    %v1774 = vsel %vm204, %v1761, %v1768
    %v1775 = vld [vmem:[%s5] sm:$0xf]
    %v1776 = vld [vmem:[%s5 + $0x4] sm:$0xf]
    %v1777 = vld [vmem:[%s5 + $0x8] sm:$0xf]
    %v1778 = vld [vmem:[%s5 + $0xc] sm:$0xf]
    %v1779 = vld [vmem:[%s5 + $0x10] sm:$0xf]
    %v1780 = vld [vmem:[%s5 + $0x14] sm:$0xf]
    %v1781 = vld [vmem:[%s5 + $0x18] sm:$0xf]
    %v1782 = vld [vmem:[%s5 + $0x1c] sm:$0xf]
    %v1783 = vld [vmem:[%s5 + $0x20] sm:$0xf]
    %v1784 = vld [vmem:[%s5 + $0x24] sm:$0xf]
    %v1785 = vld [vmem:[%s5 + $0x28] sm:$0xf]
    %v1786 = vld [vmem:[%s5 + $0x2c] sm:$0xf]
    %v1787 = vld [vmem:[%s5 + $0x30] sm:$0xf]
    %v1788 = vld [vmem:[%s5 + $0x34] sm:$0xf]
    %v1789 = vld [vmem:[%s1739] sm:$0xf]
    %v1790 = vld [vmem:[%s1745] sm:$0xf]
    %v1791 = vld [vmem:[%s1751] sm:$0xf]
    %v1792 = vld [vmem:[%s1757] sm:$0xf]
    %v1794 = vunpack.c.l.b16 %v1790
    %v1795 = vpack.c.b16 %v1794, %v1794
    %v1797 = vunpack.c.l.b16 %v1792
    %v1798 = vpack.c.b16 %v1797, %v1797
    %v1801 = vsel %vm204, %v1789, %v1795
    %v1804 = vsel %vm204, %v1791, %v1798
    %s1805 = scalar_lea.vmem %s5, 56
    %v1806 = vld [vmem:[%s1805] sm:$0xf]
    %v1807 = vld [vmem:[%s1805 + $0x4] sm:$0xf]
    %v1808 = vld [vmem:[%s1805 + $0x8] sm:$0xf]
    %v1809 = vld [vmem:[%s1805 + $0xc] sm:$0xf]
    %v1810 = vld [vmem:[%s1805 + $0x10] sm:$0xf]
    %v1811 = vld [vmem:[%s1805 + $0x14] sm:$0xf]
    %v1812 = vld [vmem:[%s1805 + $0x18] sm:$0xf]
    %v1813 = vld [vmem:[%s1805 + $0x1c] sm:$0xf]
    %v1814 = vld [vmem:[%s1805 + $0x20] sm:$0xf]
    %v1815 = vld [vmem:[%s1805 + $0x24] sm:$0xf]
    %v1816 = vld [vmem:[%s1805 + $0x28] sm:$0xf]
    %v1817 = vld [vmem:[%s1805 + $0x2c] sm:$0xf]
    %v1818 = vld [vmem:[%s1805 + $0x30] sm:$0xf]
    %v1819 = vld [vmem:[%s1805 + $0x34] sm:$0xf]
    %v1834 = vunpack.c.l.b16 %v1806
    %v1835 = vunpack.c.l.b16 %v1807
    %v1836 = vunpack.c.l.b16 %v1808
    %v1837 = vunpack.c.l.b16 %v1809
    %v1838 = vunpack.c.l.b16 %v1810
    %v1839 = vunpack.c.l.b16 %v1811
    %v1840 = vunpack.c.l.b16 %v1812
    %v1841 = vunpack.c.l.b16 %v1813
    %v1842 = vunpack.c.l.b16 %v1814
    %v1843 = vunpack.c.l.b16 %v1815
    %v1844 = vunpack.c.l.b16 %v1816
    %v1845 = vunpack.c.l.b16 %v1817
    %v1846 = vunpack.c.l.b16 %v1818
    %v1847 = vunpack.c.l.b16 %v1819
    %v1848 = vpack.c.b16 %v1835, %v1834
    %v1849 = vpack.c.b16 %v1837, %v1836
    %v1850 = vpack.c.b16 %v1839, %v1838
    %v1851 = vpack.c.b16 %v1841, %v1840
    %v1852 = vpack.c.b16 %v1843, %v1842
    %v1853 = vpack.c.b16 %v1845, %v1844
    %v1854 = vpack.c.b16 %v1847, %v1846
    %vm1862 = vcmask 916480
    %v1863 = vsel %vm1862, %v1801, 0
    %v1865 = vsel %vm1862, %v1804, 0
    %1867 = vmatprep.subr.bf16.mxu0 0
    %1868 = vmatpush1.bf16.msra.mxu0 %v1848
    %1869 = vmatprep.subr.bf16.mxu0 0
    %1870 = vmatpush1.bf16.msra.mxu0 %v1849
    %1871 = vmatprep.subr.bf16.mxu0 0
    %1872 = vmatpush1.bf16.msra.mxu0 %v1850
    %1873 = vmatprep.subr.bf16.mxu0 0
    %1874 = vmatpush1.bf16.msra.mxu0 %v1851
    %1875 = vmatprep.subr.bf16.mxu0 0
    %1876 = vmatpush1.bf16.msra.mxu0 %v1852
    %1877 = vmatprep.subr.bf16.mxu0 0
    %1878 = vmatpush1.bf16.msra.mxu0 %v1853
    %1879 = vmatprep.subr.bf16.mxu0 0
    %1880 = vmatpush1.bf16.msra.mxu0 %v1854
    %1881 = vmatprep.subr.bf16.mxu0 0
    %1882 = vmatpush1.bf16.msra.mxu0 0
    %1883 = vmatprep.subr.bf16.mxu0 0
    %1884 = vmatpush1.bf16.msra.mxu0 0
    %1885 = vmatprep.subr.bf16.mxu0 0
    %1886 = vmatpush1.bf16.msra.mxu0 0
    %1887 = vmatprep.subr.bf16.mxu0 0
    %1888 = vmatpush1.bf16.msra.mxu0 0
    %1889 = vmatprep.subr.bf16.mxu0 0
    %1890 = vmatpush1.bf16.msra.mxu0 0
    %1891 = vmatprep.subr.bf16.mxu0 0
    %1892 = vmatpush1.bf16.msra.mxu0 0
    %1893 = vmatprep.subr.bf16.mxu0 0
    %1894 = vmatpush1.bf16.msra.mxu0 0
    %1895 = vmatprep.subr.bf16.mxu0 0
    %1896 = vmatpush1.bf16.msra.mxu0 0
    %1897 = vmatprep.subr.bf16.mxu0 0
    %1898 = vmatpush1.bf16.msra.mxu0 0
    %1899 = vmatprep.mubr.bf16.mxu0 0
    %1900 = vmatmul.mubr.bf16.gmra.mrb[0].mxu0 %v1863
    %v1901 = vpop.f32.mrb[0].mxu0
    %v1902 = vadd.f32 0.0, %v1901
    %v1903 = vpop.f32.mrb[0].mxu0
    %v1904 = vpop.f32.mrb[0].mxu0
    %v1905 = vadd.f32 0.0, %v1904
    %v1906 = vpop.f32.mrb[0].mxu0
    %1907 = vmatprep.mubr.bf16.mxu0 0
    %1908 = vmatmul.mubr.bf16.gmra.mrb[0].mxu0 %v1865
    %v1909 = vpop.f32.mrb[0].mxu0
    %v1910 = vadd.f32 0.0, %v1909
    %v1911 = vpop.f32.mrb[0].mxu0
    %v1912 = vpop.f32.mrb[0].mxu0
    %v1913 = vadd.f32 0.0, %v1912
    %v1914 = vpop.f32.mrb[0].mxu0
    %1915 = vdwg.mxu0
    %v1930 = vunpack.c.l.b16 %v1775
    %v1931 = vunpack.c.l.b16 %v1776
    %v1932 = vunpack.c.l.b16 %v1777
    %v1933 = vunpack.c.l.b16 %v1778
    %v1934 = vunpack.c.l.b16 %v1779
    %v1935 = vunpack.c.l.b16 %v1780
    %v1936 = vunpack.c.l.b16 %v1781
    %v1937 = vunpack.c.l.b16 %v1782
    %v1938 = vunpack.c.l.b16 %v1783
    %v1939 = vunpack.c.l.b16 %v1784
    %v1940 = vunpack.c.l.b16 %v1785
    %v1941 = vunpack.c.l.b16 %v1786
    %v1942 = vunpack.c.l.b16 %v1787
    %v1943 = vunpack.c.l.b16 %v1788
    %v1944 = vpack.c.b16 %v1931, %v1930
    %v1945 = vpack.c.b16 %v1933, %v1932
    %v1946 = vpack.c.b16 %v1935, %v1934
    %v1947 = vpack.c.b16 %v1937, %v1936
    %v1948 = vpack.c.b16 %v1939, %v1938
    %v1949 = vpack.c.b16 %v1941, %v1940
    %v1950 = vpack.c.b16 %v1943, %v1942
    %v1958 = vsel %vm1862, %v1771, 0
    %v1960 = vsel %vm1862, %v1774, 0
    %1962 = vmatprep.subr.bf16.mxu0 0
    %1963 = vmatpush1.bf16.msra.mxu0 %v1944
    %1964 = vmatprep.subr.bf16.mxu0 0
    %1965 = vmatpush1.bf16.msra.mxu0 %v1945
    %1966 = vmatprep.subr.bf16.mxu0 0
    %1967 = vmatpush1.bf16.msra.mxu0 %v1946
    %1968 = vmatprep.subr.bf16.mxu0 0
    %1969 = vmatpush1.bf16.msra.mxu0 %v1947
    %1970 = vmatprep.subr.bf16.mxu0 0
    %1971 = vmatpush1.bf16.msra.mxu0 %v1948
    %1972 = vmatprep.subr.bf16.mxu0 0
    %1973 = vmatpush1.bf16.msra.mxu0 %v1949
    %1974 = vmatprep.subr.bf16.mxu0 0
    %1975 = vmatpush1.bf16.msra.mxu0 %v1950
    %1976 = vmatprep.subr.bf16.mxu0 0
    %1977 = vmatpush1.bf16.msra.mxu0 0
    %1978 = vmatprep.subr.bf16.mxu0 0
    %1979 = vmatpush1.bf16.msra.mxu0 0
    %1980 = vmatprep.subr.bf16.mxu0 0
    %1981 = vmatpush1.bf16.msra.mxu0 0
    %1982 = vmatprep.subr.bf16.mxu0 0
    %1983 = vmatpush1.bf16.msra.mxu0 0
    %1984 = vmatprep.subr.bf16.mxu0 0
    %1985 = vmatpush1.bf16.msra.mxu0 0
    %1986 = vmatprep.subr.bf16.mxu0 0
    %1987 = vmatpush1.bf16.msra.mxu0 0
    %1988 = vmatprep.subr.bf16.mxu0 0
    %1989 = vmatpush1.bf16.msra.mxu0 0
    %1990 = vmatprep.subr.bf16.mxu0 0
    %1991 = vmatpush1.bf16.msra.mxu0 0
    %1992 = vmatprep.subr.bf16.mxu0 0
    %1993 = vmatpush1.bf16.msra.mxu0 0
    %1994 = vmatprep.mubr.bf16.mxu0 0
    %1995 = vmatmul.mubr.bf16.gmra.mrb[0].mxu0 %v1958
    %v1996 = vpop.f32.mrb[0].mxu0
    %v1997 = vadd.f32 %v1902, %v1996
    %v1998 = vpop.f32.mrb[0].mxu0
    %v1999 = vpop.f32.mrb[0].mxu0
    %v2000 = vadd.f32 %v1905, %v1999
    %v2001 = vpop.f32.mrb[0].mxu0
    %2002 = vmatprep.mubr.bf16.mxu0 0
    %2003 = vmatmul.mubr.bf16.gmra.mrb[0].mxu0 %v1960
    %v2004 = vpop.f32.mrb[0].mxu0
    %v2005 = vadd.f32 %v1910, %v2004
    %v2006 = vpop.f32.mrb[0].mxu0
    %v2007 = vpop.f32.mrb[0].mxu0
    %v2008 = vadd.f32 %v1913, %v2007
    %v2009 = vpop.f32.mrb[0].mxu0
    %2010 = vdwg.mxu0
    %v2011 = vld [vmem:[%s1736] sm:$0xf]
    %v2013 = vunpack.c.l.b16 %v1761
    %v2014 = vpack.c.b16 %v2013, %v2013
    %v2016 = vunpack.c.l.b16 %v2011
    %v2017 = vpack.c.b16 %v2016, %v2016
    %v2020 = vsel %vm204, %v1760, %v2014
    %v2023 = vsel %vm204, %v1762, %v2017
    %s2024 = scalar_lea.vmem %s5, 112
    %v2025 = vld [vmem:[%s2024] sm:$0xf]
    %v2026 = vld [vmem:[%s2024 + $0x4] sm:$0xf]
    %v2027 = vld [vmem:[%s2024 + $0x8] sm:$0xf]
    %v2028 = vld [vmem:[%s2024 + $0xc] sm:$0xf]
    %v2029 = vld [vmem:[%s2024 + $0x10] sm:$0xf]
    %v2030 = vld [vmem:[%s2024 + $0x14] sm:$0xf]
    %v2031 = vld [vmem:[%s2024 + $0x18] sm:$0xf]
    %v2032 = vld [vmem:[%s2024 + $0x1c] sm:$0xf]
    %v2033 = vld [vmem:[%s2024 + $0x20] sm:$0xf]
    %v2034 = vld [vmem:[%s2024 + $0x24] sm:$0xf]
    %v2035 = vld [vmem:[%s2024 + $0x28] sm:$0xf]
    %v2036 = vld [vmem:[%s2024 + $0x2c] sm:$0xf]
    %v2037 = vld [vmem:[%s2024 + $0x30] sm:$0xf]
    %v2038 = vld [vmem:[%s2024 + $0x34] sm:$0xf]
    %v2053 = vunpack.c.l.b16 %v2025
    %v2054 = vunpack.c.l.b16 %v2026
    %v2055 = vunpack.c.l.b16 %v2027
    %v2056 = vunpack.c.l.b16 %v2028
    %v2057 = vunpack.c.l.b16 %v2029
    %v2058 = vunpack.c.l.b16 %v2030
    %v2059 = vunpack.c.l.b16 %v2031
    %v2060 = vunpack.c.l.b16 %v2032
    %v2061 = vunpack.c.l.b16 %v2033
    %v2062 = vunpack.c.l.b16 %v2034
    %v2063 = vunpack.c.l.b16 %v2035
    %v2064 = vunpack.c.l.b16 %v2036
    %v2065 = vunpack.c.l.b16 %v2037
    %v2066 = vunpack.c.l.b16 %v2038
    %v2067 = vpack.c.b16 %v2054, %v2053
    %v2068 = vpack.c.b16 %v2056, %v2055
    %v2069 = vpack.c.b16 %v2058, %v2057
    %v2070 = vpack.c.b16 %v2060, %v2059
    %v2071 = vpack.c.b16 %v2062, %v2061
    %v2072 = vpack.c.b16 %v2064, %v2063
    %v2073 = vpack.c.b16 %v2066, %v2065
    %v2081 = vsel %vm1862, %v2020, 0
    %v2083 = vsel %vm1862, %v2023, 0
    %2085 = vmatprep.subr.bf16.mxu0 0
    %2086 = vmatpush1.bf16.msra.mxu0 %v2067
    %2087 = vmatprep.subr.bf16.mxu0 0
    %2088 = vmatpush1.bf16.msra.mxu0 %v2068
    %2089 = vmatprep.subr.bf16.mxu0 0
    %2090 = vmatpush1.bf16.msra.mxu0 %v2069
    %2091 = vmatprep.subr.bf16.mxu0 0
    %2092 = vmatpush1.bf16.msra.mxu0 %v2070
    %2093 = vmatprep.subr.bf16.mxu0 0
    %2094 = vmatpush1.bf16.msra.mxu0 %v2071
    %2095 = vmatprep.subr.bf16.mxu0 0
    %2096 = vmatpush1.bf16.msra.mxu0 %v2072
    %2097 = vmatprep.subr.bf16.mxu0 0
    %2098 = vmatpush1.bf16.msra.mxu0 %v2073
    %2099 = vmatprep.subr.bf16.mxu0 0
    %2100 = vmatpush1.bf16.msra.mxu0 0
    %2101 = vmatprep.subr.bf16.mxu0 0
    %2102 = vmatpush1.bf16.msra.mxu0 0
    %2103 = vmatprep.subr.bf16.mxu0 0
    %2104 = vmatpush1.bf16.msra.mxu0 0
    %2105 = vmatprep.subr.bf16.mxu0 0
    %2106 = vmatpush1.bf16.msra.mxu0 0
    %2107 = vmatprep.subr.bf16.mxu0 0
    %2108 = vmatpush1.bf16.msra.mxu0 0
    %2109 = vmatprep.subr.bf16.mxu0 0
    %2110 = vmatpush1.bf16.msra.mxu0 0
    %2111 = vmatprep.subr.bf16.mxu0 0
    %2112 = vmatpush1.bf16.msra.mxu0 0
    %2113 = vmatprep.subr.bf16.mxu0 0
    %2114 = vmatpush1.bf16.msra.mxu0 0
    %2115 = vmatprep.subr.bf16.mxu0 0
    %2116 = vmatpush1.bf16.msra.mxu0 0
    %2117 = vmatprep.mubr.bf16.mxu0 0
    %2118 = vmatmul.mubr.bf16.gmra.mrb[0].mxu0 %v2081
    %v2119 = vpop.f32.mrb[0].mxu0
    %v2120 = vadd.f32 0.0, %v2119
    %v2121 = vpop.f32.mrb[0].mxu0
    %v2122 = vpop.f32.mrb[0].mxu0
    %v2123 = vadd.f32 0.0, %v2122
    %v2124 = vpop.f32.mrb[0].mxu0
    %2125 = vmatprep.mubr.bf16.mxu0 0
    %2126 = vmatmul.mubr.bf16.gmra.mrb[0].mxu0 %v2083
    %v2127 = vpop.f32.mrb[0].mxu0
    %v2128 = vadd.f32 0.0, %v2127
    %v2129 = vpop.f32.mrb[0].mxu0
    %v2130 = vpop.f32.mrb[0].mxu0
    %v2131 = vadd.f32 0.0, %v2130
    %v2132 = vpop.f32.mrb[0].mxu0
    %2133 = vdwg.mxu0
    %v2134 = vadd.f32 %v1997, %v2120
    %v2135 = vadd.f32 %v2000, %v2123
    %v2136 = vadd.f32 %v2005, %v2128
    %v2137 = vadd.f32 %v2008, %v2131
    %v2138 = vld [vmem:[%s6] sm:$0x1]
    %v2140 = vlaneseq
    %v2141 = vshrl.u32 %v2140, 7
    %v2142 = vsub.s32 0, %v2141
    %v2143 = vrot.slane %v2138, %v2142
    %v2145 = vadd.f32 %v2134, %v2143
    %v2146 = vadd.f32 %v2135, %v2143
    %v2147 = vadd.f32 %v2136, %v2143
    %v2148 = vadd.f32 %v2137, %v2143
    %v2149 = vmax.f32 %v2145, 0.0
    %v2150 = vmax.f32 %v2146, 0.0
    %v2151 = vmax.f32 %v2147, 0.0
    %v2152 = vmax.f32 %v2148, 0.0
    %v2153 = vadd.f32 %v2149, %v2150
    %v2154 = vadd.f32 %v2153, %v2151
    %v2155 = vadd.f32 %v2154, %v2152
    %2157 = vrot.lane.b32.xlu0 %v2155, 118
    %v2158 = vpop.permute.xlu0 %2157
    %v2160 = vadd.f32 %v2155, %v2158
    %2161 = vrot.lane.b32.xlu0 %v2155, 108
    %v2162 = vpop.permute.xlu0 %2161
    %v2164 = vadd.f32 %v2160, %v2162
    %2165 = vrot.lane.b32.xlu0 %v2155, 98
    %v2166 = vpop.permute.xlu0 %2165
    %v2168 = vadd.f32 %v2164, %v2166
    %v2169 = vmul.f32 %v2168, 0.0625
    %vm2170 = vcmask 80896
    %2171 = vst.msk [vmem:[#allocation5] sm:$0xff] %vm2170, %v2169
    // Predicated region
    $region30: #{mnist_cnn_forward.1} parent=1 // pred_check
      _
    $region31: #{mnist_cnn_forward.1} parent=1 // pred_check_branch
      %2173 = sbr.rel (0) target = $region33
    $region32: #{mnist_cnn_forward.1} parent=1 // pred_region
      %s2175 = ssub.s32 128, 128
      %2176 = vsyncadd [#allocation6], %s2175
      %s2178 = sshll.u32 [#allocation5], 4
      %s2179 = int_to_ptr.vmem [resolvable:$true] %s2178
      %2181 = dma.vmem_to_hbm [thread:$0]  %s2179, 128, %s7, [#allocation6]
    $region33: #{mnist_cnn_forward.1} parent=1 // pred_fallthru
      _
    // Predicated region
    $region34: #{mnist_cnn_forward.1} parent=1 // pred_check
      _
    $region35: #{mnist_cnn_forward.1} parent=1 // pred_check_branch
      %2183 = sbr.rel (0) target = $region37
    $region36: #{mnist_cnn_forward.1} parent=1 // pred_region
      %2184 = dma.done [#allocation6], 128
    $region37: #{mnist_cnn_forward.1} parent=1 // pred_fallthru
      _
    %2185 = vsyncpa [#allocation6], 1

</llo_original>
